<compile_context>
chip_gen: v7x
topology: tpu7x:2x2x1
jax: 0.10.0
libtpu: 0.0.40
codegen_flags: <defaults>
</compile_context>

<pallas_src>
import functools

import jax
import jax.numpy as jnp
import numpy as np
from jax.experimental import pallas as pl
from jax.experimental.pallas import tpu as pltpu


def _round_up(x, m):
    return -(-x // m) * m


def _pick_tile_b(B, max_tile=1024):
    """Largest multiple-of-256 batch tile <= max_tile that still leaves >= 2
    grid steps (so both v7x TensorCores get work); 256 floor fills the MXU."""
    if B <= 256:
        return 256
    tile = min(max_tile, _round_up(B, 256) // 2)
    return max(256, (tile // 256) * 256)


def default_elementwise_dtype():
    """bf16 bias/ReLU on bf16-native VPUs (v6e/v7x); f32 on v5e and older."""
    try:
        kind = jax.devices()[0].device_kind.lower()
    except Exception:  # pragma: no cover - defensive
        return jnp.float32
    if any(t in kind for t in ("v2", "v3", "v4", "v5 lite", "v5e", "v5lite")):
        return jnp.float32
    return jnp.bfloat16


# ----------------------------- Pallas kernel --------------------------------
def wavenet_kernel(x_ref,
                   w0_ref, b0_ref, w1_ref, b1_ref, w2_ref, b2_ref,
                   w3_ref, b3_ref, w4_ref, b4_ref, w5_ref, b5_ref,
                   wb1_ref, bb1_ref, wb2_ref, bb2_ref,
                   out_ref):
    # BatchNorm is already folded into (w0, b0) by the wrapper.

    def dense_relu(h, w_ref, b_ref):
        # bf16 operands on the MXU, f32 accumulation; bias/ReLU run in the
        # bias dtype (bf16 on v6e/v7x, f32 on v5e).
        y = jnp.dot(h.astype(w_ref.dtype), w_ref[...],
                    preferred_element_type=jnp.float32)
        y = y.astype(b_ref.dtype) + b_ref[...]
        return jnp.maximum(y, 0.0)

    # shared trunk: n_in -> 256 -> 256 x4 -> 64, ReLU after each
    h = dense_relu(x_ref[...], w0_ref, b0_ref)
    h = dense_relu(h, w1_ref, b1_ref)
    h = dense_relu(h, w2_ref, b2_ref)
    h = dense_relu(h, w3_ref, b3_ref)
    h = dense_relu(h, w4_ref, b4_ref)
    z = dense_relu(h, w5_ref, b5_ref)                          # (TILE_B, 64)

    # fused branches: 64 -> n_out*32 (ReLU), then a block-diagonal second layer
    # zero-padded to 128 output lanes so the store below is lane-dense.
    hb = dense_relu(z, wb1_ref, bb1_ref)                       # (TILE_B, n_out*32)
    out = jnp.dot(hb.astype(wb2_ref.dtype), wb2_ref[...],
                  preferred_element_type=jnp.float32) + bb2_ref[...]
    out_ref[...] = out.astype(out_ref.dtype)                   # (TILE_B, 128), f32


# ------------------------------ host wrapper ---------------------------------
@functools.partial(jax.jit, static_argnames=("n_out", "tile_b", "matmul_dtype",
                                             "elementwise_dtype", "core_parallel"))
def wavenet_forward(x, params, *, n_out, tile_b=None,
                    matmul_dtype=jnp.bfloat16,
                    elementwise_dtype=jnp.bfloat16,
                    core_parallel=False):
    """Forward pass.  `params` must be float32 (see init_params); matmul
    weights are cast once per call, after the per-call BatchNorm fold."""
    B, n_in = x.shape
    n_pad = params["wb2"].shape[-1]          # branch output, padded to 128 lanes

    # Training-mode BatchNorm1d (full-batch stats, biased var, eps=1e-5) folded
    # into the first Linear layer: fold on the f32 copy, cast to bf16 once.
    mean = jnp.mean(x, axis=0, keepdims=True)
    var = jnp.mean((x - mean) ** 2, axis=0, keepdims=True)
    scale = params["gamma"] * jax.lax.rsqrt(var + 1e-5)        # (1, n_in)
    shift = params["beta"] - mean * scale                      # (1, n_in)
    w0_eff = scale.reshape(n_in, 1) * params["w0"]             # f32 fold
    b0_eff = shift @ params["w0"] + params["b0"]               # (1, 256), f32

    mm, ew = matmul_dtype, elementwise_dtype
    weights = (
        w0_eff.astype(mm), b0_eff.astype(ew),
        params["w1"].astype(mm), params["b1"].astype(ew),
        params["w2"].astype(mm), params["b2"].astype(ew),
        params["w3"].astype(mm), params["b3"].astype(ew),
        params["w4"].astype(mm), params["b4"].astype(ew),
        params["w5"].astype(mm), params["b5"].astype(ew),
        params["wb1"].astype(mm), params["bb1"].astype(ew),
        params["wb2"].astype(mm), params["bb2"],               # final bias stays f32
    )

    if tile_b is None:
        tile_b = _pick_tile_b(B)
    b_pad = _round_up(B, tile_b)
    if b_pad != B:
        x = jnp.pad(x, ((0, b_pad - B), (0, 0)))               # stats already done

    args = (x,) + weights

    def resident(arr):
        # full-array block, constant block index => stays resident in VMEM
        return pl.BlockSpec(arr.shape, lambda i: (0, 0))

    in_specs = [pl.BlockSpec((tile_b, n_in), lambda i: (i, 0))]
    in_specs += [resident(w) for w in weights]
    out_specs = pl.BlockSpec((tile_b, n_pad), lambda i: (i, 0))

    # Advisory cost estimate from the true batch and the dtypes actually moved.
    dims = (n_in, 256, 256, 256, 256, 256, 64, n_out * 32, n_pad)
    flops = 2 * b_pad * sum(a * b for a, b in zip(dims[:-1], dims[1:]))
    bytes_accessed = (B * n_in * 4 + B * n_pad * 4
                      + sum(int(w.size) * w.dtype.itemsize for w in weights))

    # On v7x pass core_parallel=True so the batch-tile axis is split across the
    # two TensorCores; on single-core chips (v5e/v6e) "parallel" is the safe default.
    dim_sem = (pltpu.CORE_PARALLEL,) if core_parallel else ("parallel",)

    out = pl.pallas_call(
        wavenet_kernel,
        out_shape=jax.ShapeDtypeStruct((b_pad, n_pad), jnp.float32),
        grid=(b_pad // tile_b,),
        in_specs=in_specs,
        out_specs=out_specs,
        compiler_params=pltpu.CompilerParams(
            dimension_semantics=dim_sem,
            # ~0.6 MB weights + double-buffered (tile_b, n_in)/(tile_b, 128)
            # tiles + intermediates: < 8 MiB at tile_b=1024; 32 MiB is safe on
            # every generation (v7x physical VMEM is 64 MiB per core).
            vmem_limit_bytes=32 * 1024 * 1024),
        cost_estimate=pl.CostEstimate(flops=flops, transcendentals=0,
                                      bytes_accessed=bytes_accessed),
    )(*args)
    return out[:B, :n_out]


# --------------------------- deterministic params ----------------------------
def init_params(key, n_in, n_out, branch_dims=(64, 32), lane_pad=128):
    """f32 parameters matching the PyTorch module's init (Xavier weights,
    default Linear bias init, BatchNorm gamma=1/beta=0), with the n_out branch
    heads fused and the final layer zero-padded to `lane_pad` output lanes."""

    def xavier(k, fan_in, fan_out):
        bound = float(np.sqrt(6.0 / (fan_in + fan_out)))
        return jax.random.uniform(k, (fan_in, fan_out), jnp.float32, -bound, bound)

    def bias(k, fan_in, fan_out):
        bound = float(1.0 / np.sqrt(fan_in))
        return jax.random.uniform(k, (1, fan_out), jnp.float32, -bound, bound)

    keys = iter(jax.random.split(key, 12 + 4 * n_out))
    p = {}
    p["gamma"] = jnp.ones((1, n_in), jnp.float32)
    p["beta"] = jnp.zeros((1, n_in), jnp.float32)

    dims = [n_in, 256, 256, 256, 256, 256, branch_dims[0]]
    for i, (a, b) in enumerate(zip(dims[:-1], dims[1:])):
        p[f"w{i}"] = xavier(next(keys), a, b)
        p[f"b{i}"] = bias(next(keys), a, b)

    d0, d1 = branch_dims
    wb1_list, bb1_list, wb2_cols, bb2_list = [], [], [], []
    for _ in range(n_out):
        wb1_list.append(xavier(next(keys), d0, d1))            # (64, 32)
        bb1_list.append(bias(next(keys), d0, d1))              # (1, 32)
        wb2_cols.append(xavier(next(keys), d1, 1))             # (32, 1)
        bb2_list.append(bias(next(keys), d1, 1))               # (1, 1)
    p["wb1"] = jnp.concatenate(wb1_list, axis=1)               # (64, n_out*32)
    p["bb1"] = jnp.concatenate(bb1_list, axis=1)               # (1, n_out*32)

    # Block-diagonal second branch layer, zero-padded to a lane-dense width.
    n_pad = _round_up(max(n_out, 1), lane_pad)
    wb2 = np.zeros((n_out * d1, n_pad), np.float32)
    bb2 = np.zeros((1, n_pad), np.float32)
    for j in range(n_out):
        wb2[j * d1:(j + 1) * d1, j] = np.asarray(wb2_cols[j][:, 0])
        bb2[0, j] = float(bb2_list[j][0, 0])
    p["wb2"] = jnp.asarray(wb2)
    p["bb2"] = jnp.asarray(bb2)
    return p


# ------------------------------- JAX reference --------------------------------
def wavenet_reference(x, params, n_out, matmul_dtype=jnp.float32,
                      elementwise_dtype=jnp.float32):
    """Plain-XLA forward mirroring the kernel's exact dtype policy (BN folded
    into layer 0, `matmul_dtype` MXU operands with f32 accumulation,
    `elementwise_dtype` bias-add/ReLU, f32 final bias/output)."""
    mean = jnp.mean(x, axis=0, keepdims=True)
    var = jnp.mean((x - mean) ** 2, axis=0, keepdims=True)
    scale = params["gamma"] * jax.lax.rsqrt(var + 1e-5)
    shift = params["beta"] - mean * scale
    w0 = scale.reshape(-1, 1) * params["w0"]
    b0 = shift @ params["w0"] + params["b0"]

    ws = [w0] + [params[f"w{i}"] for i in range(1, 6)] + [params["wb1"], params["wb2"]]
    bs = [b0] + [params[f"b{i}"] for i in range(1, 6)] + [params["bb1"], params["bb2"]]

    h = x
    for i in range(7):
        y = jnp.dot(h.astype(matmul_dtype), ws[i].astype(matmul_dtype),
                    preferred_element_type=jnp.float32)
        y = y.astype(elementwise_dtype) + bs[i].astype(elementwise_dtype)
        h = jnp.maximum(y, 0.0)
    out = jnp.dot(h.astype(matmul_dtype), ws[7].astype(matmul_dtype),
                  preferred_element_type=jnp.float32) + bs[7]
    return out[:, :n_out]


# ----------------------------------- main --------------------------------------
if __name__ == "__main__":
    B, n_in, n_out = 1024, 16, 4           # small; auto tile_b=512 -> 2 batch tiles
    key = jax.random.PRNGKey(0)
    k_x, k_p = jax.random.split(key)
    x = jax.random.normal(k_x, (B, n_in), jnp.float32)

    params = init_params(k_p, n_in, n_out)            # f32; wrapper casts to bf16
    ew = default_elementwise_dtype()                  # bf16 on v6e/v7x, f32 on v5e

    out = wavenet_forward(x, params, n_out=n_out, elementwise_dtype=ew)
    out = jax.block_until_ready(out)
    assert out.shape == (B, n_out), out.shape

    # Tight check: kernel vs a plain-XLA forward with the identical dtype policy
    # (bf16 matmul operands, f32 accumulation, same elementwise dtype).
    ref_same = wavenet_reference(x, params, n_out,
                                 matmul_dtype=jnp.bfloat16, elementwise_dtype=ew)
    np.testing.assert_allclose(np.asarray(out), np.asarray(ref_same),
                               rtol=1e-2, atol=1e-2)

    # Loose check: bf16-operand kernel vs the full-f32 reference (semantic
    # deviation from the f32 model is small; the original module is f64 anyway).
    ref_f32 = wavenet_reference(x, params, n_out)
    np.testing.assert_allclose(np.asarray(out), np.asarray(ref_f32),
                               rtol=5e-2, atol=5e-2)

    print("KERNEL_OK")
</pallas_src>

<mosaic_0001>
module attributes {stable_mosaic.version = 11 : i64} {
  func.func @wavenet_kernel(%arg0: i32, %arg1: memref<512x16xf32, #tpu.memory_space<vmem>>, %arg2: memref<16x256xbf16, #tpu.memory_space<vmem>>, %arg3: memref<1x256xbf16, #tpu.memory_space<vmem>>, %arg4: memref<256x256xbf16, #tpu.memory_space<vmem>>, %arg5: memref<1x256xbf16, #tpu.memory_space<vmem>>, %arg6: memref<256x256xbf16, #tpu.memory_space<vmem>>, %arg7: memref<1x256xbf16, #tpu.memory_space<vmem>>, %arg8: memref<256x256xbf16, #tpu.memory_space<vmem>>, %arg9: memref<1x256xbf16, #tpu.memory_space<vmem>>, %arg10: memref<256x256xbf16, #tpu.memory_space<vmem>>, %arg11: memref<1x256xbf16, #tpu.memory_space<vmem>>, %arg12: memref<256x64xbf16, #tpu.memory_space<vmem>>, %arg13: memref<1x64xbf16, #tpu.memory_space<vmem>>, %arg14: memref<64x128xbf16, #tpu.memory_space<vmem>>, %arg15: memref<1x128xbf16, #tpu.memory_space<vmem>>, %arg16: memref<128x128xbf16, #tpu.memory_space<vmem>>, %arg17: memref<1x128xf32, #tpu.memory_space<vmem>>, %arg18: memref<512x128xf32, #tpu.memory_space<vmem>>) attributes {dimension_semantics = [#tpu.dimension_semantics<parallel>], iteration_bounds = array<i64: 2>, scalar_prefetch = 0 : i64, scratch_operands = 0 : i64, tpu.core_type = #tpu.core_type<tc>, window_params = [{transform_indices = @transform_0, window_bounds = array<i64: 512, 16>}, {pipeline_mode = #tpu.pipeline_mode<synchronous>, transform_indices = @transform_1, window_bounds = array<i64: 16, 256>}, {pipeline_mode = #tpu.pipeline_mode<synchronous>, transform_indices = @transform_2, window_bounds = array<i64: 1, 256>}, {pipeline_mode = #tpu.pipeline_mode<synchronous>, transform_indices = @transform_3, window_bounds = array<i64: 256, 256>}, {pipeline_mode = #tpu.pipeline_mode<synchronous>, transform_indices = @transform_4, window_bounds = array<i64: 1, 256>}, {pipeline_mode = #tpu.pipeline_mode<synchronous>, transform_indices = @transform_5, window_bounds = array<i64: 256, 256>}, {pipeline_mode = #tpu.pipeline_mode<synchronous>, transform_indices = @transform_6, window_bounds = array<i64: 1, 256>}, {pipeline_mode = #tpu.pipeline_mode<synchronous>, transform_indices = @transform_7, window_bounds = array<i64: 256, 256>}, {pipeline_mode = #tpu.pipeline_mode<synchronous>, transform_indices = @transform_8, window_bounds = array<i64: 1, 256>}, {pipeline_mode = #tpu.pipeline_mode<synchronous>, transform_indices = @transform_9, window_bounds = array<i64: 256, 256>}, {pipeline_mode = #tpu.pipeline_mode<synchronous>, transform_indices = @transform_10, window_bounds = array<i64: 1, 256>}, {pipeline_mode = #tpu.pipeline_mode<synchronous>, transform_indices = @transform_11, window_bounds = array<i64: 256, 64>}, {pipeline_mode = #tpu.pipeline_mode<synchronous>, transform_indices = @transform_12, window_bounds = array<i64: 1, 64>}, {pipeline_mode = #tpu.pipeline_mode<synchronous>, transform_indices = @transform_13, window_bounds = array<i64: 64, 128>}, {pipeline_mode = #tpu.pipeline_mode<synchronous>, transform_indices = @transform_14, window_bounds = array<i64: 1, 128>}, {pipeline_mode = #tpu.pipeline_mode<synchronous>, transform_indices = @transform_15, window_bounds = array<i64: 128, 128>}, {pipeline_mode = #tpu.pipeline_mode<synchronous>, transform_indices = @transform_16, window_bounds = array<i64: 1, 128>}, {transform_indices = @transform_17, window_bounds = array<i64: 512, 128>}]} {
    %c0 = arith.constant 0 : index
    %c0_0 = arith.constant 0 : index
    %0 = vector.load %arg1[%c0, %c0_0] : memref<512x16xf32, #tpu.memory_space<vmem>>, vector<512x16xf32>
    %1 = arith.truncf %0 : vector<512x16xf32> to vector<512x16xbf16>
    %c0_1 = arith.constant 0 : index
    %c0_2 = arith.constant 0 : index
    %2 = vector.load %arg2[%c0_1, %c0_2] : memref<16x256xbf16, #tpu.memory_space<vmem>>, vector<16x256xbf16>
    %cst = arith.constant dense<0.000000e+00> : vector<512x256xf32>
    %3 = tpu.matmul %1, %2, %cst {dimension_numbers = #tpu.dot_dimension_numbers<[1], [0], [0], [1], [0, 0, 1, 1], [], []>} : vector<512x16xbf16>, vector<16x256xbf16>, vector<512x256xf32> -> vector<512x256xf32>
    %4 = arith.truncf %3 : vector<512x256xf32> to vector<512x256xbf16>
    %c0_3 = arith.constant 0 : index
    %c0_4 = arith.constant 0 : index
    %5 = vector.load %arg3[%c0_3, %c0_4] : memref<1x256xbf16, #tpu.memory_space<vmem>>, vector<1x256xbf16>
    %6 = vector.broadcast %5 : vector<1x256xbf16> to vector<512x256xbf16>
    %7 = arith.addf %4, %6 : vector<512x256xbf16>
    %cst_5 = arith.constant 0.000000e+00 : bf16
    %8 = vector.broadcast %cst_5 : bf16 to vector<512x256xbf16>
    %9 = arith.maximumf %7, %8 : vector<512x256xbf16>
    %c0_6 = arith.constant 0 : index
    %c0_7 = arith.constant 0 : index
    %10 = vector.load %arg4[%c0_6, %c0_7] : memref<256x256xbf16, #tpu.memory_space<vmem>>, vector<256x256xbf16>
    %cst_8 = arith.constant dense<0.000000e+00> : vector<512x256xf32>
    %11 = tpu.matmul %9, %10, %cst_8 {dimension_numbers = #tpu.dot_dimension_numbers<[1], [0], [0], [1], [0, 0, 1, 1], [], []>} : vector<512x256xbf16>, vector<256x256xbf16>, vector<512x256xf32> -> vector<512x256xf32>
    %12 = arith.truncf %11 : vector<512x256xf32> to vector<512x256xbf16>
    %c0_9 = arith.constant 0 : index
    %c0_10 = arith.constant 0 : index
    %13 = vector.load %arg5[%c0_9, %c0_10] : memref<1x256xbf16, #tpu.memory_space<vmem>>, vector<1x256xbf16>
    %14 = vector.broadcast %13 : vector<1x256xbf16> to vector<512x256xbf16>
    %15 = arith.addf %12, %14 : vector<512x256xbf16>
    %cst_11 = arith.constant 0.000000e+00 : bf16
    %16 = vector.broadcast %cst_11 : bf16 to vector<512x256xbf16>
    %17 = arith.maximumf %15, %16 : vector<512x256xbf16>
    %c0_12 = arith.constant 0 : index
    %c0_13 = arith.constant 0 : index
    %18 = vector.load %arg6[%c0_12, %c0_13] : memref<256x256xbf16, #tpu.memory_space<vmem>>, vector<256x256xbf16>
    %cst_14 = arith.constant dense<0.000000e+00> : vector<512x256xf32>
    %19 = tpu.matmul %17, %18, %cst_14 {dimension_numbers = #tpu.dot_dimension_numbers<[1], [0], [0], [1], [0, 0, 1, 1], [], []>} : vector<512x256xbf16>, vector<256x256xbf16>, vector<512x256xf32> -> vector<512x256xf32>
    %20 = arith.truncf %19 : vector<512x256xf32> to vector<512x256xbf16>
    %c0_15 = arith.constant 0 : index
    %c0_16 = arith.constant 0 : index
    %21 = vector.load %arg7[%c0_15, %c0_16] : memref<1x256xbf16, #tpu.memory_space<vmem>>, vector<1x256xbf16>
    %22 = vector.broadcast %21 : vector<1x256xbf16> to vector<512x256xbf16>
    %23 = arith.addf %20, %22 : vector<512x256xbf16>
    %cst_17 = arith.constant 0.000000e+00 : bf16
    %24 = vector.broadcast %cst_17 : bf16 to vector<512x256xbf16>
    %25 = arith.maximumf %23, %24 : vector<512x256xbf16>
    %c0_18 = arith.constant 0 : index
    %c0_19 = arith.constant 0 : index
    %26 = vector.load %arg8[%c0_18, %c0_19] : memref<256x256xbf16, #tpu.memory_space<vmem>>, vector<256x256xbf16>
    %cst_20 = arith.constant dense<0.000000e+00> : vector<512x256xf32>
    %27 = tpu.matmul %25, %26, %cst_20 {dimension_numbers = #tpu.dot_dimension_numbers<[1], [0], [0], [1], [0, 0, 1, 1], [], []>} : vector<512x256xbf16>, vector<256x256xbf16>, vector<512x256xf32> -> vector<512x256xf32>
    %28 = arith.truncf %27 : vector<512x256xf32> to vector<512x256xbf16>
    %c0_21 = arith.constant 0 : index
    %c0_22 = arith.constant 0 : index
    %29 = vector.load %arg9[%c0_21, %c0_22] : memref<1x256xbf16, #tpu.memory_space<vmem>>, vector<1x256xbf16>
    %30 = vector.broadcast %29 : vector<1x256xbf16> to vector<512x256xbf16>
    %31 = arith.addf %28, %30 : vector<512x256xbf16>
    %cst_23 = arith.constant 0.000000e+00 : bf16
    %32 = vector.broadcast %cst_23 : bf16 to vector<512x256xbf16>
    %33 = arith.maximumf %31, %32 : vector<512x256xbf16>
    %c0_24 = arith.constant 0 : index
    %c0_25 = arith.constant 0 : index
    %34 = vector.load %arg10[%c0_24, %c0_25] : memref<256x256xbf16, #tpu.memory_space<vmem>>, vector<256x256xbf16>
    %cst_26 = arith.constant dense<0.000000e+00> : vector<512x256xf32>
    %35 = tpu.matmul %33, %34, %cst_26 {dimension_numbers = #tpu.dot_dimension_numbers<[1], [0], [0], [1], [0, 0, 1, 1], [], []>} : vector<512x256xbf16>, vector<256x256xbf16>, vector<512x256xf32> -> vector<512x256xf32>
    %36 = arith.truncf %35 : vector<512x256xf32> to vector<512x256xbf16>
    %c0_27 = arith.constant 0 : index
    %c0_28 = arith.constant 0 : index
    %37 = vector.load %arg11[%c0_27, %c0_28] : memref<1x256xbf16, #tpu.memory_space<vmem>>, vector<1x256xbf16>
    %38 = vector.broadcast %37 : vector<1x256xbf16> to vector<512x256xbf16>
    %39 = arith.addf %36, %38 : vector<512x256xbf16>
    %cst_29 = arith.constant 0.000000e+00 : bf16
    %40 = vector.broadcast %cst_29 : bf16 to vector<512x256xbf16>
    %41 = arith.maximumf %39, %40 : vector<512x256xbf16>
    %c0_30 = arith.constant 0 : index
    %c0_31 = arith.constant 0 : index
    %42 = vector.load %arg12[%c0_30, %c0_31] : memref<256x64xbf16, #tpu.memory_space<vmem>>, vector<256x64xbf16>
    %cst_32 = arith.constant dense<0.000000e+00> : vector<512x64xf32>
    %43 = tpu.matmul %41, %42, %cst_32 {dimension_numbers = #tpu.dot_dimension_numbers<[1], [0], [0], [1], [0, 0, 1, 1], [], []>} : vector<512x256xbf16>, vector<256x64xbf16>, vector<512x64xf32> -> vector<512x64xf32>
    %44 = arith.truncf %43 : vector<512x64xf32> to vector<512x64xbf16>
    %c0_33 = arith.constant 0 : index
    %c0_34 = arith.constant 0 : index
    %45 = vector.load %arg13[%c0_33, %c0_34] : memref<1x64xbf16, #tpu.memory_space<vmem>>, vector<1x64xbf16>
    %46 = vector.broadcast %45 : vector<1x64xbf16> to vector<512x64xbf16>
    %47 = arith.addf %44, %46 : vector<512x64xbf16>
    %cst_35 = arith.constant 0.000000e+00 : bf16
    %48 = vector.broadcast %cst_35 : bf16 to vector<512x64xbf16>
    %49 = arith.maximumf %47, %48 : vector<512x64xbf16>
    %c0_36 = arith.constant 0 : index
    %c0_37 = arith.constant 0 : index
    %50 = vector.load %arg14[%c0_36, %c0_37] : memref<64x128xbf16, #tpu.memory_space<vmem>>, vector<64x128xbf16>
    %cst_38 = arith.constant dense<0.000000e+00> : vector<512x128xf32>
    %51 = tpu.matmul %49, %50, %cst_38 {dimension_numbers = #tpu.dot_dimension_numbers<[1], [0], [0], [1], [0, 0, 1, 1], [], []>} : vector<512x64xbf16>, vector<64x128xbf16>, vector<512x128xf32> -> vector<512x128xf32>
    %52 = arith.truncf %51 : vector<512x128xf32> to vector<512x128xbf16>
    %c0_39 = arith.constant 0 : index
    %c0_40 = arith.constant 0 : index
    %53 = vector.load %arg15[%c0_39, %c0_40] : memref<1x128xbf16, #tpu.memory_space<vmem>>, vector<1x128xbf16>
    %54 = vector.broadcast %53 : vector<1x128xbf16> to vector<512x128xbf16>
    %55 = arith.addf %52, %54 : vector<512x128xbf16>
    %cst_41 = arith.constant 0.000000e+00 : bf16
    %56 = vector.broadcast %cst_41 : bf16 to vector<512x128xbf16>
    %57 = arith.maximumf %55, %56 : vector<512x128xbf16>
    %c0_42 = arith.constant 0 : index
    %c0_43 = arith.constant 0 : index
    %58 = vector.load %arg16[%c0_42, %c0_43] : memref<128x128xbf16, #tpu.memory_space<vmem>>, vector<128x128xbf16>
    %cst_44 = arith.constant dense<0.000000e+00> : vector<512x128xf32>
    %59 = tpu.matmul %57, %58, %cst_44 {dimension_numbers = #tpu.dot_dimension_numbers<[1], [0], [0], [1], [0, 0, 1, 1], [], []>} : vector<512x128xbf16>, vector<128x128xbf16>, vector<512x128xf32> -> vector<512x128xf32>
    %c0_45 = arith.constant 0 : index
    %c0_46 = arith.constant 0 : index
    %60 = vector.load %arg17[%c0_45, %c0_46] : memref<1x128xf32, #tpu.memory_space<vmem>>, vector<1x128xf32>
    %61 = vector.broadcast %60 : vector<1x128xf32> to vector<512x128xf32>
    %62 = arith.addf %59, %61 : vector<512x128xf32>
    %c0_47 = arith.constant 0 : index
    %c0_48 = arith.constant 0 : index
    %63 = vector.load %arg18[%c0_47, %c0_48] : memref<512x128xf32, #tpu.memory_space<vmem>>, vector<512x128xf32>
    tpu.vector_store %arg18[%c0_47, %c0_48], %62 {strides = array<i32>} : memref<512x128xf32, #tpu.memory_space<vmem>>, vector<512x128xf32>,
    return
  }
  func.func @transform_0(%arg0: i32) -> (i32, i32) {
    %c0_i32 = arith.constant 0 : i32
    %c0_i32_0 = arith.constant 0 : i32
    return %arg0, %c0_i32 : i32, i32
  }
  func.func @transform_1(%arg0: i32) -> (i32, i32) {
    %c0_i32 = arith.constant 0 : i32
    %c0_i32_0 = arith.constant 0 : i32
    %c0_i32_1 = arith.constant 0 : i32
    return %c0_i32, %c0_i32_0 : i32, i32
  }
  func.func @transform_2(%arg0: i32) -> (i32, i32) {
    %c0_i32 = arith.constant 0 : i32
    %c0_i32_0 = arith.constant 0 : i32
    %c0_i32_1 = arith.constant 0 : i32
    return %c0_i32, %c0_i32_0 : i32, i32
  }
  func.func @transform_3(%arg0: i32) -> (i32, i32) {
    %c0_i32 = arith.constant 0 : i32
    %c0_i32_0 = arith.constant 0 : i32
    %c0_i32_1 = arith.constant 0 : i32
    return %c0_i32, %c0_i32_0 : i32, i32
  }
  func.func @transform_4(%arg0: i32) -> (i32, i32) {
    %c0_i32 = arith.constant 0 : i32
    %c0_i32_0 = arith.constant 0 : i32
    %c0_i32_1 = arith.constant 0 : i32
    return %c0_i32, %c0_i32_0 : i32, i32
  }
  func.func @transform_5(%arg0: i32) -> (i32, i32) {
    %c0_i32 = arith.constant 0 : i32
    %c0_i32_0 = arith.constant 0 : i32
    %c0_i32_1 = arith.constant 0 : i32
    return %c0_i32, %c0_i32_0 : i32, i32
  }
  func.func @transform_6(%arg0: i32) -> (i32, i32) {
    %c0_i32 = arith.constant 0 : i32
    %c0_i32_0 = arith.constant 0 : i32
    %c0_i32_1 = arith.constant 0 : i32
    return %c0_i32, %c0_i32_0 : i32, i32
  }
  func.func @transform_7(%arg0: i32) -> (i32, i32) {
    %c0_i32 = arith.constant 0 : i32
    %c0_i32_0 = arith.constant 0 : i32
    %c0_i32_1 = arith.constant 0 : i32
    return %c0_i32, %c0_i32_0 : i32, i32
  }
  func.func @transform_8(%arg0: i32) -> (i32, i32) {
    %c0_i32 = arith.constant 0 : i32
    %c0_i32_0 = arith.constant 0 : i32
    %c0_i32_1 = arith.constant 0 : i32
    return %c0_i32, %c0_i32_0 : i32, i32
  }
  func.func @transform_9(%arg0: i32) -> (i32, i32) {
    %c0_i32 = arith.constant 0 : i32
    %c0_i32_0 = arith.constant 0 : i32
    %c0_i32_1 = arith.constant 0 : i32
    return %c0_i32, %c0_i32_0 : i32, i32
  }
  func.func @transform_10(%arg0: i32) -> (i32, i32) {
    %c0_i32 = arith.constant 0 : i32
    %c0_i32_0 = arith.constant 0 : i32
    %c0_i32_1 = arith.constant 0 : i32
    return %c0_i32, %c0_i32_0 : i32, i32
  }
  func.func @transform_11(%arg0: i32) -> (i32, i32) {
    %c0_i32 = arith.constant 0 : i32
    %c0_i32_0 = arith.constant 0 : i32
    %c0_i32_1 = arith.constant 0 : i32
    return %c0_i32, %c0_i32_0 : i32, i32
  }
  func.func @transform_12(%arg0: i32) -> (i32, i32) {
    %c0_i32 = arith.constant 0 : i32
    %c0_i32_0 = arith.constant 0 : i32
    %c0_i32_1 = arith.constant 0 : i32
    return %c0_i32, %c0_i32_0 : i32, i32
  }
  func.func @transform_13(%arg0: i32) -> (i32, i32) {
    %c0_i32 = arith.constant 0 : i32
    %c0_i32_0 = arith.constant 0 : i32
    %c0_i32_1 = arith.constant 0 : i32
    return %c0_i32, %c0_i32_0 : i32, i32
  }
  func.func @transform_14(%arg0: i32) -> (i32, i32) {
    %c0_i32 = arith.constant 0 : i32
    %c0_i32_0 = arith.constant 0 : i32
    %c0_i32_1 = arith.constant 0 : i32
    return %c0_i32, %c0_i32_0 : i32, i32
  }
  func.func @transform_15(%arg0: i32) -> (i32, i32) {
    %c0_i32 = arith.constant 0 : i32
    %c0_i32_0 = arith.constant 0 : i32
    %c0_i32_1 = arith.constant 0 : i32
    return %c0_i32, %c0_i32_0 : i32, i32
  }
  func.func @transform_16(%arg0: i32) -> (i32, i32) {
    %c0_i32 = arith.constant 0 : i32
    %c0_i32_0 = arith.constant 0 : i32
    %c0_i32_1 = arith.constant 0 : i32
    return %c0_i32, %c0_i32_0 : i32, i32
  }
  func.func @transform_17(%arg0: i32) -> (i32, i32) {
    %c0_i32 = arith.constant 0 : i32
    %c0_i32_0 = arith.constant 0 : i32
    return %arg0, %c0_i32 : i32, i32
  }
}

</mosaic_0001>

<llo_original>
// kernel: wavenet_forward.1
$region0: #{wavenet_forward.1}
  #allocation0 [shape = 'u32[]', space=smem, size = 0x4, offset = 0x4, fixed_abs, tag = 'smem constant byte address 0x4 - core index']
  #allocation1 [shape = 'u32[144,128]{1,0:T(1,128)}', space=vmem, size = 0x12000, scoped, tag = 'internal scratch']
  %s0 = inlined_call_operand.vmem [shape: f32[1024,16], index: 0, kind: input, shape index: {}]
  %s1 = inlined_call_operand.vmem [shape: bf16[16,256], index: 1, kind: input, shape index: {}]
  %s2 = inlined_call_operand.vmem [shape: bf16[1,256], index: 2, kind: input, shape index: {}]
  %s3 = inlined_call_operand.vmem [shape: bf16[256,256], index: 3, kind: input, shape index: {}]
  %s4 = inlined_call_operand.vmem [shape: bf16[1,256], index: 4, kind: input, shape index: {}]
  %s5 = inlined_call_operand.vmem [shape: bf16[256,256], index: 5, kind: input, shape index: {}]
  %s6 = inlined_call_operand.vmem [shape: bf16[1,256], index: 6, kind: input, shape index: {}]
  %s7 = inlined_call_operand.vmem [shape: bf16[256,256], index: 7, kind: input, shape index: {}]
  %s8 = inlined_call_operand.vmem [shape: bf16[1,256], index: 8, kind: input, shape index: {}]
  %s9 = inlined_call_operand.vmem [shape: bf16[256,256], index: 9, kind: input, shape index: {}]
  %s10 = inlined_call_operand.vmem [shape: bf16[1,256], index: 10, kind: input, shape index: {}]
  %s11 = inlined_call_operand.vmem [shape: bf16[256,64], index: 11, kind: input, shape index: {}]
  %s12 = inlined_call_operand.vmem [shape: bf16[1,64], index: 12, kind: input, shape index: {}]
  %s13 = inlined_call_operand.vmem [shape: bf16[64,128], index: 13, kind: input, shape index: {}]
  %s14 = inlined_call_operand.vmem [shape: bf16[1,128], index: 14, kind: input, shape index: {}]
  %s15 = inlined_call_operand.vmem [shape: bf16[128,128], index: 15, kind: input, shape index: {}]
  %s16 = inlined_call_operand.vmem [shape: f32[1,128], index: 16, kind: input, shape index: {}]
  %s17 = inlined_call_operand.vmem [shape: f32[1024,128], index: 17, kind: output, shape index: {}]
  %s18 = sld [smem:[#allocation0]]
  $region101: #{wavenet_forward.1} parent=0
    _
  %s20 = ssub.s32 1, %s18
  %s21 = scalar_select 0, %s20, %s18
  loop: start=0, step=1, limit=4
  $region2: #{wavenet_forward.1} parent=0 // loop_pre_header
    _
  $region3: #{wavenet_forward.1} parent=0 // loop_header
    %s23 = sphi 0, %s27
    %p24 = scmp.ge.s32.totalorder %s23, 4
    %s33 = sphi 0, %s35
    %s36 = sphi 0, %s33
    %s37 = sphi 0, %s36
    %s53 = sphi 0, %s37
    %s57 = sphi 0, %s57
    %s59 = sphi 0, %s57
    %s60 = sphi 0, %s59
    %s74 = sphi 0, %s60
    %s78 = sphi 0, %s78
    %s80 = sphi 0, %s78
    %s81 = sphi 0, %s80
    %s95 = sphi 0, %s81
    %s99 = sphi 0, %s99
    %s101 = sphi 0, %s99
    %s102 = sphi 0, %s101
    %s116 = sphi 0, %s102
    %s120 = sphi 0, %s120
    %s122 = sphi 0, %s120
    %s123 = sphi 0, %s122
    %s137 = sphi 0, %s123
    %s141 = sphi 0, %s141
    %s143 = sphi 0, %s141
    %s144 = sphi 0, %s143
    %s158 = sphi 0, %s144
    %s162 = sphi 0, %s162
    %s164 = sphi 0, %s162
    %s165 = sphi 0, %s164
    %s179 = sphi 0, %s165
    %s183 = sphi 0, %s183
    %s185 = sphi 0, %s183
    %s186 = sphi 0, %s185
    %s200 = sphi 0, %s186
    %s204 = sphi 0, %s204
    %s206 = sphi 0, %s204
    %s207 = sphi 0, %s206
    %s221 = sphi 0, %s207
    %s225 = sphi 0, %s225
    %s227 = sphi 0, %s225
    %s228 = sphi 0, %s227
    %s242 = sphi 0, %s228
    %s246 = sphi 0, %s246
    %s248 = sphi 0, %s246
    %s249 = sphi 0, %s248
    %s263 = sphi 0, %s249
    %s267 = sphi 0, %s267
    %s269 = sphi 0, %s267
    %s270 = sphi 0, %s269
    %s284 = sphi 0, %s270
    %s288 = sphi 0, %s288
    %s290 = sphi 0, %s288
    %s291 = sphi 0, %s290
    %s305 = sphi 0, %s291
    %s309 = sphi 0, %s309
    %s311 = sphi 0, %s309
    %s312 = sphi 0, %s311
    %s326 = sphi 0, %s312
    %s330 = sphi 0, %s330
    %s332 = sphi 0, %s330
    %s333 = sphi 0, %s332
    %s347 = sphi 0, %s333
    %s351 = sphi 0, %s351
    %s353 = sphi 0, %s351
    %s354 = sphi 0, %s353
    %s368 = sphi 0, %s354
    %s372 = sphi 0, %s372
    %s374 = sphi 0, %s372
    %s375 = sphi 0, %s374
    %s389 = sphi 0, %s375
    %s395 = sphi 0, %s397
    %s398 = sphi 0, %s395
    %s399 = sphi 0, %s398
    %s415 = sphi 0, %s399
  $region4: #{wavenet_forward.1} parent=0 // loop_header_branch
    %26 = sbr.rel (%p24) target = $region8
  $region5: #{wavenet_forward.1} parent=0 // loop_body
    %s28 = ssub.s32 %s23, 1
    %s29 = ssub.s32 %s23, 2
    %s30 = sadd.s32 %s23, 1
    %s31 = ssub.s32 %s23, %s30
    %p32 = scmp.eq.s32.totalorder %s31, 0
    %s34 = sadd.s32 %s33, 1
    %s35 = scalar_select %p32, %s33, %s34
    %p38 = pneg %p32
    %p39 = scmp.eq.s32.totalorder %s23, 1
    %p40 = por %p38, %p39
    %p41 = scmp.ne.s32.totalorder %s33, %s36
    %p42 = scmp.eq.s32.totalorder %s23, 0
    %p43 = por %p41, %p42
    %p44 = scmp.ne.s32.totalorder %s33, %s36
    %p45 = scmp.eq.s32.totalorder %s28, 1
    %p46 = por %p44, %p45
    %p47 = scmp.ne.s32.totalorder %s36, %s37
    %p48 = scmp.eq.s32.totalorder %s28, 0
    %p49 = por %p47, %p48
    %p50 = scmp.ne.s32.totalorder %s36, %s37
    %p51 = scmp.eq.s32.totalorder %s29, 1
    %p52 = por %p50, %p51
    %p54 = scmp.ne.s32.totalorder %s37, %s53
    %p55 = scmp.eq.s32.totalorder %s29, 0
    %p56 = por %p54, %p55
    %s58 = sadd.s32 %s57, 1
    %p61 = scmp.eq.s32.totalorder %s23, 1
    %p62 = scmp.ne.s32.totalorder %s57, %s59
    %p63 = scmp.eq.s32.totalorder %s23, 0
    %p64 = por %p62, %p63
    %p65 = scmp.ne.s32.totalorder %s57, %s59
    %p66 = scmp.eq.s32.totalorder %s28, 1
    %p67 = por %p65, %p66
    %p68 = scmp.ne.s32.totalorder %s59, %s60
    %p69 = scmp.eq.s32.totalorder %s28, 0
    %p70 = por %p68, %p69
    %p71 = scmp.ne.s32.totalorder %s59, %s60
    %p72 = scmp.eq.s32.totalorder %s29, 1
    %p73 = por %p71, %p72
    %p75 = scmp.ne.s32.totalorder %s60, %s74
    %p76 = scmp.eq.s32.totalorder %s29, 0
    %p77 = por %p75, %p76
    %s79 = sadd.s32 %s78, 1
    %p82 = scmp.eq.s32.totalorder %s23, 1
    %p83 = scmp.ne.s32.totalorder %s78, %s80
    %p84 = scmp.eq.s32.totalorder %s23, 0
    %p85 = por %p83, %p84
    %p86 = scmp.ne.s32.totalorder %s78, %s80
    %p87 = scmp.eq.s32.totalorder %s28, 1
    %p88 = por %p86, %p87
    %p89 = scmp.ne.s32.totalorder %s80, %s81
    %p90 = scmp.eq.s32.totalorder %s28, 0
    %p91 = por %p89, %p90
    %p92 = scmp.ne.s32.totalorder %s80, %s81
    %p93 = scmp.eq.s32.totalorder %s29, 1
    %p94 = por %p92, %p93
    %p96 = scmp.ne.s32.totalorder %s81, %s95
    %p97 = scmp.eq.s32.totalorder %s29, 0
    %p98 = por %p96, %p97
    %s100 = sadd.s32 %s99, 1
    %p103 = scmp.eq.s32.totalorder %s23, 1
    %p104 = scmp.ne.s32.totalorder %s99, %s101
    %p105 = scmp.eq.s32.totalorder %s23, 0
    %p106 = por %p104, %p105
    %p107 = scmp.ne.s32.totalorder %s99, %s101
    %p108 = scmp.eq.s32.totalorder %s28, 1
    %p109 = por %p107, %p108
    %p110 = scmp.ne.s32.totalorder %s101, %s102
    %p111 = scmp.eq.s32.totalorder %s28, 0
    %p112 = por %p110, %p111
    %p113 = scmp.ne.s32.totalorder %s101, %s102
    %p114 = scmp.eq.s32.totalorder %s29, 1
    %p115 = por %p113, %p114
    %p117 = scmp.ne.s32.totalorder %s102, %s116
    %p118 = scmp.eq.s32.totalorder %s29, 0
    %p119 = por %p117, %p118
    %s121 = sadd.s32 %s120, 1
    %p124 = scmp.eq.s32.totalorder %s23, 1
    %p125 = scmp.ne.s32.totalorder %s120, %s122
    %p126 = scmp.eq.s32.totalorder %s23, 0
    %p127 = por %p125, %p126
    %p128 = scmp.ne.s32.totalorder %s120, %s122
    %p129 = scmp.eq.s32.totalorder %s28, 1
    %p130 = por %p128, %p129
    %p131 = scmp.ne.s32.totalorder %s122, %s123
    %p132 = scmp.eq.s32.totalorder %s28, 0
    %p133 = por %p131, %p132
    %p134 = scmp.ne.s32.totalorder %s122, %s123
    %p135 = scmp.eq.s32.totalorder %s29, 1
    %p136 = por %p134, %p135
    %p138 = scmp.ne.s32.totalorder %s123, %s137
    %p139 = scmp.eq.s32.totalorder %s29, 0
    %p140 = por %p138, %p139
    %s142 = sadd.s32 %s141, 1
    %p145 = scmp.eq.s32.totalorder %s23, 1
    %p146 = scmp.ne.s32.totalorder %s141, %s143
    %p147 = scmp.eq.s32.totalorder %s23, 0
    %p148 = por %p146, %p147
    %p149 = scmp.ne.s32.totalorder %s141, %s143
    %p150 = scmp.eq.s32.totalorder %s28, 1
    %p151 = por %p149, %p150
    %p152 = scmp.ne.s32.totalorder %s143, %s144
    %p153 = scmp.eq.s32.totalorder %s28, 0
    %p154 = por %p152, %p153
    %p155 = scmp.ne.s32.totalorder %s143, %s144
    %p156 = scmp.eq.s32.totalorder %s29, 1
    %p157 = por %p155, %p156
    %p159 = scmp.ne.s32.totalorder %s144, %s158
    %p160 = scmp.eq.s32.totalorder %s29, 0
    %p161 = por %p159, %p160
    %s163 = sadd.s32 %s162, 1
    %p166 = scmp.eq.s32.totalorder %s23, 1
    %p167 = scmp.ne.s32.totalorder %s162, %s164
    %p168 = scmp.eq.s32.totalorder %s23, 0
    %p169 = por %p167, %p168
    %p170 = scmp.ne.s32.totalorder %s162, %s164
    %p171 = scmp.eq.s32.totalorder %s28, 1
    %p172 = por %p170, %p171
    %p173 = scmp.ne.s32.totalorder %s164, %s165
    %p174 = scmp.eq.s32.totalorder %s28, 0
    %p175 = por %p173, %p174
    %p176 = scmp.ne.s32.totalorder %s164, %s165
    %p177 = scmp.eq.s32.totalorder %s29, 1
    %p178 = por %p176, %p177
    %p180 = scmp.ne.s32.totalorder %s165, %s179
    %p181 = scmp.eq.s32.totalorder %s29, 0
    %p182 = por %p180, %p181
    %s184 = sadd.s32 %s183, 1
    %p187 = scmp.eq.s32.totalorder %s23, 1
    %p188 = scmp.ne.s32.totalorder %s183, %s185
    %p189 = scmp.eq.s32.totalorder %s23, 0
    %p190 = por %p188, %p189
    %p191 = scmp.ne.s32.totalorder %s183, %s185
    %p192 = scmp.eq.s32.totalorder %s28, 1
    %p193 = por %p191, %p192
    %p194 = scmp.ne.s32.totalorder %s185, %s186
    %p195 = scmp.eq.s32.totalorder %s28, 0
    %p196 = por %p194, %p195
    %p197 = scmp.ne.s32.totalorder %s185, %s186
    %p198 = scmp.eq.s32.totalorder %s29, 1
    %p199 = por %p197, %p198
    %p201 = scmp.ne.s32.totalorder %s186, %s200
    %p202 = scmp.eq.s32.totalorder %s29, 0
    %p203 = por %p201, %p202
    %s205 = sadd.s32 %s204, 1
    %p208 = scmp.eq.s32.totalorder %s23, 1
    %p209 = scmp.ne.s32.totalorder %s204, %s206
    %p210 = scmp.eq.s32.totalorder %s23, 0
    %p211 = por %p209, %p210
    %p212 = scmp.ne.s32.totalorder %s204, %s206
    %p213 = scmp.eq.s32.totalorder %s28, 1
    %p214 = por %p212, %p213
    %p215 = scmp.ne.s32.totalorder %s206, %s207
    %p216 = scmp.eq.s32.totalorder %s28, 0
    %p217 = por %p215, %p216
    %p218 = scmp.ne.s32.totalorder %s206, %s207
    %p219 = scmp.eq.s32.totalorder %s29, 1
    %p220 = por %p218, %p219
    %p222 = scmp.ne.s32.totalorder %s207, %s221
    %p223 = scmp.eq.s32.totalorder %s29, 0
    %p224 = por %p222, %p223
    %s226 = sadd.s32 %s225, 1
    %p229 = scmp.eq.s32.totalorder %s23, 1
    %p230 = scmp.ne.s32.totalorder %s225, %s227
    %p231 = scmp.eq.s32.totalorder %s23, 0
    %p232 = por %p230, %p231
    %p233 = scmp.ne.s32.totalorder %s225, %s227
    %p234 = scmp.eq.s32.totalorder %s28, 1
    %p235 = por %p233, %p234
    %p236 = scmp.ne.s32.totalorder %s227, %s228
    %p237 = scmp.eq.s32.totalorder %s28, 0
    %p238 = por %p236, %p237
    %p239 = scmp.ne.s32.totalorder %s227, %s228
    %p240 = scmp.eq.s32.totalorder %s29, 1
    %p241 = por %p239, %p240
    %p243 = scmp.ne.s32.totalorder %s228, %s242
    %p244 = scmp.eq.s32.totalorder %s29, 0
    %p245 = por %p243, %p244
    %s247 = sadd.s32 %s246, 1
    %p250 = scmp.eq.s32.totalorder %s23, 1
    %p251 = scmp.ne.s32.totalorder %s246, %s248
    %p252 = scmp.eq.s32.totalorder %s23, 0
    %p253 = por %p251, %p252
    %p254 = scmp.ne.s32.totalorder %s246, %s248
    %p255 = scmp.eq.s32.totalorder %s28, 1
    %p256 = por %p254, %p255
    %p257 = scmp.ne.s32.totalorder %s248, %s249
    %p258 = scmp.eq.s32.totalorder %s28, 0
    %p259 = por %p257, %p258
    %p260 = scmp.ne.s32.totalorder %s248, %s249
    %p261 = scmp.eq.s32.totalorder %s29, 1
    %p262 = por %p260, %p261
    %p264 = scmp.ne.s32.totalorder %s249, %s263
    %p265 = scmp.eq.s32.totalorder %s29, 0
    %p266 = por %p264, %p265
    %s268 = sadd.s32 %s267, 1
    %p271 = scmp.eq.s32.totalorder %s23, 1
    %p272 = scmp.ne.s32.totalorder %s267, %s269
    %p273 = scmp.eq.s32.totalorder %s23, 0
    %p274 = por %p272, %p273
    %p275 = scmp.ne.s32.totalorder %s267, %s269
    %p276 = scmp.eq.s32.totalorder %s28, 1
    %p277 = por %p275, %p276
    %p278 = scmp.ne.s32.totalorder %s269, %s270
    %p279 = scmp.eq.s32.totalorder %s28, 0
    %p280 = por %p278, %p279
    %p281 = scmp.ne.s32.totalorder %s269, %s270
    %p282 = scmp.eq.s32.totalorder %s29, 1
    %p283 = por %p281, %p282
    %p285 = scmp.ne.s32.totalorder %s270, %s284
    %p286 = scmp.eq.s32.totalorder %s29, 0
    %p287 = por %p285, %p286
    %s289 = sadd.s32 %s288, 1
    %p292 = scmp.eq.s32.totalorder %s23, 1
    %p293 = scmp.ne.s32.totalorder %s288, %s290
    %p294 = scmp.eq.s32.totalorder %s23, 0
    %p295 = por %p293, %p294
    %p296 = scmp.ne.s32.totalorder %s288, %s290
    %p297 = scmp.eq.s32.totalorder %s28, 1
    %p298 = por %p296, %p297
    %p299 = scmp.ne.s32.totalorder %s290, %s291
    %p300 = scmp.eq.s32.totalorder %s28, 0
    %p301 = por %p299, %p300
    %p302 = scmp.ne.s32.totalorder %s290, %s291
    %p303 = scmp.eq.s32.totalorder %s29, 1
    %p304 = por %p302, %p303
    %p306 = scmp.ne.s32.totalorder %s291, %s305
    %p307 = scmp.eq.s32.totalorder %s29, 0
    %p308 = por %p306, %p307
    %s310 = sadd.s32 %s309, 1
    %p313 = scmp.eq.s32.totalorder %s23, 1
    %p314 = scmp.ne.s32.totalorder %s309, %s311
    %p315 = scmp.eq.s32.totalorder %s23, 0
    %p316 = por %p314, %p315
    %p317 = scmp.ne.s32.totalorder %s309, %s311
    %p318 = scmp.eq.s32.totalorder %s28, 1
    %p319 = por %p317, %p318
    %p320 = scmp.ne.s32.totalorder %s311, %s312
    %p321 = scmp.eq.s32.totalorder %s28, 0
    %p322 = por %p320, %p321
    %p323 = scmp.ne.s32.totalorder %s311, %s312
    %p324 = scmp.eq.s32.totalorder %s29, 1
    %p325 = por %p323, %p324
    %p327 = scmp.ne.s32.totalorder %s312, %s326
    %p328 = scmp.eq.s32.totalorder %s29, 0
    %p329 = por %p327, %p328
    %s331 = sadd.s32 %s330, 1
    %p334 = scmp.eq.s32.totalorder %s23, 1
    %p335 = scmp.ne.s32.totalorder %s330, %s332
    %p336 = scmp.eq.s32.totalorder %s23, 0
    %p337 = por %p335, %p336
    %p338 = scmp.ne.s32.totalorder %s330, %s332
    %p339 = scmp.eq.s32.totalorder %s28, 1
    %p340 = por %p338, %p339
    %p341 = scmp.ne.s32.totalorder %s332, %s333
    %p342 = scmp.eq.s32.totalorder %s28, 0
    %p343 = por %p341, %p342
    %p344 = scmp.ne.s32.totalorder %s332, %s333
    %p345 = scmp.eq.s32.totalorder %s29, 1
    %p346 = por %p344, %p345
    %p348 = scmp.ne.s32.totalorder %s333, %s347
    %p349 = scmp.eq.s32.totalorder %s29, 0
    %p350 = por %p348, %p349
    %s352 = sadd.s32 %s351, 1
    %p355 = scmp.eq.s32.totalorder %s23, 1
    %p356 = scmp.ne.s32.totalorder %s351, %s353
    %p357 = scmp.eq.s32.totalorder %s23, 0
    %p358 = por %p356, %p357
    %p359 = scmp.ne.s32.totalorder %s351, %s353
    %p360 = scmp.eq.s32.totalorder %s28, 1
    %p361 = por %p359, %p360
    %p362 = scmp.ne.s32.totalorder %s353, %s354
    %p363 = scmp.eq.s32.totalorder %s28, 0
    %p364 = por %p362, %p363
    %p365 = scmp.ne.s32.totalorder %s353, %s354
    %p366 = scmp.eq.s32.totalorder %s29, 1
    %p367 = por %p365, %p366
    %p369 = scmp.ne.s32.totalorder %s354, %s368
    %p370 = scmp.eq.s32.totalorder %s29, 0
    %p371 = por %p369, %p370
    %s373 = sadd.s32 %s372, 1
    %p376 = scmp.eq.s32.totalorder %s23, 1
    %p377 = scmp.ne.s32.totalorder %s372, %s374
    %p378 = scmp.eq.s32.totalorder %s23, 0
    %p379 = por %p377, %p378
    %p380 = scmp.ne.s32.totalorder %s372, %s374
    %p381 = scmp.eq.s32.totalorder %s28, 1
    %p382 = por %p380, %p381
    %p383 = scmp.ne.s32.totalorder %s374, %s375
    %p384 = scmp.eq.s32.totalorder %s28, 0
    %p385 = por %p383, %p384
    %p386 = scmp.ne.s32.totalorder %s374, %s375
    %p387 = scmp.eq.s32.totalorder %s29, 1
    %p388 = por %p386, %p387
    %p390 = scmp.ne.s32.totalorder %s375, %s389
    %p391 = scmp.eq.s32.totalorder %s29, 0
    %p392 = por %p390, %p391
    %s393 = ssub.s32 %s23, %s30
    %p394 = scmp.eq.s32.totalorder %s393, 0
    %s396 = sadd.s32 %s395, 1
    %s397 = scalar_select %p394, %s395, %s396
    %p400 = pneg %p394
    %p401 = scmp.eq.s32.totalorder %s23, 1
    %p402 = por %p400, %p401
    %p403 = scmp.ne.s32.totalorder %s395, %s398
    %p404 = scmp.eq.s32.totalorder %s23, 0
    %p405 = por %p403, %p404
    %p406 = scmp.ne.s32.totalorder %s395, %s398
    %p407 = scmp.eq.s32.totalorder %s28, 1
    %p408 = por %p406, %p407
    %p409 = scmp.ne.s32.totalorder %s398, %s399
    %p410 = scmp.eq.s32.totalorder %s28, 0
    %p411 = por %p409, %p410
    %p412 = scmp.ne.s32.totalorder %s398, %s399
    %p413 = scmp.eq.s32.totalorder %s29, 1
    %p414 = por %p412, %p413
    %p416 = scmp.ne.s32.totalorder %s399, %s415
    %p417 = scmp.eq.s32.totalorder %s29, 0
    %p418 = por %p416, %p417
    %p419 = scmp.le.s32.totalorder 1, %s23
    %p420 = scmp.lt.s32.totalorder %s23, 3
    %p421 = pnand %p419, %p420
    %p422 = pneg %p421
    // Predicated region
    $region9: #{wavenet_forward.1} parent=5 // pred_check
      _
    $region10: #{wavenet_forward.1} parent=5 // pred_check_branch
      %424 = sbr.rel (%p421) target = $region12
    $region11: #{wavenet_forward.1} parent=5 // pred_region
      %s425 = ssub.s32 %s23, 1
      // Predicated region
      $region13: #{wavenet_forward.1} parent=11 // pred_check
        %p426 = pneg %p70
      $region14: #{wavenet_forward.1} parent=11 // pred_check_branch
        %428 = sbr.rel (%p426) target = $region16
      $region15: #{wavenet_forward.1} parent=11 // pred_region
        _
      $region16: #{wavenet_forward.1} parent=11 // pred_fallthru
        _
      // Predicated region
      $region17: #{wavenet_forward.1} parent=11 // pred_check
        %p429 = pneg %p91
      $region18: #{wavenet_forward.1} parent=11 // pred_check_branch
        %431 = sbr.rel (%p429) target = $region20
      $region19: #{wavenet_forward.1} parent=11 // pred_region
        _
      $region20: #{wavenet_forward.1} parent=11 // pred_fallthru
        _
      // Predicated region
      $region21: #{wavenet_forward.1} parent=11 // pred_check
        %p432 = pneg %p112
      $region22: #{wavenet_forward.1} parent=11 // pred_check_branch
        %434 = sbr.rel (%p432) target = $region24
      $region23: #{wavenet_forward.1} parent=11 // pred_region
        _
      $region24: #{wavenet_forward.1} parent=11 // pred_fallthru
        _
      // Predicated region
      $region25: #{wavenet_forward.1} parent=11 // pred_check
        %p435 = pneg %p133
      $region26: #{wavenet_forward.1} parent=11 // pred_check_branch
        %437 = sbr.rel (%p435) target = $region28
      $region27: #{wavenet_forward.1} parent=11 // pred_region
        _
      $region28: #{wavenet_forward.1} parent=11 // pred_fallthru
        _
      // Predicated region
      $region29: #{wavenet_forward.1} parent=11 // pred_check
        %p438 = pneg %p154
      $region30: #{wavenet_forward.1} parent=11 // pred_check_branch
        %440 = sbr.rel (%p438) target = $region32
      $region31: #{wavenet_forward.1} parent=11 // pred_region
        _
      $region32: #{wavenet_forward.1} parent=11 // pred_fallthru
        _
      // Predicated region
      $region33: #{wavenet_forward.1} parent=11 // pred_check
        %p441 = pneg %p175
      $region34: #{wavenet_forward.1} parent=11 // pred_check_branch
        %443 = sbr.rel (%p441) target = $region36
      $region35: #{wavenet_forward.1} parent=11 // pred_region
        _
      $region36: #{wavenet_forward.1} parent=11 // pred_fallthru
        _
      // Predicated region
      $region37: #{wavenet_forward.1} parent=11 // pred_check
        %p444 = pneg %p196
      $region38: #{wavenet_forward.1} parent=11 // pred_check_branch
        %446 = sbr.rel (%p444) target = $region40
      $region39: #{wavenet_forward.1} parent=11 // pred_region
        _
      $region40: #{wavenet_forward.1} parent=11 // pred_fallthru
        _
      // Predicated region
      $region41: #{wavenet_forward.1} parent=11 // pred_check
        %p447 = pneg %p217
      $region42: #{wavenet_forward.1} parent=11 // pred_check_branch
        %449 = sbr.rel (%p447) target = $region44
      $region43: #{wavenet_forward.1} parent=11 // pred_region
        _
      $region44: #{wavenet_forward.1} parent=11 // pred_fallthru
        _
      // Predicated region
      $region45: #{wavenet_forward.1} parent=11 // pred_check
        %p450 = pneg %p238
      $region46: #{wavenet_forward.1} parent=11 // pred_check_branch
        %452 = sbr.rel (%p450) target = $region48
      $region47: #{wavenet_forward.1} parent=11 // pred_region
        _
      $region48: #{wavenet_forward.1} parent=11 // pred_fallthru
        _
      // Predicated region
      $region49: #{wavenet_forward.1} parent=11 // pred_check
        %p453 = pneg %p259
      $region50: #{wavenet_forward.1} parent=11 // pred_check_branch
        %455 = sbr.rel (%p453) target = $region52
      $region51: #{wavenet_forward.1} parent=11 // pred_region
        _
      $region52: #{wavenet_forward.1} parent=11 // pred_fallthru
        _
      // Predicated region
      $region53: #{wavenet_forward.1} parent=11 // pred_check
        %p456 = pneg %p280
      $region54: #{wavenet_forward.1} parent=11 // pred_check_branch
        %458 = sbr.rel (%p456) target = $region56
      $region55: #{wavenet_forward.1} parent=11 // pred_region
        _
      $region56: #{wavenet_forward.1} parent=11 // pred_fallthru
        _
      // Predicated region
      $region57: #{wavenet_forward.1} parent=11 // pred_check
        %p459 = pneg %p301
      $region58: #{wavenet_forward.1} parent=11 // pred_check_branch
        %461 = sbr.rel (%p459) target = $region60
      $region59: #{wavenet_forward.1} parent=11 // pred_region
        _
      $region60: #{wavenet_forward.1} parent=11 // pred_fallthru
        _
      // Predicated region
      $region61: #{wavenet_forward.1} parent=11 // pred_check
        %p462 = pneg %p322
      $region62: #{wavenet_forward.1} parent=11 // pred_check_branch
        %464 = sbr.rel (%p462) target = $region64
      $region63: #{wavenet_forward.1} parent=11 // pred_region
        _
      $region64: #{wavenet_forward.1} parent=11 // pred_fallthru
        _
      // Predicated region
      $region65: #{wavenet_forward.1} parent=11 // pred_check
        %p465 = pneg %p343
      $region66: #{wavenet_forward.1} parent=11 // pred_check_branch
        %467 = sbr.rel (%p465) target = $region68
      $region67: #{wavenet_forward.1} parent=11 // pred_region
        _
      $region68: #{wavenet_forward.1} parent=11 // pred_fallthru
        _
      // Predicated region
      $region69: #{wavenet_forward.1} parent=11 // pred_check
        %p468 = pneg %p364
      $region70: #{wavenet_forward.1} parent=11 // pred_check_branch
        %470 = sbr.rel (%p468) target = $region72
      $region71: #{wavenet_forward.1} parent=11 // pred_region
        _
      $region72: #{wavenet_forward.1} parent=11 // pred_fallthru
        _
      // Predicated region
      $region73: #{wavenet_forward.1} parent=11 // pred_check
        %p471 = pneg %p385
      $region74: #{wavenet_forward.1} parent=11 // pred_check_branch
        %473 = sbr.rel (%p471) target = $region76
      $region75: #{wavenet_forward.1} parent=11 // pred_region
        _
      $region76: #{wavenet_forward.1} parent=11 // pred_fallthru
        _
    $region12: #{wavenet_forward.1} parent=5 // pred_fallthru
      _
    %p474 = scmp.lt.s32.totalorder %s23, 2
    // Predicated region
    $region77: #{wavenet_forward.1} parent=5 // pred_check
      %p475 = pneg %p474
    $region78: #{wavenet_forward.1} parent=5 // pred_check_branch
      %477 = sbr.rel (%p475) target = $region80
    $region79: #{wavenet_forward.1} parent=5 // pred_region
      // Predicated region
      $region81: #{wavenet_forward.1} parent=79 // pred_check
        %p478 = pneg %p43
      $region82: #{wavenet_forward.1} parent=79 // pred_check_branch
        %480 = sbr.rel (%p478) target = $region84
      $region83: #{wavenet_forward.1} parent=79 // pred_region
        %s481 = smul.u32 64, %s23
        %p482 = scmp.lt.s32.totalorder %s481, 127
        %s483 = scalar_select %p482, %s481, 127
        %s484 = smul.addr %s483, 8
        %s485 = scalar_lea.vmem %s0, %s484
        %s486 = smul.u32 64, %s23
      $region84: #{wavenet_forward.1} parent=79 // pred_fallthru
        _
    $region80: #{wavenet_forward.1} parent=5 // pred_fallthru
      _
    %p487 = scmp.le.s32.totalorder 1, %s23
    %p488 = scmp.lt.s32.totalorder %s23, 3
    %p489 = pnand %p487, %p488
    %p490 = pneg %p489
    // Predicated region
    $region85: #{wavenet_forward.1} parent=5 // pred_check
      _
    $region86: #{wavenet_forward.1} parent=5 // pred_check_branch
      %492 = sbr.rel (%p489) target = $region88
    $region87: #{wavenet_forward.1} parent=5 // pred_region
      %s493 = ssub.s32 %s23, 1
      %s494 = smul.u32 64, %s28
      %p495 = scmp.lt.s32.totalorder %s494, 127
      %s496 = scalar_select %p495, %s494, 127
      %s497 = smul.addr %s496, 8
      %s498 = scalar_lea.vmem %s0, %s497
      %p499 = pneg %p49
      %p500 = pneg %p46
      %p501 = pneg %p70
      %p502 = pneg %p67
      %p503 = pneg %p91
      %p504 = pneg %p88
      %p505 = pneg %p112
      %p506 = pneg %p109
      %p507 = pneg %p133
      %p508 = pneg %p130
      %p509 = pneg %p154
      %p510 = pneg %p151
      %p511 = pneg %p175
      %p512 = pneg %p172
      %p513 = pneg %p196
      %p514 = pneg %p193
      %p515 = pneg %p217
      %p516 = pneg %p214
      %p517 = pneg %p238
      %p518 = pneg %p235
      %p519 = pneg %p259
      %p520 = pneg %p256
      %p521 = pneg %p280
      %p522 = pneg %p277
      %p523 = pneg %p301
      %p524 = pneg %p298
      %p525 = pneg %p322
      %p526 = pneg %p319
      %p527 = pneg %p343
      %p528 = pneg %p340
      %p529 = pneg %p364
      %p530 = pneg %p361
      %p531 = pneg %p385
      %p532 = pneg %p382
      %p533 = pneg %p411
      %p534 = pneg %p408
      %s535 = smul.u32 64, %s28
      %p536 = scmp.lt.s32.totalorder %s535, 127
      %s537 = scalar_select %p536, %s535, 127
      %s538 = smul.addr %s537, 8
      %s539 = scalar_lea.vmem %s17, %s538
      %s540 = smul.u32 64, %s28
      %p541 = scmp.lt.s32.totalorder %s540, 127
      %s542 = scalar_select %p541, %s540, 127
      %s543 = smul.addr %s542, 8
      %s544 = scalar_lea.vmem %s0, %s543
      %s545 = smul.u32 64, %s28
      %s546 = smul.u32 64, %s28
      %p547 = scmp.lt.s32.totalorder %s546, 127
      %s548 = scalar_select %p547, %s546, 127
      %s549 = smul.addr %s548, 8
      %s550 = scalar_lea.vmem %s17, %s549
      %s551 = smul.u32 64, %s28
      %v553 = vld [vmem:[%s544] sm:$0xff]
      %v554 = vld [vmem:[%s544 + $0x8] sm:$0xff]
      %v555 = vld [vmem:[%s544 + $0x10] sm:$0xff]
      %v556 = vld [vmem:[%s544 + $0x18] sm:$0xff]
      %v557 = vld [vmem:[%s544 + $0x20] sm:$0xff]
      %v558 = vld [vmem:[%s544 + $0x28] sm:$0xff]
      %v559 = vld [vmem:[%s544 + $0x30] sm:$0xff]
      %v560 = vld [vmem:[%s544 + $0x38] sm:$0xff]
      %v561 = vld [vmem:[%s544 + $0x40] sm:$0xff]
      %v562 = vld [vmem:[%s544 + $0x48] sm:$0xff]
      %v563 = vld [vmem:[%s544 + $0x50] sm:$0xff]
      %v564 = vld [vmem:[%s544 + $0x58] sm:$0xff]
      %v565 = vld [vmem:[%s544 + $0x60] sm:$0xff]
      %v566 = vld [vmem:[%s544 + $0x68] sm:$0xff]
      %v567 = vld [vmem:[%s544 + $0x70] sm:$0xff]
      %v568 = vld [vmem:[%s544 + $0x78] sm:$0xff]
      %v569 = vld [vmem:[%s544 + $0x80] sm:$0xff]
      %v570 = vld [vmem:[%s544 + $0x88] sm:$0xff]
      %v571 = vld [vmem:[%s544 + $0x90] sm:$0xff]
      %v572 = vld [vmem:[%s544 + $0x98] sm:$0xff]
      %v573 = vld [vmem:[%s544 + $0xa0] sm:$0xff]
      %v574 = vld [vmem:[%s544 + $0xa8] sm:$0xff]
      %v575 = vld [vmem:[%s544 + $0xb0] sm:$0xff]
      %v576 = vld [vmem:[%s544 + $0xb8] sm:$0xff]
      %v577 = vld [vmem:[%s544 + $0xc0] sm:$0xff]
      %v578 = vld [vmem:[%s544 + $0xc8] sm:$0xff]
      %v579 = vld [vmem:[%s544 + $0xd0] sm:$0xff]
      %v580 = vld [vmem:[%s544 + $0xd8] sm:$0xff]
      %v581 = vld [vmem:[%s544 + $0xe0] sm:$0xff]
      %v582 = vld [vmem:[%s544 + $0xe8] sm:$0xff]
      %v583 = vld [vmem:[%s544 + $0xf0] sm:$0xff]
      %v584 = vld [vmem:[%s544 + $0xf8] sm:$0xff]
      %v585 = vld [vmem:[%s544 + $0x100] sm:$0xff]
      %v586 = vld [vmem:[%s544 + $0x108] sm:$0xff]
      %v587 = vld [vmem:[%s544 + $0x110] sm:$0xff]
      %v588 = vld [vmem:[%s544 + $0x118] sm:$0xff]
      %v589 = vld [vmem:[%s544 + $0x120] sm:$0xff]
      %v590 = vld [vmem:[%s544 + $0x128] sm:$0xff]
      %v591 = vld [vmem:[%s544 + $0x130] sm:$0xff]
      %v592 = vld [vmem:[%s544 + $0x138] sm:$0xff]
      %v593 = vld [vmem:[%s544 + $0x140] sm:$0xff]
      %v594 = vld [vmem:[%s544 + $0x148] sm:$0xff]
      %v595 = vld [vmem:[%s544 + $0x150] sm:$0xff]
      %v596 = vld [vmem:[%s544 + $0x158] sm:$0xff]
      %v597 = vld [vmem:[%s544 + $0x160] sm:$0xff]
      %v598 = vld [vmem:[%s544 + $0x168] sm:$0xff]
      %v599 = vld [vmem:[%s544 + $0x170] sm:$0xff]
      %v600 = vld [vmem:[%s544 + $0x178] sm:$0xff]
      %v601 = vld [vmem:[%s544 + $0x180] sm:$0xff]
      %v602 = vld [vmem:[%s544 + $0x188] sm:$0xff]
      %v603 = vld [vmem:[%s544 + $0x190] sm:$0xff]
      %v604 = vld [vmem:[%s544 + $0x198] sm:$0xff]
      %v605 = vld [vmem:[%s544 + $0x1a0] sm:$0xff]
      %v606 = vld [vmem:[%s544 + $0x1a8] sm:$0xff]
      %v607 = vld [vmem:[%s544 + $0x1b0] sm:$0xff]
      %v608 = vld [vmem:[%s544 + $0x1b8] sm:$0xff]
      %v609 = vld [vmem:[%s544 + $0x1c0] sm:$0xff]
      %v610 = vld [vmem:[%s544 + $0x1c8] sm:$0xff]
      %v611 = vld [vmem:[%s544 + $0x1d0] sm:$0xff]
      %v612 = vld [vmem:[%s544 + $0x1d8] sm:$0xff]
      %v613 = vld [vmem:[%s544 + $0x1e0] sm:$0xff]
      %v614 = vld [vmem:[%s544 + $0x1e8] sm:$0xff]
      %v615 = vld [vmem:[%s544 + $0x1f0] sm:$0xff]
      %v616 = vld [vmem:[%s544 + $0x1f8] sm:$0xff]
      %v617 = vpack.c.bf16 %v554, %v553
      %v618 = vpack.c.bf16 %v556, %v555
      %v619 = vpack.c.bf16 %v558, %v557
      %v620 = vpack.c.bf16 %v560, %v559
      %v621 = vpack.c.bf16 %v562, %v561
      %v622 = vpack.c.bf16 %v564, %v563
      %v623 = vpack.c.bf16 %v566, %v565
      %v624 = vpack.c.bf16 %v568, %v567
      %v625 = vpack.c.bf16 %v570, %v569
      %v626 = vpack.c.bf16 %v572, %v571
      %v627 = vpack.c.bf16 %v574, %v573
      %v628 = vpack.c.bf16 %v576, %v575
      %v629 = vpack.c.bf16 %v578, %v577
      %v630 = vpack.c.bf16 %v580, %v579
      %v631 = vpack.c.bf16 %v582, %v581
      %v632 = vpack.c.bf16 %v584, %v583
      %v633 = vpack.c.bf16 %v586, %v585
      %v634 = vpack.c.bf16 %v588, %v587
      %v635 = vpack.c.bf16 %v590, %v589
      %v636 = vpack.c.bf16 %v592, %v591
      %v637 = vpack.c.bf16 %v594, %v593
      %v638 = vpack.c.bf16 %v596, %v595
      %v639 = vpack.c.bf16 %v598, %v597
      %v640 = vpack.c.bf16 %v600, %v599
      %v641 = vpack.c.bf16 %v602, %v601
      %v642 = vpack.c.bf16 %v604, %v603
      %v643 = vpack.c.bf16 %v606, %v605
      %v644 = vpack.c.bf16 %v608, %v607
      %v645 = vpack.c.bf16 %v610, %v609
      %v646 = vpack.c.bf16 %v612, %v611
      %v647 = vpack.c.bf16 %v614, %v613
      %v648 = vpack.c.bf16 %v616, %v615
      %v649 = vld [vmem:[%s1] sm:$0xff]
      %v650 = vld [vmem:[%s1 + $0x8] sm:$0xff]
      %v653 = vunpack.c.l.b16 %v649
      %v654 = vunpack.c.h.b16 %v649
      %v655 = vunpack.c.l.b16 %v650
      %v656 = vunpack.c.h.b16 %v650
      %v657 = vpack.c.b16 %v655, %v653
      %v658 = vpack.c.b16 %v656, %v654
      %vm661 = vcmask 130048
      %v663 = vsel %vm661, %v617, 0
      %v666 = vsel %vm661, %v618, 0
      %v669 = vsel %vm661, %v619, 0
      %v672 = vsel %vm661, %v620, 0
      %v675 = vsel %vm661, %v621, 0
      %v678 = vsel %vm661, %v622, 0
      %v681 = vsel %vm661, %v623, 0
      %v684 = vsel %vm661, %v624, 0
      %v687 = vsel %vm661, %v625, 0
      %v690 = vsel %vm661, %v626, 0
      %v693 = vsel %vm661, %v627, 0
      %v696 = vsel %vm661, %v628, 0
      %v699 = vsel %vm661, %v629, 0
      %v702 = vsel %vm661, %v630, 0
      %v705 = vsel %vm661, %v631, 0
      %v708 = vsel %vm661, %v632, 0
      %v711 = vsel %vm661, %v633, 0
      %v714 = vsel %vm661, %v634, 0
      %v717 = vsel %vm661, %v635, 0
      %v720 = vsel %vm661, %v636, 0
      %v723 = vsel %vm661, %v637, 0
      %v726 = vsel %vm661, %v638, 0
      %v729 = vsel %vm661, %v639, 0
      %v732 = vsel %vm661, %v640, 0
      %v735 = vsel %vm661, %v641, 0
      %v738 = vsel %vm661, %v642, 0
      %v741 = vsel %vm661, %v643, 0
      %v744 = vsel %vm661, %v644, 0
      %v747 = vsel %vm661, %v645, 0
      %v750 = vsel %vm661, %v646, 0
      %v753 = vsel %vm661, %v647, 0
      %v756 = vsel %vm661, %v648, 0
      %758 = vmatprep.subr.bf16.mxu0 %v658
      %759 = vmatpush1.bf16.msra.mxu0 %v657
      %760 = vmatprep.subr.bf16.mxu0 0
      %761 = vmatpush1.bf16.msra.mxu0 0
      %762 = vmatprep.subr.bf16.mxu0 0
      %763 = vmatpush1.bf16.msra.mxu0 0
      %764 = vmatprep.subr.bf16.mxu0 0
      %765 = vmatpush1.bf16.msra.mxu0 0
      %766 = vmatprep.subr.bf16.mxu0 0
      %767 = vmatpush1.bf16.msra.mxu0 0
      %768 = vmatprep.subr.bf16.mxu0 0
      %769 = vmatpush1.bf16.msra.mxu0 0
      %770 = vmatprep.subr.bf16.mxu0 0
      %771 = vmatpush1.bf16.msra.mxu0 0
      %772 = vmatprep.subr.bf16.mxu0 0
      %773 = vmatpush1.bf16.msra.mxu0 0
      %774 = vmatprep.subr.bf16.mxu0 0
      %775 = vmatpush1.bf16.msra.mxu0 0
      %776 = vmatprep.subr.bf16.mxu0 0
      %777 = vmatpush1.bf16.msra.mxu0 0
      %778 = vmatprep.subr.bf16.mxu0 0
      %779 = vmatpush1.bf16.msra.mxu0 0
      %780 = vmatprep.subr.bf16.mxu0 0
      %781 = vmatpush1.bf16.msra.mxu0 0
      %782 = vmatprep.subr.bf16.mxu0 0
      %783 = vmatpush1.bf16.msra.mxu0 0
      %784 = vmatprep.subr.bf16.mxu0 0
      %785 = vmatpush1.bf16.msra.mxu0 0
      %786 = vmatprep.subr.bf16.mxu0 0
      %787 = vmatpush1.bf16.msra.mxu0 0
      %788 = vmatprep.subr.bf16.mxu0 0
      %789 = vmatpush1.bf16.msra.mxu0 0
      %790 = vmatprep.mubr.bf16.mxu0 0
      %791 = vmatmul.mubr.bf16.gmra.mrb[0].mxu0 %v663
      %v792 = vpop.f32.mrb[0].mxu0
      %v793 = vadd.f32 0.0, %v792
      %v794 = vpop.f32.mrb[0].mxu0
      %v795 = vadd.f32 0.0, %v794
      %v796 = vpop.f32.mrb[0].mxu0
      %v797 = vadd.f32 0.0, %v796
      %v798 = vpop.f32.mrb[0].mxu0
      %v799 = vadd.f32 0.0, %v798
      %800 = vmatprep.mubr.bf16.mxu0 0
      %801 = vmatmul.mubr.bf16.gmra.mrb[0].mxu0 %v666
      %v802 = vpop.f32.mrb[0].mxu0
      %v803 = vadd.f32 0.0, %v802
      %v804 = vpop.f32.mrb[0].mxu0
      %v805 = vadd.f32 0.0, %v804
      %v806 = vpop.f32.mrb[0].mxu0
      %v807 = vadd.f32 0.0, %v806
      %v808 = vpop.f32.mrb[0].mxu0
      %v809 = vadd.f32 0.0, %v808
      %810 = vmatprep.mubr.bf16.mxu0 0
      %811 = vmatmul.mubr.bf16.gmra.mrb[0].mxu0 %v669
      %v812 = vpop.f32.mrb[0].mxu0
      %v813 = vadd.f32 0.0, %v812
      %v814 = vpop.f32.mrb[0].mxu0
      %v815 = vadd.f32 0.0, %v814
      %v816 = vpop.f32.mrb[0].mxu0
      %v817 = vadd.f32 0.0, %v816
      %v818 = vpop.f32.mrb[0].mxu0
      %v819 = vadd.f32 0.0, %v818
      %820 = vmatprep.mubr.bf16.mxu0 0
      %821 = vmatmul.mubr.bf16.gmra.mrb[0].mxu0 %v672
      %v822 = vpop.f32.mrb[0].mxu0
      %v823 = vadd.f32 0.0, %v822
      %v824 = vpop.f32.mrb[0].mxu0
      %v825 = vadd.f32 0.0, %v824
      %v826 = vpop.f32.mrb[0].mxu0
      %v827 = vadd.f32 0.0, %v826
      %v828 = vpop.f32.mrb[0].mxu0
      %v829 = vadd.f32 0.0, %v828
      %830 = vmatprep.mubr.bf16.mxu0 0
      %831 = vmatmul.mubr.bf16.gmra.mrb[0].mxu0 %v675
      %v832 = vpop.f32.mrb[0].mxu0
      %v833 = vadd.f32 0.0, %v832
      %v834 = vpop.f32.mrb[0].mxu0
      %v835 = vadd.f32 0.0, %v834
      %v836 = vpop.f32.mrb[0].mxu0
      %v837 = vadd.f32 0.0, %v836
      %v838 = vpop.f32.mrb[0].mxu0
      %v839 = vadd.f32 0.0, %v838
      %840 = vmatprep.mubr.bf16.mxu0 0
      %841 = vmatmul.mubr.bf16.gmra.mrb[0].mxu0 %v678
      %v842 = vpop.f32.mrb[0].mxu0
      %v843 = vadd.f32 0.0, %v842
      %v844 = vpop.f32.mrb[0].mxu0
      %v845 = vadd.f32 0.0, %v844
      %v846 = vpop.f32.mrb[0].mxu0
      %v847 = vadd.f32 0.0, %v846
      %v848 = vpop.f32.mrb[0].mxu0
      %v849 = vadd.f32 0.0, %v848
      %850 = vmatprep.mubr.bf16.mxu0 0
      %851 = vmatmul.mubr.bf16.gmra.mrb[0].mxu0 %v681
      %v852 = vpop.f32.mrb[0].mxu0
      %v853 = vadd.f32 0.0, %v852
      %v854 = vpop.f32.mrb[0].mxu0
      %v855 = vadd.f32 0.0, %v854
      %v856 = vpop.f32.mrb[0].mxu0
      %v857 = vadd.f32 0.0, %v856
      %v858 = vpop.f32.mrb[0].mxu0
      %v859 = vadd.f32 0.0, %v858
      %860 = vmatprep.mubr.bf16.mxu0 0
      %861 = vmatmul.mubr.bf16.gmra.mrb[0].mxu0 %v684
      %v862 = vpop.f32.mrb[0].mxu0
      %v863 = vadd.f32 0.0, %v862
      %v864 = vpop.f32.mrb[0].mxu0
      %v865 = vadd.f32 0.0, %v864
      %v866 = vpop.f32.mrb[0].mxu0
      %v867 = vadd.f32 0.0, %v866
      %v868 = vpop.f32.mrb[0].mxu0
      %v869 = vadd.f32 0.0, %v868
      %870 = vmatprep.mubr.bf16.mxu0 0
      %871 = vmatmul.mubr.bf16.gmra.mrb[0].mxu0 %v687
      %v872 = vpop.f32.mrb[0].mxu0
      %v873 = vadd.f32 0.0, %v872
      %v874 = vpop.f32.mrb[0].mxu0
      %v875 = vadd.f32 0.0, %v874
      %v876 = vpop.f32.mrb[0].mxu0
      %v877 = vadd.f32 0.0, %v876
      %v878 = vpop.f32.mrb[0].mxu0
      %v879 = vadd.f32 0.0, %v878
      %880 = vmatprep.mubr.bf16.mxu0 0
      %881 = vmatmul.mubr.bf16.gmra.mrb[0].mxu0 %v690
      %v882 = vpop.f32.mrb[0].mxu0
      %v883 = vadd.f32 0.0, %v882
      %v884 = vpop.f32.mrb[0].mxu0
      %v885 = vadd.f32 0.0, %v884
      %v886 = vpop.f32.mrb[0].mxu0
      %v887 = vadd.f32 0.0, %v886
      %v888 = vpop.f32.mrb[0].mxu0
      %v889 = vadd.f32 0.0, %v888
      %890 = vmatprep.mubr.bf16.mxu0 0
      %891 = vmatmul.mubr.bf16.gmra.mrb[0].mxu0 %v693
      %v892 = vpop.f32.mrb[0].mxu0
      %v893 = vadd.f32 0.0, %v892
      %v894 = vpop.f32.mrb[0].mxu0
      %v895 = vadd.f32 0.0, %v894
      %v896 = vpop.f32.mrb[0].mxu0
      %v897 = vadd.f32 0.0, %v896
      %v898 = vpop.f32.mrb[0].mxu0
      %v899 = vadd.f32 0.0, %v898
      %900 = vmatprep.mubr.bf16.mxu0 0
      %901 = vmatmul.mubr.bf16.gmra.mrb[0].mxu0 %v696
      %v902 = vpop.f32.mrb[0].mxu0
      %v903 = vadd.f32 0.0, %v902
      %v904 = vpop.f32.mrb[0].mxu0
      %v905 = vadd.f32 0.0, %v904
      %v906 = vpop.f32.mrb[0].mxu0
      %v907 = vadd.f32 0.0, %v906
      %v908 = vpop.f32.mrb[0].mxu0
      %v909 = vadd.f32 0.0, %v908
      %910 = vmatprep.mubr.bf16.mxu0 0
      %911 = vmatmul.mubr.bf16.gmra.mrb[0].mxu0 %v699
      %v912 = vpop.f32.mrb[0].mxu0
      %v913 = vadd.f32 0.0, %v912
      %v914 = vpop.f32.mrb[0].mxu0
      %v915 = vadd.f32 0.0, %v914
      %v916 = vpop.f32.mrb[0].mxu0
      %v917 = vadd.f32 0.0, %v916
      %v918 = vpop.f32.mrb[0].mxu0
      %v919 = vadd.f32 0.0, %v918
      %920 = vmatprep.mubr.bf16.mxu0 0
      %921 = vmatmul.mubr.bf16.gmra.mrb[0].mxu0 %v702
      %v922 = vpop.f32.mrb[0].mxu0
      %v923 = vadd.f32 0.0, %v922
      %v924 = vpop.f32.mrb[0].mxu0
      %v925 = vadd.f32 0.0, %v924
      %v926 = vpop.f32.mrb[0].mxu0
      %v927 = vadd.f32 0.0, %v926
      %v928 = vpop.f32.mrb[0].mxu0
      %v929 = vadd.f32 0.0, %v928
      %930 = vmatprep.mubr.bf16.mxu0 0
      %931 = vmatmul.mubr.bf16.gmra.mrb[0].mxu0 %v705
      %v932 = vpop.f32.mrb[0].mxu0
      %v933 = vadd.f32 0.0, %v932
      %v934 = vpop.f32.mrb[0].mxu0
      %v935 = vadd.f32 0.0, %v934
      %v936 = vpop.f32.mrb[0].mxu0
      %v937 = vadd.f32 0.0, %v936
      %v938 = vpop.f32.mrb[0].mxu0
      %v939 = vadd.f32 0.0, %v938
      %940 = vmatprep.mubr.bf16.mxu0 0
      %941 = vmatmul.mubr.bf16.gmra.mrb[0].mxu0 %v708
      %v942 = vpop.f32.mrb[0].mxu0
      %v943 = vadd.f32 0.0, %v942
      %v944 = vpop.f32.mrb[0].mxu0
      %v945 = vadd.f32 0.0, %v944
      %v946 = vpop.f32.mrb[0].mxu0
      %v947 = vadd.f32 0.0, %v946
      %v948 = vpop.f32.mrb[0].mxu0
      %v949 = vadd.f32 0.0, %v948
      %950 = vmatprep.mubr.bf16.mxu0 0
      %951 = vmatmul.mubr.bf16.gmra.mrb[0].mxu0 %v711
      %v952 = vpop.f32.mrb[0].mxu0
      %v953 = vadd.f32 0.0, %v952
      %v954 = vpop.f32.mrb[0].mxu0
      %v955 = vadd.f32 0.0, %v954
      %v956 = vpop.f32.mrb[0].mxu0
      %v957 = vadd.f32 0.0, %v956
      %v958 = vpop.f32.mrb[0].mxu0
      %v959 = vadd.f32 0.0, %v958
      %960 = vmatprep.mubr.bf16.mxu0 0
      %961 = vmatmul.mubr.bf16.gmra.mrb[0].mxu0 %v714
      %v962 = vpop.f32.mrb[0].mxu0
      %v963 = vadd.f32 0.0, %v962
      %v964 = vpop.f32.mrb[0].mxu0
      %v965 = vadd.f32 0.0, %v964
      %v966 = vpop.f32.mrb[0].mxu0
      %v967 = vadd.f32 0.0, %v966
      %v968 = vpop.f32.mrb[0].mxu0
      %v969 = vadd.f32 0.0, %v968
      %970 = vmatprep.mubr.bf16.mxu0 0
      %971 = vmatmul.mubr.bf16.gmra.mrb[0].mxu0 %v717
      %v972 = vpop.f32.mrb[0].mxu0
      %v973 = vadd.f32 0.0, %v972
      %v974 = vpop.f32.mrb[0].mxu0
      %v975 = vadd.f32 0.0, %v974
      %v976 = vpop.f32.mrb[0].mxu0
      %v977 = vadd.f32 0.0, %v976
      %v978 = vpop.f32.mrb[0].mxu0
      %v979 = vadd.f32 0.0, %v978
      %980 = vmatprep.mubr.bf16.mxu0 0
      %981 = vmatmul.mubr.bf16.gmra.mrb[0].mxu0 %v720
      %v982 = vpop.f32.mrb[0].mxu0
      %v983 = vadd.f32 0.0, %v982
      %v984 = vpop.f32.mrb[0].mxu0
      %v985 = vadd.f32 0.0, %v984
      %v986 = vpop.f32.mrb[0].mxu0
      %v987 = vadd.f32 0.0, %v986
      %v988 = vpop.f32.mrb[0].mxu0
      %v989 = vadd.f32 0.0, %v988
      %990 = vmatprep.mubr.bf16.mxu0 0
      %991 = vmatmul.mubr.bf16.gmra.mrb[0].mxu0 %v723
      %v992 = vpop.f32.mrb[0].mxu0
      %v993 = vadd.f32 0.0, %v992
      %v994 = vpop.f32.mrb[0].mxu0
      %v995 = vadd.f32 0.0, %v994
      %v996 = vpop.f32.mrb[0].mxu0
      %v997 = vadd.f32 0.0, %v996
      %v998 = vpop.f32.mrb[0].mxu0
      %v999 = vadd.f32 0.0, %v998
      %1000 = vmatprep.mubr.bf16.mxu0 0
      %1001 = vmatmul.mubr.bf16.gmra.mrb[0].mxu0 %v726
      %v1002 = vpop.f32.mrb[0].mxu0
      %v1003 = vadd.f32 0.0, %v1002
      %v1004 = vpop.f32.mrb[0].mxu0
      %v1005 = vadd.f32 0.0, %v1004
      %v1006 = vpop.f32.mrb[0].mxu0
      %v1007 = vadd.f32 0.0, %v1006
      %v1008 = vpop.f32.mrb[0].mxu0
      %v1009 = vadd.f32 0.0, %v1008
      %1010 = vmatprep.mubr.bf16.mxu0 0
      %1011 = vmatmul.mubr.bf16.gmra.mrb[0].mxu0 %v729
      %v1012 = vpop.f32.mrb[0].mxu0
      %v1013 = vadd.f32 0.0, %v1012
      %v1014 = vpop.f32.mrb[0].mxu0
      %v1015 = vadd.f32 0.0, %v1014
      %v1016 = vpop.f32.mrb[0].mxu0
      %v1017 = vadd.f32 0.0, %v1016
      %v1018 = vpop.f32.mrb[0].mxu0
      %v1019 = vadd.f32 0.0, %v1018
      %1020 = vmatprep.mubr.bf16.mxu0 0
      %1021 = vmatmul.mubr.bf16.gmra.mrb[0].mxu0 %v732
      %v1022 = vpop.f32.mrb[0].mxu0
      %v1023 = vadd.f32 0.0, %v1022
      %v1024 = vpop.f32.mrb[0].mxu0
      %v1025 = vadd.f32 0.0, %v1024
      %v1026 = vpop.f32.mrb[0].mxu0
      %v1027 = vadd.f32 0.0, %v1026
      %v1028 = vpop.f32.mrb[0].mxu0
      %v1029 = vadd.f32 0.0, %v1028
      %1030 = vmatprep.mubr.bf16.mxu0 0
      %1031 = vmatmul.mubr.bf16.gmra.mrb[0].mxu0 %v735
      %v1032 = vpop.f32.mrb[0].mxu0
      %v1033 = vadd.f32 0.0, %v1032
      %v1034 = vpop.f32.mrb[0].mxu0
      %v1035 = vadd.f32 0.0, %v1034
      %v1036 = vpop.f32.mrb[0].mxu0
      %v1037 = vadd.f32 0.0, %v1036
      %v1038 = vpop.f32.mrb[0].mxu0
      %v1039 = vadd.f32 0.0, %v1038
      %1040 = vmatprep.mubr.bf16.mxu0 0
      %1041 = vmatmul.mubr.bf16.gmra.mrb[0].mxu0 %v738
      %v1042 = vpop.f32.mrb[0].mxu0
      %v1043 = vadd.f32 0.0, %v1042
      %v1044 = vpop.f32.mrb[0].mxu0
      %v1045 = vadd.f32 0.0, %v1044
      %v1046 = vpop.f32.mrb[0].mxu0
      %v1047 = vadd.f32 0.0, %v1046
      %v1048 = vpop.f32.mrb[0].mxu0
      %v1049 = vadd.f32 0.0, %v1048
      %1050 = vmatprep.mubr.bf16.mxu0 0
      %1051 = vmatmul.mubr.bf16.gmra.mrb[0].mxu0 %v741
      %v1052 = vpop.f32.mrb[0].mxu0
      %v1053 = vadd.f32 0.0, %v1052
      %v1054 = vpop.f32.mrb[0].mxu0
      %v1055 = vadd.f32 0.0, %v1054
      %v1056 = vpop.f32.mrb[0].mxu0
      %v1057 = vadd.f32 0.0, %v1056
      %v1058 = vpop.f32.mrb[0].mxu0
      %v1059 = vadd.f32 0.0, %v1058
      %1060 = vmatprep.mubr.bf16.mxu0 0
      %1061 = vmatmul.mubr.bf16.gmra.mrb[0].mxu0 %v744
      %v1062 = vpop.f32.mrb[0].mxu0
      %v1063 = vadd.f32 0.0, %v1062
      %v1064 = vpop.f32.mrb[0].mxu0
      %v1065 = vadd.f32 0.0, %v1064
      %v1066 = vpop.f32.mrb[0].mxu0
      %v1067 = vadd.f32 0.0, %v1066
      %v1068 = vpop.f32.mrb[0].mxu0
      %v1069 = vadd.f32 0.0, %v1068
      %1070 = vmatprep.mubr.bf16.mxu0 0
      %1071 = vmatmul.mubr.bf16.gmra.mrb[0].mxu0 %v747
      %v1072 = vpop.f32.mrb[0].mxu0
      %v1073 = vadd.f32 0.0, %v1072
      %v1074 = vpop.f32.mrb[0].mxu0
      %v1075 = vadd.f32 0.0, %v1074
      %v1076 = vpop.f32.mrb[0].mxu0
      %v1077 = vadd.f32 0.0, %v1076
      %v1078 = vpop.f32.mrb[0].mxu0
      %v1079 = vadd.f32 0.0, %v1078
      %1080 = vmatprep.mubr.bf16.mxu0 0
      %1081 = vmatmul.mubr.bf16.gmra.mrb[0].mxu0 %v750
      %v1082 = vpop.f32.mrb[0].mxu0
      %v1083 = vadd.f32 0.0, %v1082
      %v1084 = vpop.f32.mrb[0].mxu0
      %v1085 = vadd.f32 0.0, %v1084
      %v1086 = vpop.f32.mrb[0].mxu0
      %v1087 = vadd.f32 0.0, %v1086
      %v1088 = vpop.f32.mrb[0].mxu0
      %v1089 = vadd.f32 0.0, %v1088
      %1090 = vmatprep.mubr.bf16.mxu0 0
      %1091 = vmatmul.mubr.bf16.gmra.mrb[0].mxu0 %v753
      %v1092 = vpop.f32.mrb[0].mxu0
      %v1093 = vadd.f32 0.0, %v1092
      %v1094 = vpop.f32.mrb[0].mxu0
      %v1095 = vadd.f32 0.0, %v1094
      %v1096 = vpop.f32.mrb[0].mxu0
      %v1097 = vadd.f32 0.0, %v1096
      %v1098 = vpop.f32.mrb[0].mxu0
      %v1099 = vadd.f32 0.0, %v1098
      %1100 = vmatprep.mubr.bf16.mxu0 0
      %1101 = vmatmul.mubr.bf16.gmra.mrb[0].mxu0 %v756
      %v1102 = vpop.f32.mrb[0].mxu0
      %v1103 = vadd.f32 0.0, %v1102
      %v1104 = vpop.f32.mrb[0].mxu0
      %v1105 = vadd.f32 0.0, %v1104
      %v1106 = vpop.f32.mrb[0].mxu0
      %v1107 = vadd.f32 0.0, %v1106
      %v1108 = vpop.f32.mrb[0].mxu0
      %v1109 = vadd.f32 0.0, %v1108
      %1110 = vdwg.mxu0
      %v1111 = vpack.c.bf16 %v797, %v793
      %v1112 = vpack.c.bf16 %v799, %v795
      %v1113 = vpack.c.bf16 %v807, %v803
      %v1114 = vpack.c.bf16 %v809, %v805
      %v1115 = vpack.c.bf16 %v817, %v813
      %v1116 = vpack.c.bf16 %v819, %v815
      %v1117 = vpack.c.bf16 %v827, %v823
      %v1118 = vpack.c.bf16 %v829, %v825
      %v1119 = vpack.c.bf16 %v837, %v833
      %v1120 = vpack.c.bf16 %v839, %v835
      %v1121 = vpack.c.bf16 %v847, %v843
      %v1122 = vpack.c.bf16 %v849, %v845
      %v1123 = vpack.c.bf16 %v857, %v853
      %v1124 = vpack.c.bf16 %v859, %v855
      %v1125 = vpack.c.bf16 %v867, %v863
      %v1126 = vpack.c.bf16 %v869, %v865
      %v1127 = vpack.c.bf16 %v877, %v873
      %v1128 = vpack.c.bf16 %v879, %v875
      %v1129 = vpack.c.bf16 %v887, %v883
      %v1130 = vpack.c.bf16 %v889, %v885
      %v1131 = vpack.c.bf16 %v897, %v893
      %v1132 = vpack.c.bf16 %v899, %v895
      %v1133 = vpack.c.bf16 %v907, %v903
      %v1134 = vpack.c.bf16 %v909, %v905
      %v1135 = vpack.c.bf16 %v917, %v913
      %v1136 = vpack.c.bf16 %v919, %v915
      %v1137 = vpack.c.bf16 %v927, %v923
      %v1138 = vpack.c.bf16 %v929, %v925
      %v1139 = vpack.c.bf16 %v937, %v933
      %v1140 = vpack.c.bf16 %v939, %v935
      %v1141 = vpack.c.bf16 %v947, %v943
      %v1142 = vpack.c.bf16 %v949, %v945
      %v1143 = vpack.c.bf16 %v957, %v953
      %v1144 = vpack.c.bf16 %v959, %v955
      %v1145 = vpack.c.bf16 %v967, %v963
      %v1146 = vpack.c.bf16 %v969, %v965
      %v1147 = vpack.c.bf16 %v977, %v973
      %v1148 = vpack.c.bf16 %v979, %v975
      %v1149 = vpack.c.bf16 %v987, %v983
      %v1150 = vpack.c.bf16 %v989, %v985
      %v1151 = vpack.c.bf16 %v997, %v993
      %v1152 = vpack.c.bf16 %v999, %v995
      %v1153 = vpack.c.bf16 %v1007, %v1003
      %v1154 = vpack.c.bf16 %v1009, %v1005
      %v1155 = vpack.c.bf16 %v1017, %v1013
      %v1156 = vpack.c.bf16 %v1019, %v1015
      %v1157 = vpack.c.bf16 %v1027, %v1023
      %v1158 = vpack.c.bf16 %v1029, %v1025
      %v1159 = vpack.c.bf16 %v1037, %v1033
      %v1160 = vpack.c.bf16 %v1039, %v1035
      %v1161 = vpack.c.bf16 %v1047, %v1043
      %v1162 = vpack.c.bf16 %v1049, %v1045
      %v1163 = vpack.c.bf16 %v1057, %v1053
      %v1164 = vpack.c.bf16 %v1059, %v1055
      %v1165 = vpack.c.bf16 %v1067, %v1063
      %v1166 = vpack.c.bf16 %v1069, %v1065
      %v1167 = vpack.c.bf16 %v1077, %v1073
      %v1168 = vpack.c.bf16 %v1079, %v1075
      %v1169 = vpack.c.bf16 %v1087, %v1083
      %v1170 = vpack.c.bf16 %v1089, %v1085
      %v1171 = vpack.c.bf16 %v1097, %v1093
      %v1172 = vpack.c.bf16 %v1099, %v1095
      %v1173 = vpack.c.bf16 %v1107, %v1103
      %v1174 = vpack.c.bf16 %v1109, %v1105
      %v1175 = vld [vmem:[%s2] sm:$0x3]
      %v1178 = vunpack.c.l.s4 1966171168
      %v1179 = vunpack.c.0.s8 %v1178
      %v1180 = vlaneseq
      %v1181 = vshrl.u32 %v1180, 7
      %v1182 = vsub.s32 %v1179, %v1181
      %v1183 = vrot.slane %v1175, %v1182
      %v1184 = vcombine.high %v1183, %v1183
      %v1186 = vunpack.c.l.s4 1966171168
      %v1187 = vunpack.c.0.s8 %v1186
      %v1188 = vlaneseq
      %v1189 = vshrl.u32 %v1188, 7
      %v1190 = vsub.s32 %v1187, %v1189
      %v1191 = vrot.slane %v1183, %v1190
      %v1193 = vunpack.c.l.s4 1966171168
      %v1194 = vunpack.c.0.s8 %v1193
      %v1195 = vlaneseq
      %v1196 = vshrl.u32 %v1195, 7
      %v1197 = vsub.s32 %v1194, %v1196
      %v1198 = vrot.slane %v1184, %v1197
      %v1200 = vpack.i.b16 %v1191, %v1191
      %v1202 = vlaneseq
      %v1203 = vshrl.u32 %v1202, 7
      %v1204 = vsub.s32 0, %v1203
      %v1205 = vrot.slane %v1200, %v1204
      %v1207 = vpack.i.b16 %v1198, %v1198
      %v1209 = vlaneseq
      %v1210 = vshrl.u32 %v1209, 7
      %v1211 = vsub.s32 0, %v1210
      %v1212 = vrot.slane %v1207, %v1211
      %v1213 = vadd.bf16 %v1111, %v1205
      %v1214 = vadd.bf16 %v1112, %v1212
      %v1215 = vadd.bf16 %v1113, %v1205
      %v1216 = vadd.bf16 %v1114, %v1212
      %v1217 = vadd.bf16 %v1115, %v1205
      %v1218 = vadd.bf16 %v1116, %v1212
      %v1219 = vadd.bf16 %v1117, %v1205
      %v1220 = vadd.bf16 %v1118, %v1212
      %v1221 = vadd.bf16 %v1119, %v1205
      %v1222 = vadd.bf16 %v1120, %v1212
      %v1223 = vadd.bf16 %v1121, %v1205
      %v1224 = vadd.bf16 %v1122, %v1212
      %v1225 = vadd.bf16 %v1123, %v1205
      %v1226 = vadd.bf16 %v1124, %v1212
      %v1227 = vadd.bf16 %v1125, %v1205
      %v1228 = vadd.bf16 %v1126, %v1212
      %v1229 = vadd.bf16 %v1127, %v1205
      %v1230 = vadd.bf16 %v1128, %v1212
      %v1231 = vadd.bf16 %v1129, %v1205
      %v1232 = vadd.bf16 %v1130, %v1212
      %v1233 = vadd.bf16 %v1131, %v1205
      %v1234 = vadd.bf16 %v1132, %v1212
      %v1235 = vadd.bf16 %v1133, %v1205
      %v1236 = vadd.bf16 %v1134, %v1212
      %v1237 = vadd.bf16 %v1135, %v1205
      %v1238 = vadd.bf16 %v1136, %v1212
      %v1239 = vadd.bf16 %v1137, %v1205
      %v1240 = vadd.bf16 %v1138, %v1212
      %v1241 = vadd.bf16 %v1139, %v1205
      %v1242 = vadd.bf16 %v1140, %v1212
      %v1243 = vadd.bf16 %v1141, %v1205
      %v1244 = vadd.bf16 %v1142, %v1212
      %v1245 = vadd.bf16 %v1143, %v1205
      %v1246 = vadd.bf16 %v1144, %v1212
      %v1247 = vadd.bf16 %v1145, %v1205
      %v1248 = vadd.bf16 %v1146, %v1212
      %v1249 = vadd.bf16 %v1147, %v1205
      %v1250 = vadd.bf16 %v1148, %v1212
      %v1251 = vadd.bf16 %v1149, %v1205
      %v1252 = vadd.bf16 %v1150, %v1212
      %v1253 = vadd.bf16 %v1151, %v1205
      %v1254 = vadd.bf16 %v1152, %v1212
      %v1255 = vadd.bf16 %v1153, %v1205
      %v1256 = vadd.bf16 %v1154, %v1212
      %v1257 = vadd.bf16 %v1155, %v1205
      %v1258 = vadd.bf16 %v1156, %v1212
      %v1259 = vadd.bf16 %v1157, %v1205
      %v1260 = vadd.bf16 %v1158, %v1212
      %v1261 = vadd.bf16 %v1159, %v1205
      %v1262 = vadd.bf16 %v1160, %v1212
      %v1263 = vadd.bf16 %v1161, %v1205
      %v1264 = vadd.bf16 %v1162, %v1212
      %v1265 = vadd.bf16 %v1163, %v1205
      %v1266 = vadd.bf16 %v1164, %v1212
      %v1267 = vadd.bf16 %v1165, %v1205
      %v1268 = vadd.bf16 %v1166, %v1212
      %v1269 = vadd.bf16 %v1167, %v1205
      %v1270 = vadd.bf16 %v1168, %v1212
      %v1271 = vadd.bf16 %v1169, %v1205
      %v1272 = vadd.bf16 %v1170, %v1212
      %v1273 = vadd.bf16 %v1171, %v1205
      %v1274 = vadd.bf16 %v1172, %v1212
      %v1275 = vadd.bf16 %v1173, %v1205
      %v1276 = vadd.bf16 %v1174, %v1212
      %v1277 = vmax.bf16 %v1213, 0
      %v1278 = vmax.bf16 %v1214, 0
      %v1279 = vmax.bf16 %v1215, 0
      %v1280 = vmax.bf16 %v1216, 0
      %v1281 = vmax.bf16 %v1217, 0
      %v1282 = vmax.bf16 %v1218, 0
      %v1283 = vmax.bf16 %v1219, 0
      %v1284 = vmax.bf16 %v1220, 0
      %v1285 = vmax.bf16 %v1221, 0
      %v1286 = vmax.bf16 %v1222, 0
      %v1287 = vmax.bf16 %v1223, 0
      %v1288 = vmax.bf16 %v1224, 0
      %v1289 = vmax.bf16 %v1225, 0
      %v1290 = vmax.bf16 %v1226, 0
      %v1291 = vmax.bf16 %v1227, 0
      %v1292 = vmax.bf16 %v1228, 0
      %v1293 = vmax.bf16 %v1229, 0
      %v1294 = vmax.bf16 %v1230, 0
      %v1295 = vmax.bf16 %v1231, 0
      %v1296 = vmax.bf16 %v1232, 0
      %v1297 = vmax.bf16 %v1233, 0
      %v1298 = vmax.bf16 %v1234, 0
      %v1299 = vmax.bf16 %v1235, 0
      %v1300 = vmax.bf16 %v1236, 0
      %v1301 = vmax.bf16 %v1237, 0
      %v1302 = vmax.bf16 %v1238, 0
      %v1303 = vmax.bf16 %v1239, 0
      %v1304 = vmax.bf16 %v1240, 0
      %v1305 = vmax.bf16 %v1241, 0
      %v1306 = vmax.bf16 %v1242, 0
      %v1307 = vmax.bf16 %v1243, 0
      %v1308 = vmax.bf16 %v1244, 0
      %v1309 = vmax.bf16 %v1245, 0
      %v1310 = vmax.bf16 %v1246, 0
      %v1311 = vmax.bf16 %v1247, 0
      %v1312 = vmax.bf16 %v1248, 0
      %v1313 = vmax.bf16 %v1249, 0
      %v1314 = vmax.bf16 %v1250, 0
      %v1315 = vmax.bf16 %v1251, 0
      %v1316 = vmax.bf16 %v1252, 0
      %v1317 = vmax.bf16 %v1253, 0
      %v1318 = vmax.bf16 %v1254, 0
      %v1319 = vmax.bf16 %v1255, 0
      %v1320 = vmax.bf16 %v1256, 0
      %v1321 = vmax.bf16 %v1257, 0
      %v1322 = vmax.bf16 %v1258, 0
      %v1323 = vmax.bf16 %v1259, 0
      %v1324 = vmax.bf16 %v1260, 0
      %v1325 = vmax.bf16 %v1261, 0
      %v1326 = vmax.bf16 %v1262, 0
      %v1327 = vmax.bf16 %v1263, 0
      %v1328 = vmax.bf16 %v1264, 0
      %v1329 = vmax.bf16 %v1265, 0
      %v1330 = vmax.bf16 %v1266, 0
      %v1331 = vmax.bf16 %v1267, 0
      %v1332 = vmax.bf16 %v1268, 0
      %v1333 = vmax.bf16 %v1269, 0
      %v1334 = vmax.bf16 %v1270, 0
      %v1335 = vmax.bf16 %v1271, 0
      %v1336 = vmax.bf16 %v1272, 0
      %v1337 = vmax.bf16 %v1273, 0
      %v1338 = vmax.bf16 %v1274, 0
      %v1339 = vmax.bf16 %v1275, 0
      %v1340 = vmax.bf16 %v1276, 0
      %v1341 = vld [vmem:[%s3] sm:$0xff]
      %v1342 = vld [vmem:[%s3 + $0x8] sm:$0xff]
      %v1343 = vld [vmem:[%s3 + $0x10] sm:$0xff]
      %v1344 = vld [vmem:[%s3 + $0x18] sm:$0xff]
      %v1345 = vld [vmem:[%s3 + $0x20] sm:$0xff]
      %v1346 = vld [vmem:[%s3 + $0x28] sm:$0xff]
      %v1347 = vld [vmem:[%s3 + $0x30] sm:$0xff]
      %v1348 = vld [vmem:[%s3 + $0x38] sm:$0xff]
      %v1349 = vld [vmem:[%s3 + $0x40] sm:$0xff]
      %v1350 = vld [vmem:[%s3 + $0x48] sm:$0xff]
      %v1351 = vld [vmem:[%s3 + $0x50] sm:$0xff]
      %v1352 = vld [vmem:[%s3 + $0x58] sm:$0xff]
      %v1353 = vld [vmem:[%s3 + $0x60] sm:$0xff]
      %v1354 = vld [vmem:[%s3 + $0x68] sm:$0xff]
      %v1355 = vld [vmem:[%s3 + $0x70] sm:$0xff]
      %v1356 = vld [vmem:[%s3 + $0x78] sm:$0xff]
      %v1357 = vld [vmem:[%s3 + $0x80] sm:$0xff]
      %v1358 = vld [vmem:[%s3 + $0x88] sm:$0xff]
      %v1359 = vld [vmem:[%s3 + $0x90] sm:$0xff]
      %v1360 = vld [vmem:[%s3 + $0x98] sm:$0xff]
      %v1361 = vld [vmem:[%s3 + $0xa0] sm:$0xff]
      %v1362 = vld [vmem:[%s3 + $0xa8] sm:$0xff]
      %v1363 = vld [vmem:[%s3 + $0xb0] sm:$0xff]
      %v1364 = vld [vmem:[%s3 + $0xb8] sm:$0xff]
      %v1365 = vld [vmem:[%s3 + $0xc0] sm:$0xff]
      %v1366 = vld [vmem:[%s3 + $0xc8] sm:$0xff]
      %v1367 = vld [vmem:[%s3 + $0xd0] sm:$0xff]
      %v1368 = vld [vmem:[%s3 + $0xd8] sm:$0xff]
      %v1369 = vld [vmem:[%s3 + $0xe0] sm:$0xff]
      %v1370 = vld [vmem:[%s3 + $0xe8] sm:$0xff]
      %v1371 = vld [vmem:[%s3 + $0xf0] sm:$0xff]
      %v1372 = vld [vmem:[%s3 + $0xf8] sm:$0xff]
      %v1405 = vunpack.c.l.b16 %v1341
      %v1406 = vunpack.c.h.b16 %v1341
      %v1407 = vunpack.c.l.b16 %v1342
      %v1408 = vunpack.c.h.b16 %v1342
      %v1409 = vunpack.c.l.b16 %v1343
      %v1410 = vunpack.c.h.b16 %v1343
      %v1411 = vunpack.c.l.b16 %v1344
      %v1412 = vunpack.c.h.b16 %v1344
      %v1413 = vunpack.c.l.b16 %v1345
      %v1414 = vunpack.c.h.b16 %v1345
      %v1415 = vunpack.c.l.b16 %v1346
      %v1416 = vunpack.c.h.b16 %v1346
      %v1417 = vunpack.c.l.b16 %v1347
      %v1418 = vunpack.c.h.b16 %v1347
      %v1419 = vunpack.c.l.b16 %v1348
      %v1420 = vunpack.c.h.b16 %v1348
      %v1421 = vunpack.c.l.b16 %v1349
      %v1422 = vunpack.c.h.b16 %v1349
      %v1423 = vunpack.c.l.b16 %v1350
      %v1424 = vunpack.c.h.b16 %v1350
      %v1425 = vunpack.c.l.b16 %v1351
      %v1426 = vunpack.c.h.b16 %v1351
      %v1427 = vunpack.c.l.b16 %v1352
      %v1428 = vunpack.c.h.b16 %v1352
      %v1429 = vunpack.c.l.b16 %v1353
      %v1430 = vunpack.c.h.b16 %v1353
      %v1431 = vunpack.c.l.b16 %v1354
      %v1432 = vunpack.c.h.b16 %v1354
      %v1433 = vunpack.c.l.b16 %v1355
      %v1434 = vunpack.c.h.b16 %v1355
      %v1435 = vunpack.c.l.b16 %v1356
      %v1436 = vunpack.c.h.b16 %v1356
      %v1437 = vunpack.c.l.b16 %v1357
      %v1438 = vunpack.c.h.b16 %v1357
      %v1439 = vunpack.c.l.b16 %v1358
      %v1440 = vunpack.c.h.b16 %v1358
      %v1441 = vunpack.c.l.b16 %v1359
      %v1442 = vunpack.c.h.b16 %v1359
      %v1443 = vunpack.c.l.b16 %v1360
      %v1444 = vunpack.c.h.b16 %v1360
      %v1445 = vunpack.c.l.b16 %v1361
      %v1446 = vunpack.c.h.b16 %v1361
      %v1447 = vunpack.c.l.b16 %v1362
      %v1448 = vunpack.c.h.b16 %v1362
      %v1449 = vunpack.c.l.b16 %v1363
      %v1450 = vunpack.c.h.b16 %v1363
      %v1451 = vunpack.c.l.b16 %v1364
      %v1452 = vunpack.c.h.b16 %v1364
      %v1453 = vunpack.c.l.b16 %v1365
      %v1454 = vunpack.c.h.b16 %v1365
      %v1455 = vunpack.c.l.b16 %v1366
      %v1456 = vunpack.c.h.b16 %v1366
      %v1457 = vunpack.c.l.b16 %v1367
      %v1458 = vunpack.c.h.b16 %v1367
      %v1459 = vunpack.c.l.b16 %v1368
      %v1460 = vunpack.c.h.b16 %v1368
      %v1461 = vunpack.c.l.b16 %v1369
      %v1462 = vunpack.c.h.b16 %v1369
      %v1463 = vunpack.c.l.b16 %v1370
      %v1464 = vunpack.c.h.b16 %v1370
      %v1465 = vunpack.c.l.b16 %v1371
      %v1466 = vunpack.c.h.b16 %v1371
      %v1467 = vunpack.c.l.b16 %v1372
      %v1468 = vunpack.c.h.b16 %v1372
      %v1469 = vpack.c.b16 %v1407, %v1405
      %v1470 = vpack.c.b16 %v1408, %v1406
      %v1471 = vpack.c.b16 %v1411, %v1409
      %v1472 = vpack.c.b16 %v1412, %v1410
      %v1473 = vpack.c.b16 %v1415, %v1413
      %v1474 = vpack.c.b16 %v1416, %v1414
      %v1475 = vpack.c.b16 %v1419, %v1417
      %v1476 = vpack.c.b16 %v1420, %v1418
      %v1477 = vpack.c.b16 %v1423, %v1421
      %v1478 = vpack.c.b16 %v1424, %v1422
      %v1479 = vpack.c.b16 %v1427, %v1425
      %v1480 = vpack.c.b16 %v1428, %v1426
      %v1481 = vpack.c.b16 %v1431, %v1429
      %v1482 = vpack.c.b16 %v1432, %v1430
      %v1483 = vpack.c.b16 %v1435, %v1433
      %v1484 = vpack.c.b16 %v1436, %v1434
      %v1485 = vpack.c.b16 %v1439, %v1437
      %v1486 = vpack.c.b16 %v1440, %v1438
      %v1487 = vpack.c.b16 %v1443, %v1441
      %v1488 = vpack.c.b16 %v1444, %v1442
      %v1489 = vpack.c.b16 %v1447, %v1445
      %v1490 = vpack.c.b16 %v1448, %v1446
      %v1491 = vpack.c.b16 %v1451, %v1449
      %v1492 = vpack.c.b16 %v1452, %v1450
      %v1493 = vpack.c.b16 %v1455, %v1453
      %v1494 = vpack.c.b16 %v1456, %v1454
      %v1495 = vpack.c.b16 %v1459, %v1457
      %v1496 = vpack.c.b16 %v1460, %v1458
      %v1497 = vpack.c.b16 %v1463, %v1461
      %v1498 = vpack.c.b16 %v1464, %v1462
      %v1499 = vpack.c.b16 %v1467, %v1465
      %v1500 = vpack.c.b16 %v1468, %v1466
      %1533 = vmatprep.subr.bf16.mxu0 %v1470
      %1534 = vmatpush1.bf16.msra.mxu0 %v1469
      %1535 = vmatprep.subr.bf16.mxu0 %v1472
      %1536 = vmatpush1.bf16.msra.mxu0 %v1471
      %1537 = vmatprep.subr.bf16.mxu0 %v1474
      %1538 = vmatpush1.bf16.msra.mxu0 %v1473
      %1539 = vmatprep.subr.bf16.mxu0 %v1476
      %1540 = vmatpush1.bf16.msra.mxu0 %v1475
      %1541 = vmatprep.subr.bf16.mxu0 %v1478
      %1542 = vmatpush1.bf16.msra.mxu0 %v1477
      %1543 = vmatprep.subr.bf16.mxu0 %v1480
      %1544 = vmatpush1.bf16.msra.mxu0 %v1479
      %1545 = vmatprep.subr.bf16.mxu0 %v1482
      %1546 = vmatpush1.bf16.msra.mxu0 %v1481
      %1547 = vmatprep.subr.bf16.mxu0 %v1484
      %1548 = vmatpush1.bf16.msra.mxu0 %v1483
      %1549 = vmatprep.subr.bf16.mxu0 %v1486
      %1550 = vmatpush1.bf16.msra.mxu0 %v1485
      %1551 = vmatprep.subr.bf16.mxu0 %v1488
      %1552 = vmatpush1.bf16.msra.mxu0 %v1487
      %1553 = vmatprep.subr.bf16.mxu0 %v1490
      %1554 = vmatpush1.bf16.msra.mxu0 %v1489
      %1555 = vmatprep.subr.bf16.mxu0 %v1492
      %1556 = vmatpush1.bf16.msra.mxu0 %v1491
      %1557 = vmatprep.subr.bf16.mxu0 %v1494
      %1558 = vmatpush1.bf16.msra.mxu0 %v1493
      %1559 = vmatprep.subr.bf16.mxu0 %v1496
      %1560 = vmatpush1.bf16.msra.mxu0 %v1495
      %1561 = vmatprep.subr.bf16.mxu0 %v1498
      %1562 = vmatpush1.bf16.msra.mxu0 %v1497
      %1563 = vmatprep.subr.bf16.mxu0 %v1500
      %1564 = vmatpush1.bf16.msra.mxu0 %v1499
      %1565 = vmatprep.mubr.bf16.mxu0 %v1278
      %1566 = vmatmul.mubr.bf16.gmra.mrb[0].mxu0 %v1277
      %v1567 = vpop.f32.mrb[0].mxu0
      %v1568 = vadd.f32 0.0, %v1567
      %v1569 = vpop.f32.mrb[0].mxu0
      %v1570 = vadd.f32 0.0, %v1569
      %v1571 = vpop.f32.mrb[0].mxu0
      %v1572 = vadd.f32 0.0, %v1571
      %v1573 = vpop.f32.mrb[0].mxu0
      %v1574 = vadd.f32 0.0, %v1573
      %1575 = vmatprep.mubr.bf16.mxu0 %v1280
      %1576 = vmatmul.mubr.bf16.gmra.mrb[0].mxu0 %v1279
      %v1577 = vpop.f32.mrb[0].mxu0
      %v1578 = vadd.f32 0.0, %v1577
      %v1579 = vpop.f32.mrb[0].mxu0
      %v1580 = vadd.f32 0.0, %v1579
      %v1581 = vpop.f32.mrb[0].mxu0
      %v1582 = vadd.f32 0.0, %v1581
      %v1583 = vpop.f32.mrb[0].mxu0
      %v1584 = vadd.f32 0.0, %v1583
      %1585 = vmatprep.mubr.bf16.mxu0 %v1282
      %1586 = vmatmul.mubr.bf16.gmra.mrb[0].mxu0 %v1281
      %v1587 = vpop.f32.mrb[0].mxu0
      %v1588 = vadd.f32 0.0, %v1587
      %v1589 = vpop.f32.mrb[0].mxu0
      %v1590 = vadd.f32 0.0, %v1589
      %v1591 = vpop.f32.mrb[0].mxu0
      %v1592 = vadd.f32 0.0, %v1591
      %v1593 = vpop.f32.mrb[0].mxu0
      %v1594 = vadd.f32 0.0, %v1593
      %1595 = vmatprep.mubr.bf16.mxu0 %v1284
      %1596 = vmatmul.mubr.bf16.gmra.mrb[0].mxu0 %v1283
      %v1597 = vpop.f32.mrb[0].mxu0
      %v1598 = vadd.f32 0.0, %v1597
      %v1599 = vpop.f32.mrb[0].mxu0
      %v1600 = vadd.f32 0.0, %v1599
      %v1601 = vpop.f32.mrb[0].mxu0
      %v1602 = vadd.f32 0.0, %v1601
      %v1603 = vpop.f32.mrb[0].mxu0
      %v1604 = vadd.f32 0.0, %v1603
      %1605 = vmatprep.mubr.bf16.mxu0 %v1286
      %1606 = vmatmul.mubr.bf16.gmra.mrb[0].mxu0 %v1285
      %v1607 = vpop.f32.mrb[0].mxu0
      %v1608 = vadd.f32 0.0, %v1607
      %v1609 = vpop.f32.mrb[0].mxu0
      %v1610 = vadd.f32 0.0, %v1609
      %v1611 = vpop.f32.mrb[0].mxu0
      %v1612 = vadd.f32 0.0, %v1611
      %v1613 = vpop.f32.mrb[0].mxu0
      %v1614 = vadd.f32 0.0, %v1613
      %1615 = vmatprep.mubr.bf16.mxu0 %v1288
      %1616 = vmatmul.mubr.bf16.gmra.mrb[0].mxu0 %v1287
      %v1617 = vpop.f32.mrb[0].mxu0
      %v1618 = vadd.f32 0.0, %v1617
      %v1619 = vpop.f32.mrb[0].mxu0
      %v1620 = vadd.f32 0.0, %v1619
      %v1621 = vpop.f32.mrb[0].mxu0
      %v1622 = vadd.f32 0.0, %v1621
      %v1623 = vpop.f32.mrb[0].mxu0
      %v1624 = vadd.f32 0.0, %v1623
      %1625 = vmatprep.mubr.bf16.mxu0 %v1290
      %1626 = vmatmul.mubr.bf16.gmra.mrb[0].mxu0 %v1289
      %v1627 = vpop.f32.mrb[0].mxu0
      %v1628 = vadd.f32 0.0, %v1627
      %v1629 = vpop.f32.mrb[0].mxu0
      %v1630 = vadd.f32 0.0, %v1629
      %v1631 = vpop.f32.mrb[0].mxu0
      %v1632 = vadd.f32 0.0, %v1631
      %v1633 = vpop.f32.mrb[0].mxu0
      %v1634 = vadd.f32 0.0, %v1633
      %1635 = vmatprep.mubr.bf16.mxu0 %v1292
      %1636 = vmatmul.mubr.bf16.gmra.mrb[0].mxu0 %v1291
      %v1637 = vpop.f32.mrb[0].mxu0
      %v1638 = vadd.f32 0.0, %v1637
      %v1639 = vpop.f32.mrb[0].mxu0
      %v1640 = vadd.f32 0.0, %v1639
      %v1641 = vpop.f32.mrb[0].mxu0
      %v1642 = vadd.f32 0.0, %v1641
      %v1643 = vpop.f32.mrb[0].mxu0
      %v1644 = vadd.f32 0.0, %v1643
      %1645 = vmatprep.mubr.bf16.mxu0 %v1294
      %1646 = vmatmul.mubr.bf16.gmra.mrb[0].mxu0 %v1293
      %v1647 = vpop.f32.mrb[0].mxu0
      %v1648 = vadd.f32 0.0, %v1647
      %v1649 = vpop.f32.mrb[0].mxu0
      %v1650 = vadd.f32 0.0, %v1649
      %v1651 = vpop.f32.mrb[0].mxu0
      %v1652 = vadd.f32 0.0, %v1651
      %v1653 = vpop.f32.mrb[0].mxu0
      %v1654 = vadd.f32 0.0, %v1653
      %1655 = vmatprep.mubr.bf16.mxu0 %v1296
      %1656 = vmatmul.mubr.bf16.gmra.mrb[0].mxu0 %v1295
      %v1657 = vpop.f32.mrb[0].mxu0
      %v1658 = vadd.f32 0.0, %v1657
      %v1659 = vpop.f32.mrb[0].mxu0
      %v1660 = vadd.f32 0.0, %v1659
      %v1661 = vpop.f32.mrb[0].mxu0
      %v1662 = vadd.f32 0.0, %v1661
      %v1663 = vpop.f32.mrb[0].mxu0
      %v1664 = vadd.f32 0.0, %v1663
      %1665 = vmatprep.mubr.bf16.mxu0 %v1298
      %1666 = vmatmul.mubr.bf16.gmra.mrb[0].mxu0 %v1297
      %v1667 = vpop.f32.mrb[0].mxu0
      %v1668 = vadd.f32 0.0, %v1667
      %v1669 = vpop.f32.mrb[0].mxu0
      %v1670 = vadd.f32 0.0, %v1669
      %v1671 = vpop.f32.mrb[0].mxu0
      %v1672 = vadd.f32 0.0, %v1671
      %v1673 = vpop.f32.mrb[0].mxu0
      %v1674 = vadd.f32 0.0, %v1673
      %1675 = vmatprep.mubr.bf16.mxu0 %v1300
      %1676 = vmatmul.mubr.bf16.gmra.mrb[0].mxu0 %v1299
      %v1677 = vpop.f32.mrb[0].mxu0
      %v1678 = vadd.f32 0.0, %v1677
      %v1679 = vpop.f32.mrb[0].mxu0
      %v1680 = vadd.f32 0.0, %v1679
      %v1681 = vpop.f32.mrb[0].mxu0
      %v1682 = vadd.f32 0.0, %v1681
      %v1683 = vpop.f32.mrb[0].mxu0
      %v1684 = vadd.f32 0.0, %v1683
      %1685 = vmatprep.mubr.bf16.mxu0 %v1302
      %1686 = vmatmul.mubr.bf16.gmra.mrb[0].mxu0 %v1301
      %v1687 = vpop.f32.mrb[0].mxu0
      %v1688 = vadd.f32 0.0, %v1687
      %v1689 = vpop.f32.mrb[0].mxu0
      %v1690 = vadd.f32 0.0, %v1689
      %v1691 = vpop.f32.mrb[0].mxu0
      %v1692 = vadd.f32 0.0, %v1691
      %v1693 = vpop.f32.mrb[0].mxu0
      %v1694 = vadd.f32 0.0, %v1693
      %1695 = vmatprep.mubr.bf16.mxu0 %v1304
      %1696 = vmatmul.mubr.bf16.gmra.mrb[0].mxu0 %v1303
      %v1697 = vpop.f32.mrb[0].mxu0
      %v1698 = vadd.f32 0.0, %v1697
      %v1699 = vpop.f32.mrb[0].mxu0
      %v1700 = vadd.f32 0.0, %v1699
      %v1701 = vpop.f32.mrb[0].mxu0
      %v1702 = vadd.f32 0.0, %v1701
      %v1703 = vpop.f32.mrb[0].mxu0
      %v1704 = vadd.f32 0.0, %v1703
      %1705 = vmatprep.mubr.bf16.mxu0 %v1306
      %1706 = vmatmul.mubr.bf16.gmra.mrb[0].mxu0 %v1305
      %v1707 = vpop.f32.mrb[0].mxu0
      %v1708 = vadd.f32 0.0, %v1707
      %v1709 = vpop.f32.mrb[0].mxu0
      %v1710 = vadd.f32 0.0, %v1709
      %v1711 = vpop.f32.mrb[0].mxu0
      %v1712 = vadd.f32 0.0, %v1711
      %v1713 = vpop.f32.mrb[0].mxu0
      %v1714 = vadd.f32 0.0, %v1713
      %1715 = vmatprep.mubr.bf16.mxu0 %v1308
      %1716 = vmatmul.mubr.bf16.gmra.mrb[0].mxu0 %v1307
      %v1717 = vpop.f32.mrb[0].mxu0
      %v1718 = vadd.f32 0.0, %v1717
      %v1719 = vpop.f32.mrb[0].mxu0
      %v1720 = vadd.f32 0.0, %v1719
      %v1721 = vpop.f32.mrb[0].mxu0
      %v1722 = vadd.f32 0.0, %v1721
      %v1723 = vpop.f32.mrb[0].mxu0
      %v1724 = vadd.f32 0.0, %v1723
      %1725 = vmatprep.mubr.bf16.mxu0 %v1310
      %1726 = vmatmul.mubr.bf16.gmra.mrb[0].mxu0 %v1309
      %v1727 = vpop.f32.mrb[0].mxu0
      %v1728 = vadd.f32 0.0, %v1727
      %v1729 = vpop.f32.mrb[0].mxu0
      %v1730 = vadd.f32 0.0, %v1729
      %v1731 = vpop.f32.mrb[0].mxu0
      %v1732 = vadd.f32 0.0, %v1731
      %v1733 = vpop.f32.mrb[0].mxu0
      %v1734 = vadd.f32 0.0, %v1733
      %1735 = vmatprep.mubr.bf16.mxu0 %v1312
      %1736 = vmatmul.mubr.bf16.gmra.mrb[0].mxu0 %v1311
      %v1737 = vpop.f32.mrb[0].mxu0
      %v1738 = vadd.f32 0.0, %v1737
      %v1739 = vpop.f32.mrb[0].mxu0
      %v1740 = vadd.f32 0.0, %v1739
      %v1741 = vpop.f32.mrb[0].mxu0
      %v1742 = vadd.f32 0.0, %v1741
      %v1743 = vpop.f32.mrb[0].mxu0
      %v1744 = vadd.f32 0.0, %v1743
      %1745 = vmatprep.mubr.bf16.mxu0 %v1314
      %1746 = vmatmul.mubr.bf16.gmra.mrb[0].mxu0 %v1313
      %v1747 = vpop.f32.mrb[0].mxu0
      %v1748 = vadd.f32 0.0, %v1747
      %v1749 = vpop.f32.mrb[0].mxu0
      %v1750 = vadd.f32 0.0, %v1749
      %v1751 = vpop.f32.mrb[0].mxu0
      %v1752 = vadd.f32 0.0, %v1751
      %v1753 = vpop.f32.mrb[0].mxu0
      %v1754 = vadd.f32 0.0, %v1753
      %1755 = vmatprep.mubr.bf16.mxu0 %v1316
      %1756 = vmatmul.mubr.bf16.gmra.mrb[0].mxu0 %v1315
      %v1757 = vpop.f32.mrb[0].mxu0
      %v1758 = vadd.f32 0.0, %v1757
      %v1759 = vpop.f32.mrb[0].mxu0
      %v1760 = vadd.f32 0.0, %v1759
      %v1761 = vpop.f32.mrb[0].mxu0
      %v1762 = vadd.f32 0.0, %v1761
      %v1763 = vpop.f32.mrb[0].mxu0
      %v1764 = vadd.f32 0.0, %v1763
      %1765 = vmatprep.mubr.bf16.mxu0 %v1318
      %1766 = vmatmul.mubr.bf16.gmra.mrb[0].mxu0 %v1317
      %v1767 = vpop.f32.mrb[0].mxu0
      %v1768 = vadd.f32 0.0, %v1767
      %v1769 = vpop.f32.mrb[0].mxu0
      %v1770 = vadd.f32 0.0, %v1769
      %v1771 = vpop.f32.mrb[0].mxu0
      %v1772 = vadd.f32 0.0, %v1771
      %v1773 = vpop.f32.mrb[0].mxu0
      %v1774 = vadd.f32 0.0, %v1773
      %1775 = vmatprep.mubr.bf16.mxu0 %v1320
      %1776 = vmatmul.mubr.bf16.gmra.mrb[0].mxu0 %v1319
      %v1777 = vpop.f32.mrb[0].mxu0
      %v1778 = vadd.f32 0.0, %v1777
      %v1779 = vpop.f32.mrb[0].mxu0
      %v1780 = vadd.f32 0.0, %v1779
      %v1781 = vpop.f32.mrb[0].mxu0
      %v1782 = vadd.f32 0.0, %v1781
      %v1783 = vpop.f32.mrb[0].mxu0
      %v1784 = vadd.f32 0.0, %v1783
      %1785 = vmatprep.mubr.bf16.mxu0 %v1322
      %1786 = vmatmul.mubr.bf16.gmra.mrb[0].mxu0 %v1321
      %v1787 = vpop.f32.mrb[0].mxu0
      %v1788 = vadd.f32 0.0, %v1787
      %v1789 = vpop.f32.mrb[0].mxu0
      %v1790 = vadd.f32 0.0, %v1789
      %v1791 = vpop.f32.mrb[0].mxu0
      %v1792 = vadd.f32 0.0, %v1791
      %v1793 = vpop.f32.mrb[0].mxu0
      %v1794 = vadd.f32 0.0, %v1793
      %1795 = vmatprep.mubr.bf16.mxu0 %v1324
      %1796 = vmatmul.mubr.bf16.gmra.mrb[0].mxu0 %v1323
      %v1797 = vpop.f32.mrb[0].mxu0
      %v1798 = vadd.f32 0.0, %v1797
      %v1799 = vpop.f32.mrb[0].mxu0
      %v1800 = vadd.f32 0.0, %v1799
      %v1801 = vpop.f32.mrb[0].mxu0
      %v1802 = vadd.f32 0.0, %v1801
      %v1803 = vpop.f32.mrb[0].mxu0
      %v1804 = vadd.f32 0.0, %v1803
      %1805 = vmatprep.mubr.bf16.mxu0 %v1326
      %1806 = vmatmul.mubr.bf16.gmra.mrb[0].mxu0 %v1325
      %v1807 = vpop.f32.mrb[0].mxu0
      %v1808 = vadd.f32 0.0, %v1807
      %v1809 = vpop.f32.mrb[0].mxu0
      %v1810 = vadd.f32 0.0, %v1809
      %v1811 = vpop.f32.mrb[0].mxu0
      %v1812 = vadd.f32 0.0, %v1811
      %v1813 = vpop.f32.mrb[0].mxu0
      %v1814 = vadd.f32 0.0, %v1813
      %1815 = vmatprep.mubr.bf16.mxu0 %v1328
      %1816 = vmatmul.mubr.bf16.gmra.mrb[0].mxu0 %v1327
      %v1817 = vpop.f32.mrb[0].mxu0
      %v1818 = vadd.f32 0.0, %v1817
      %v1819 = vpop.f32.mrb[0].mxu0
      %v1820 = vadd.f32 0.0, %v1819
      %v1821 = vpop.f32.mrb[0].mxu0
      %v1822 = vadd.f32 0.0, %v1821
      %v1823 = vpop.f32.mrb[0].mxu0
      %v1824 = vadd.f32 0.0, %v1823
      %1825 = vmatprep.mubr.bf16.mxu0 %v1330
      %1826 = vmatmul.mubr.bf16.gmra.mrb[0].mxu0 %v1329
      %v1827 = vpop.f32.mrb[0].mxu0
      %v1828 = vadd.f32 0.0, %v1827
      %v1829 = vpop.f32.mrb[0].mxu0
      %v1830 = vadd.f32 0.0, %v1829
      %v1831 = vpop.f32.mrb[0].mxu0
      %v1832 = vadd.f32 0.0, %v1831
      %v1833 = vpop.f32.mrb[0].mxu0
      %v1834 = vadd.f32 0.0, %v1833
      %1835 = vmatprep.mubr.bf16.mxu0 %v1332
      %1836 = vmatmul.mubr.bf16.gmra.mrb[0].mxu0 %v1331
      %v1837 = vpop.f32.mrb[0].mxu0
      %v1838 = vadd.f32 0.0, %v1837
      %v1839 = vpop.f32.mrb[0].mxu0
      %v1840 = vadd.f32 0.0, %v1839
      %v1841 = vpop.f32.mrb[0].mxu0
      %v1842 = vadd.f32 0.0, %v1841
      %v1843 = vpop.f32.mrb[0].mxu0
      %v1844 = vadd.f32 0.0, %v1843
      %1845 = vmatprep.mubr.bf16.mxu0 %v1334
      %1846 = vmatmul.mubr.bf16.gmra.mrb[0].mxu0 %v1333
      %v1847 = vpop.f32.mrb[0].mxu0
      %v1848 = vadd.f32 0.0, %v1847
      %v1849 = vpop.f32.mrb[0].mxu0
      %v1850 = vadd.f32 0.0, %v1849
      %v1851 = vpop.f32.mrb[0].mxu0
      %v1852 = vadd.f32 0.0, %v1851
      %v1853 = vpop.f32.mrb[0].mxu0
      %v1854 = vadd.f32 0.0, %v1853
      %1855 = vmatprep.mubr.bf16.mxu0 %v1336
      %1856 = vmatmul.mubr.bf16.gmra.mrb[0].mxu0 %v1335
      %v1857 = vpop.f32.mrb[0].mxu0
      %v1858 = vadd.f32 0.0, %v1857
      %v1859 = vpop.f32.mrb[0].mxu0
      %v1860 = vadd.f32 0.0, %v1859
      %v1861 = vpop.f32.mrb[0].mxu0
      %v1862 = vadd.f32 0.0, %v1861
      %v1863 = vpop.f32.mrb[0].mxu0
      %v1864 = vadd.f32 0.0, %v1863
      %1865 = vmatprep.mubr.bf16.mxu0 %v1338
      %1866 = vmatmul.mubr.bf16.gmra.mrb[0].mxu0 %v1337
      %v1867 = vpop.f32.mrb[0].mxu0
      %v1868 = vadd.f32 0.0, %v1867
      %v1869 = vpop.f32.mrb[0].mxu0
      %v1870 = vadd.f32 0.0, %v1869
      %v1871 = vpop.f32.mrb[0].mxu0
      %v1872 = vadd.f32 0.0, %v1871
      %v1873 = vpop.f32.mrb[0].mxu0
      %v1874 = vadd.f32 0.0, %v1873
      %1875 = vmatprep.mubr.bf16.mxu0 %v1340
      %1876 = vmatmul.mubr.bf16.gmra.mrb[0].mxu0 %v1339
      %v1877 = vpop.f32.mrb[0].mxu0
      %v1878 = vadd.f32 0.0, %v1877
      %v1879 = vpop.f32.mrb[0].mxu0
      %v1880 = vadd.f32 0.0, %v1879
      %v1881 = vpop.f32.mrb[0].mxu0
      %v1882 = vadd.f32 0.0, %v1881
      %v1883 = vpop.f32.mrb[0].mxu0
      %v1884 = vadd.f32 0.0, %v1883
      %1885 = vdwg.mxu0
      %v1886 = vpack.c.bf16 %v1572, %v1568
      %v1887 = vpack.c.bf16 %v1574, %v1570
      %v1888 = vpack.c.bf16 %v1582, %v1578
      %v1889 = vpack.c.bf16 %v1584, %v1580
      %v1890 = vpack.c.bf16 %v1592, %v1588
      %v1891 = vpack.c.bf16 %v1594, %v1590
      %v1892 = vpack.c.bf16 %v1602, %v1598
      %v1893 = vpack.c.bf16 %v1604, %v1600
      %v1894 = vpack.c.bf16 %v1612, %v1608
      %v1895 = vpack.c.bf16 %v1614, %v1610
      %v1896 = vpack.c.bf16 %v1622, %v1618
      %v1897 = vpack.c.bf16 %v1624, %v1620
      %v1898 = vpack.c.bf16 %v1632, %v1628
      %v1899 = vpack.c.bf16 %v1634, %v1630
      %v1900 = vpack.c.bf16 %v1642, %v1638
      %v1901 = vpack.c.bf16 %v1644, %v1640
      %v1902 = vpack.c.bf16 %v1652, %v1648
      %v1903 = vpack.c.bf16 %v1654, %v1650
      %v1904 = vpack.c.bf16 %v1662, %v1658
      %v1905 = vpack.c.bf16 %v1664, %v1660
      %v1906 = vpack.c.bf16 %v1672, %v1668
      %v1907 = vpack.c.bf16 %v1674, %v1670
      %v1908 = vpack.c.bf16 %v1682, %v1678
      %v1909 = vpack.c.bf16 %v1684, %v1680
      %v1910 = vpack.c.bf16 %v1692, %v1688
      %v1911 = vpack.c.bf16 %v1694, %v1690
      %v1912 = vpack.c.bf16 %v1702, %v1698
      %v1913 = vpack.c.bf16 %v1704, %v1700
      %v1914 = vpack.c.bf16 %v1712, %v1708
      %v1915 = vpack.c.bf16 %v1714, %v1710
      %v1916 = vpack.c.bf16 %v1722, %v1718
      %v1917 = vpack.c.bf16 %v1724, %v1720
      %v1918 = vpack.c.bf16 %v1732, %v1728
      %v1919 = vpack.c.bf16 %v1734, %v1730
      %v1920 = vpack.c.bf16 %v1742, %v1738
      %v1921 = vpack.c.bf16 %v1744, %v1740
      %v1922 = vpack.c.bf16 %v1752, %v1748
      %v1923 = vpack.c.bf16 %v1754, %v1750
      %v1924 = vpack.c.bf16 %v1762, %v1758
      %v1925 = vpack.c.bf16 %v1764, %v1760
      %v1926 = vpack.c.bf16 %v1772, %v1768
      %v1927 = vpack.c.bf16 %v1774, %v1770
      %v1928 = vpack.c.bf16 %v1782, %v1778
      %v1929 = vpack.c.bf16 %v1784, %v1780
      %v1930 = vpack.c.bf16 %v1792, %v1788
      %v1931 = vpack.c.bf16 %v1794, %v1790
      %v1932 = vpack.c.bf16 %v1802, %v1798
      %v1933 = vpack.c.bf16 %v1804, %v1800
      %v1934 = vpack.c.bf16 %v1812, %v1808
      %v1935 = vpack.c.bf16 %v1814, %v1810
      %v1936 = vpack.c.bf16 %v1822, %v1818
      %v1937 = vpack.c.bf16 %v1824, %v1820
      %v1938 = vpack.c.bf16 %v1832, %v1828
      %v1939 = vpack.c.bf16 %v1834, %v1830
      %v1940 = vpack.c.bf16 %v1842, %v1838
      %v1941 = vpack.c.bf16 %v1844, %v1840
      %v1942 = vpack.c.bf16 %v1852, %v1848
      %v1943 = vpack.c.bf16 %v1854, %v1850
      %v1944 = vpack.c.bf16 %v1862, %v1858
      %v1945 = vpack.c.bf16 %v1864, %v1860
      %v1946 = vpack.c.bf16 %v1872, %v1868
      %v1947 = vpack.c.bf16 %v1874, %v1870
      %v1948 = vpack.c.bf16 %v1882, %v1878
      %v1949 = vpack.c.bf16 %v1884, %v1880
      %v1950 = vld [vmem:[%s4] sm:$0x3]
      %v1953 = vunpack.c.l.s4 1966171168
      %v1954 = vunpack.c.0.s8 %v1953
      %v1955 = vlaneseq
      %v1956 = vshrl.u32 %v1955, 7
      %v1957 = vsub.s32 %v1954, %v1956
      %v1958 = vrot.slane %v1950, %v1957
      %v1959 = vcombine.high %v1958, %v1958
      %v1961 = vunpack.c.l.s4 1966171168
      %v1962 = vunpack.c.0.s8 %v1961
      %v1963 = vlaneseq
      %v1964 = vshrl.u32 %v1963, 7
      %v1965 = vsub.s32 %v1962, %v1964
      %v1966 = vrot.slane %v1958, %v1965
      %v1968 = vunpack.c.l.s4 1966171168
      %v1969 = vunpack.c.0.s8 %v1968
      %v1970 = vlaneseq
      %v1971 = vshrl.u32 %v1970, 7
      %v1972 = vsub.s32 %v1969, %v1971
      %v1973 = vrot.slane %v1959, %v1972
      %v1975 = vpack.i.b16 %v1966, %v1966
      %v1977 = vlaneseq
      %v1978 = vshrl.u32 %v1977, 7
      %v1979 = vsub.s32 0, %v1978
      %v1980 = vrot.slane %v1975, %v1979
      %v1982 = vpack.i.b16 %v1973, %v1973
      %v1984 = vlaneseq
      %v1985 = vshrl.u32 %v1984, 7
      %v1986 = vsub.s32 0, %v1985
      %v1987 = vrot.slane %v1982, %v1986
      %v1988 = vadd.bf16 %v1886, %v1980
      %v1989 = vadd.bf16 %v1887, %v1987
      %v1990 = vadd.bf16 %v1888, %v1980
      %v1991 = vadd.bf16 %v1889, %v1987
      %v1992 = vadd.bf16 %v1890, %v1980
      %v1993 = vadd.bf16 %v1891, %v1987
      %v1994 = vadd.bf16 %v1892, %v1980
      %v1995 = vadd.bf16 %v1893, %v1987
      %v1996 = vadd.bf16 %v1894, %v1980
      %v1997 = vadd.bf16 %v1895, %v1987
      %v1998 = vadd.bf16 %v1896, %v1980
      %v1999 = vadd.bf16 %v1897, %v1987
      %v2000 = vadd.bf16 %v1898, %v1980
      %v2001 = vadd.bf16 %v1899, %v1987
      %v2002 = vadd.bf16 %v1900, %v1980
      %v2003 = vadd.bf16 %v1901, %v1987
      %v2004 = vadd.bf16 %v1902, %v1980
      %v2005 = vadd.bf16 %v1903, %v1987
      %v2006 = vadd.bf16 %v1904, %v1980
      %v2007 = vadd.bf16 %v1905, %v1987
      %v2008 = vadd.bf16 %v1906, %v1980
      %v2009 = vadd.bf16 %v1907, %v1987
      %v2010 = vadd.bf16 %v1908, %v1980
      %v2011 = vadd.bf16 %v1909, %v1987
      %v2012 = vadd.bf16 %v1910, %v1980
      %v2013 = vadd.bf16 %v1911, %v1987
      %v2014 = vadd.bf16 %v1912, %v1980
      %v2015 = vadd.bf16 %v1913, %v1987
      %v2016 = vadd.bf16 %v1914, %v1980
      %v2017 = vadd.bf16 %v1915, %v1987
      %v2018 = vadd.bf16 %v1916, %v1980
      %v2019 = vadd.bf16 %v1917, %v1987
      %v2020 = vadd.bf16 %v1918, %v1980
      %v2021 = vadd.bf16 %v1919, %v1987
      %v2022 = vadd.bf16 %v1920, %v1980
      %v2023 = vadd.bf16 %v1921, %v1987
      %v2024 = vadd.bf16 %v1922, %v1980
      %v2025 = vadd.bf16 %v1923, %v1987
      %v2026 = vadd.bf16 %v1924, %v1980
      %v2027 = vadd.bf16 %v1925, %v1987
      %v2028 = vadd.bf16 %v1926, %v1980
      %v2029 = vadd.bf16 %v1927, %v1987
      %v2030 = vadd.bf16 %v1928, %v1980
      %v2031 = vadd.bf16 %v1929, %v1987
      %v2032 = vadd.bf16 %v1930, %v1980
      %v2033 = vadd.bf16 %v1931, %v1987
      %v2034 = vadd.bf16 %v1932, %v1980
      %v2035 = vadd.bf16 %v1933, %v1987
      %v2036 = vadd.bf16 %v1934, %v1980
      %v2037 = vadd.bf16 %v1935, %v1987
      %v2038 = vadd.bf16 %v1936, %v1980
      %v2039 = vadd.bf16 %v1937, %v1987
      %v2040 = vadd.bf16 %v1938, %v1980
      %v2041 = vadd.bf16 %v1939, %v1987
      %v2042 = vadd.bf16 %v1940, %v1980
      %v2043 = vadd.bf16 %v1941, %v1987
      %v2044 = vadd.bf16 %v1942, %v1980
      %v2045 = vadd.bf16 %v1943, %v1987
      %v2046 = vadd.bf16 %v1944, %v1980
      %v2047 = vadd.bf16 %v1945, %v1987
      %v2048 = vadd.bf16 %v1946, %v1980
      %v2049 = vadd.bf16 %v1947, %v1987
      %v2050 = vadd.bf16 %v1948, %v1980
      %v2051 = vadd.bf16 %v1949, %v1987
      %v2052 = vmax.bf16 %v1988, 0
      %v2053 = vmax.bf16 %v1989, 0
      %v2054 = vmax.bf16 %v1990, 0
      %v2055 = vmax.bf16 %v1991, 0
      %v2056 = vmax.bf16 %v1992, 0
      %v2057 = vmax.bf16 %v1993, 0
      %v2058 = vmax.bf16 %v1994, 0
      %v2059 = vmax.bf16 %v1995, 0
      %v2060 = vmax.bf16 %v1996, 0
      %v2061 = vmax.bf16 %v1997, 0
      %v2062 = vmax.bf16 %v1998, 0
      %v2063 = vmax.bf16 %v1999, 0
      %v2064 = vmax.bf16 %v2000, 0
      %v2065 = vmax.bf16 %v2001, 0
      %v2066 = vmax.bf16 %v2002, 0
      %v2067 = vmax.bf16 %v2003, 0
      %v2068 = vmax.bf16 %v2004, 0
      %v2069 = vmax.bf16 %v2005, 0
      %v2070 = vmax.bf16 %v2006, 0
      %v2071 = vmax.bf16 %v2007, 0
      %v2072 = vmax.bf16 %v2008, 0
      %v2073 = vmax.bf16 %v2009, 0
      %v2074 = vmax.bf16 %v2010, 0
      %v2075 = vmax.bf16 %v2011, 0
      %v2076 = vmax.bf16 %v2012, 0
      %v2077 = vmax.bf16 %v2013, 0
      %v2078 = vmax.bf16 %v2014, 0
      %v2079 = vmax.bf16 %v2015, 0
      %v2080 = vmax.bf16 %v2016, 0
      %v2081 = vmax.bf16 %v2017, 0
      %v2082 = vmax.bf16 %v2018, 0
      %v2083 = vmax.bf16 %v2019, 0
      %v2084 = vmax.bf16 %v2020, 0
      %v2085 = vmax.bf16 %v2021, 0
      %v2086 = vmax.bf16 %v2022, 0
      %v2087 = vmax.bf16 %v2023, 0
      %v2088 = vmax.bf16 %v2024, 0
      %v2089 = vmax.bf16 %v2025, 0
      %v2090 = vmax.bf16 %v2026, 0
      %v2091 = vmax.bf16 %v2027, 0
      %v2092 = vmax.bf16 %v2028, 0
      %v2093 = vmax.bf16 %v2029, 0
      %v2094 = vmax.bf16 %v2030, 0
      %v2095 = vmax.bf16 %v2031, 0
      %v2096 = vmax.bf16 %v2032, 0
      %v2097 = vmax.bf16 %v2033, 0
      %v2098 = vmax.bf16 %v2034, 0
      %v2099 = vmax.bf16 %v2035, 0
      %v2100 = vmax.bf16 %v2036, 0
      %v2101 = vmax.bf16 %v2037, 0
      %v2102 = vmax.bf16 %v2038, 0
      %v2103 = vmax.bf16 %v2039, 0
      %v2104 = vmax.bf16 %v2040, 0
      %v2105 = vmax.bf16 %v2041, 0
      %v2106 = vmax.bf16 %v2042, 0
      %v2107 = vmax.bf16 %v2043, 0
      %v2108 = vmax.bf16 %v2044, 0
      %v2109 = vmax.bf16 %v2045, 0
      %v2110 = vmax.bf16 %v2046, 0
      %v2111 = vmax.bf16 %v2047, 0
      %v2112 = vmax.bf16 %v2048, 0
      %v2113 = vmax.bf16 %v2049, 0
      %v2114 = vmax.bf16 %v2050, 0
      %v2115 = vmax.bf16 %v2051, 0
      %v2116 = vld [vmem:[%s5] sm:$0xff]
      %v2117 = vld [vmem:[%s5 + $0x8] sm:$0xff]
      %v2118 = vld [vmem:[%s5 + $0x10] sm:$0xff]
      %v2119 = vld [vmem:[%s5 + $0x18] sm:$0xff]
      %v2120 = vld [vmem:[%s5 + $0x20] sm:$0xff]
      %v2121 = vld [vmem:[%s5 + $0x28] sm:$0xff]
      %v2122 = vld [vmem:[%s5 + $0x30] sm:$0xff]
      %v2123 = vld [vmem:[%s5 + $0x38] sm:$0xff]
      %v2124 = vld [vmem:[%s5 + $0x40] sm:$0xff]
      %v2125 = vld [vmem:[%s5 + $0x48] sm:$0xff]
      %v2126 = vld [vmem:[%s5 + $0x50] sm:$0xff]
      %v2127 = vld [vmem:[%s5 + $0x58] sm:$0xff]
      %v2128 = vld [vmem:[%s5 + $0x60] sm:$0xff]
      %v2129 = vld [vmem:[%s5 + $0x68] sm:$0xff]
      %v2130 = vld [vmem:[%s5 + $0x70] sm:$0xff]
      %v2131 = vld [vmem:[%s5 + $0x78] sm:$0xff]
      %v2132 = vld [vmem:[%s5 + $0x80] sm:$0xff]
      %v2133 = vld [vmem:[%s5 + $0x88] sm:$0xff]
      %v2134 = vld [vmem:[%s5 + $0x90] sm:$0xff]
      %v2135 = vld [vmem:[%s5 + $0x98] sm:$0xff]
      %v2136 = vld [vmem:[%s5 + $0xa0] sm:$0xff]
      %v2137 = vld [vmem:[%s5 + $0xa8] sm:$0xff]
      %v2138 = vld [vmem:[%s5 + $0xb0] sm:$0xff]
      %v2139 = vld [vmem:[%s5 + $0xb8] sm:$0xff]
      %v2140 = vld [vmem:[%s5 + $0xc0] sm:$0xff]
      %v2141 = vld [vmem:[%s5 + $0xc8] sm:$0xff]
      %v2142 = vld [vmem:[%s5 + $0xd0] sm:$0xff]
      %v2143 = vld [vmem:[%s5 + $0xd8] sm:$0xff]
      %v2144 = vld [vmem:[%s5 + $0xe0] sm:$0xff]
      %v2145 = vld [vmem:[%s5 + $0xe8] sm:$0xff]
      %v2146 = vld [vmem:[%s5 + $0xf0] sm:$0xff]
      %v2147 = vld [vmem:[%s5 + $0xf8] sm:$0xff]
      %v2180 = vunpack.c.l.b16 %v2116
      %v2181 = vunpack.c.h.b16 %v2116
      %v2182 = vunpack.c.l.b16 %v2117
      %v2183 = vunpack.c.h.b16 %v2117
      %v2184 = vunpack.c.l.b16 %v2118
      %v2185 = vunpack.c.h.b16 %v2118
      %v2186 = vunpack.c.l.b16 %v2119
      %v2187 = vunpack.c.h.b16 %v2119
      %v2188 = vunpack.c.l.b16 %v2120
      %v2189 = vunpack.c.h.b16 %v2120
      %v2190 = vunpack.c.l.b16 %v2121
      %v2191 = vunpack.c.h.b16 %v2121
      %v2192 = vunpack.c.l.b16 %v2122
      %v2193 = vunpack.c.h.b16 %v2122
      %v2194 = vunpack.c.l.b16 %v2123
      %v2195 = vunpack.c.h.b16 %v2123
      %v2196 = vunpack.c.l.b16 %v2124
      %v2197 = vunpack.c.h.b16 %v2124
      %v2198 = vunpack.c.l.b16 %v2125
      %v2199 = vunpack.c.h.b16 %v2125
      %v2200 = vunpack.c.l.b16 %v2126
      %v2201 = vunpack.c.h.b16 %v2126
      %v2202 = vunpack.c.l.b16 %v2127
      %v2203 = vunpack.c.h.b16 %v2127
      %v2204 = vunpack.c.l.b16 %v2128
      %v2205 = vunpack.c.h.b16 %v2128
      %v2206 = vunpack.c.l.b16 %v2129
      %v2207 = vunpack.c.h.b16 %v2129
      %v2208 = vunpack.c.l.b16 %v2130
      %v2209 = vunpack.c.h.b16 %v2130
      %v2210 = vunpack.c.l.b16 %v2131
      %v2211 = vunpack.c.h.b16 %v2131
      %v2212 = vunpack.c.l.b16 %v2132
      %v2213 = vunpack.c.h.b16 %v2132
      %v2214 = vunpack.c.l.b16 %v2133
      %v2215 = vunpack.c.h.b16 %v2133
      %v2216 = vunpack.c.l.b16 %v2134
      %v2217 = vunpack.c.h.b16 %v2134
      %v2218 = vunpack.c.l.b16 %v2135
      %v2219 = vunpack.c.h.b16 %v2135
      %v2220 = vunpack.c.l.b16 %v2136
      %v2221 = vunpack.c.h.b16 %v2136
      %v2222 = vunpack.c.l.b16 %v2137
      %v2223 = vunpack.c.h.b16 %v2137
      %v2224 = vunpack.c.l.b16 %v2138
      %v2225 = vunpack.c.h.b16 %v2138
      %v2226 = vunpack.c.l.b16 %v2139
      %v2227 = vunpack.c.h.b16 %v2139
      %v2228 = vunpack.c.l.b16 %v2140
      %v2229 = vunpack.c.h.b16 %v2140
      %v2230 = vunpack.c.l.b16 %v2141
      %v2231 = vunpack.c.h.b16 %v2141
      %v2232 = vunpack.c.l.b16 %v2142
      %v2233 = vunpack.c.h.b16 %v2142
      %v2234 = vunpack.c.l.b16 %v2143
      %v2235 = vunpack.c.h.b16 %v2143
      %v2236 = vunpack.c.l.b16 %v2144
      %v2237 = vunpack.c.h.b16 %v2144
      %v2238 = vunpack.c.l.b16 %v2145
      %v2239 = vunpack.c.h.b16 %v2145
      %v2240 = vunpack.c.l.b16 %v2146
      %v2241 = vunpack.c.h.b16 %v2146
      %v2242 = vunpack.c.l.b16 %v2147
      %v2243 = vunpack.c.h.b16 %v2147
      %v2244 = vpack.c.b16 %v2182, %v2180
      %v2245 = vpack.c.b16 %v2183, %v2181
      %v2246 = vpack.c.b16 %v2186, %v2184
      %v2247 = vpack.c.b16 %v2187, %v2185
      %v2248 = vpack.c.b16 %v2190, %v2188
      %v2249 = vpack.c.b16 %v2191, %v2189
      %v2250 = vpack.c.b16 %v2194, %v2192
      %v2251 = vpack.c.b16 %v2195, %v2193
      %v2252 = vpack.c.b16 %v2198, %v2196
      %v2253 = vpack.c.b16 %v2199, %v2197
      %v2254 = vpack.c.b16 %v2202, %v2200
      %v2255 = vpack.c.b16 %v2203, %v2201
      %v2256 = vpack.c.b16 %v2206, %v2204
      %v2257 = vpack.c.b16 %v2207, %v2205
      %v2258 = vpack.c.b16 %v2210, %v2208
      %v2259 = vpack.c.b16 %v2211, %v2209
      %v2260 = vpack.c.b16 %v2214, %v2212
      %v2261 = vpack.c.b16 %v2215, %v2213
      %v2262 = vpack.c.b16 %v2218, %v2216
      %v2263 = vpack.c.b16 %v2219, %v2217
      %v2264 = vpack.c.b16 %v2222, %v2220
      %v2265 = vpack.c.b16 %v2223, %v2221
      %v2266 = vpack.c.b16 %v2226, %v2224
      %v2267 = vpack.c.b16 %v2227, %v2225
      %v2268 = vpack.c.b16 %v2230, %v2228
      %v2269 = vpack.c.b16 %v2231, %v2229
      %v2270 = vpack.c.b16 %v2234, %v2232
      %v2271 = vpack.c.b16 %v2235, %v2233
      %v2272 = vpack.c.b16 %v2238, %v2236
      %v2273 = vpack.c.b16 %v2239, %v2237
      %v2274 = vpack.c.b16 %v2242, %v2240
      %v2275 = vpack.c.b16 %v2243, %v2241
      %2308 = vmatprep.subr.bf16.mxu0 %v2245
      %2309 = vmatpush1.bf16.msra.mxu0 %v2244
      %2310 = vmatprep.subr.bf16.mxu0 %v2247
      %2311 = vmatpush1.bf16.msra.mxu0 %v2246
      %2312 = vmatprep.subr.bf16.mxu0 %v2249
      %2313 = vmatpush1.bf16.msra.mxu0 %v2248
      %2314 = vmatprep.subr.bf16.mxu0 %v2251
      %2315 = vmatpush1.bf16.msra.mxu0 %v2250
      %2316 = vmatprep.subr.bf16.mxu0 %v2253
      %2317 = vmatpush1.bf16.msra.mxu0 %v2252
      %2318 = vmatprep.subr.bf16.mxu0 %v2255
      %2319 = vmatpush1.bf16.msra.mxu0 %v2254
      %2320 = vmatprep.subr.bf16.mxu0 %v2257
      %2321 = vmatpush1.bf16.msra.mxu0 %v2256
      %2322 = vmatprep.subr.bf16.mxu0 %v2259
      %2323 = vmatpush1.bf16.msra.mxu0 %v2258
      %2324 = vmatprep.subr.bf16.mxu0 %v2261
      %2325 = vmatpush1.bf16.msra.mxu0 %v2260
      %2326 = vmatprep.subr.bf16.mxu0 %v2263
      %2327 = vmatpush1.bf16.msra.mxu0 %v2262
      %2328 = vmatprep.subr.bf16.mxu0 %v2265
      %2329 = vmatpush1.bf16.msra.mxu0 %v2264
      %2330 = vmatprep.subr.bf16.mxu0 %v2267
      %2331 = vmatpush1.bf16.msra.mxu0 %v2266
      %2332 = vmatprep.subr.bf16.mxu0 %v2269
      %2333 = vmatpush1.bf16.msra.mxu0 %v2268
      %2334 = vmatprep.subr.bf16.mxu0 %v2271
      %2335 = vmatpush1.bf16.msra.mxu0 %v2270
      %2336 = vmatprep.subr.bf16.mxu0 %v2273
      %2337 = vmatpush1.bf16.msra.mxu0 %v2272
      %2338 = vmatprep.subr.bf16.mxu0 %v2275
      %2339 = vmatpush1.bf16.msra.mxu0 %v2274
      %2340 = vmatprep.mubr.bf16.mxu0 %v2053
      %2341 = vmatmul.mubr.bf16.gmra.mrb[0].mxu0 %v2052
      %v2342 = vpop.f32.mrb[0].mxu0
      %v2343 = vadd.f32 0.0, %v2342
      %v2344 = vpop.f32.mrb[0].mxu0
      %v2345 = vadd.f32 0.0, %v2344
      %v2346 = vpop.f32.mrb[0].mxu0
      %v2347 = vadd.f32 0.0, %v2346
      %v2348 = vpop.f32.mrb[0].mxu0
      %v2349 = vadd.f32 0.0, %v2348
      %2350 = vmatprep.mubr.bf16.mxu0 %v2055
      %2351 = vmatmul.mubr.bf16.gmra.mrb[0].mxu0 %v2054
      %v2352 = vpop.f32.mrb[0].mxu0
      %v2353 = vadd.f32 0.0, %v2352
      %v2354 = vpop.f32.mrb[0].mxu0
      %v2355 = vadd.f32 0.0, %v2354
      %v2356 = vpop.f32.mrb[0].mxu0
      %v2357 = vadd.f32 0.0, %v2356
      %v2358 = vpop.f32.mrb[0].mxu0
      %v2359 = vadd.f32 0.0, %v2358
      %2360 = vmatprep.mubr.bf16.mxu0 %v2057
      %2361 = vmatmul.mubr.bf16.gmra.mrb[0].mxu0 %v2056
      %v2362 = vpop.f32.mrb[0].mxu0
      %v2363 = vadd.f32 0.0, %v2362
      %v2364 = vpop.f32.mrb[0].mxu0
      %v2365 = vadd.f32 0.0, %v2364
      %v2366 = vpop.f32.mrb[0].mxu0
      %v2367 = vadd.f32 0.0, %v2366
      %v2368 = vpop.f32.mrb[0].mxu0
      %v2369 = vadd.f32 0.0, %v2368
      %2370 = vmatprep.mubr.bf16.mxu0 %v2059
      %2371 = vmatmul.mubr.bf16.gmra.mrb[0].mxu0 %v2058
      %v2372 = vpop.f32.mrb[0].mxu0
      %v2373 = vadd.f32 0.0, %v2372
      %v2374 = vpop.f32.mrb[0].mxu0
      %v2375 = vadd.f32 0.0, %v2374
      %v2376 = vpop.f32.mrb[0].mxu0
      %v2377 = vadd.f32 0.0, %v2376
      %v2378 = vpop.f32.mrb[0].mxu0
      %v2379 = vadd.f32 0.0, %v2378
      %2380 = vmatprep.mubr.bf16.mxu0 %v2061
      %2381 = vmatmul.mubr.bf16.gmra.mrb[0].mxu0 %v2060
      %v2382 = vpop.f32.mrb[0].mxu0
      %v2383 = vadd.f32 0.0, %v2382
      %v2384 = vpop.f32.mrb[0].mxu0
      %v2385 = vadd.f32 0.0, %v2384
      %v2386 = vpop.f32.mrb[0].mxu0
      %v2387 = vadd.f32 0.0, %v2386
      %v2388 = vpop.f32.mrb[0].mxu0
      %v2389 = vadd.f32 0.0, %v2388
      %2390 = vmatprep.mubr.bf16.mxu0 %v2063
      %2391 = vmatmul.mubr.bf16.gmra.mrb[0].mxu0 %v2062
      %v2392 = vpop.f32.mrb[0].mxu0
      %v2393 = vadd.f32 0.0, %v2392
      %v2394 = vpop.f32.mrb[0].mxu0
      %v2395 = vadd.f32 0.0, %v2394
      %v2396 = vpop.f32.mrb[0].mxu0
      %v2397 = vadd.f32 0.0, %v2396
      %v2398 = vpop.f32.mrb[0].mxu0
      %v2399 = vadd.f32 0.0, %v2398
      %2400 = vmatprep.mubr.bf16.mxu0 %v2065
      %2401 = vmatmul.mubr.bf16.gmra.mrb[0].mxu0 %v2064
      %v2402 = vpop.f32.mrb[0].mxu0
      %v2403 = vadd.f32 0.0, %v2402
      %v2404 = vpop.f32.mrb[0].mxu0
      %v2405 = vadd.f32 0.0, %v2404
      %v2406 = vpop.f32.mrb[0].mxu0
      %v2407 = vadd.f32 0.0, %v2406
      %v2408 = vpop.f32.mrb[0].mxu0
      %v2409 = vadd.f32 0.0, %v2408
      %2410 = vmatprep.mubr.bf16.mxu0 %v2067
      %2411 = vmatmul.mubr.bf16.gmra.mrb[0].mxu0 %v2066
      %v2412 = vpop.f32.mrb[0].mxu0
      %v2413 = vadd.f32 0.0, %v2412
      %v2414 = vpop.f32.mrb[0].mxu0
      %v2415 = vadd.f32 0.0, %v2414
      %v2416 = vpop.f32.mrb[0].mxu0
      %v2417 = vadd.f32 0.0, %v2416
      %v2418 = vpop.f32.mrb[0].mxu0
      %v2419 = vadd.f32 0.0, %v2418
      %2420 = vmatprep.mubr.bf16.mxu0 %v2069
      %2421 = vmatmul.mubr.bf16.gmra.mrb[0].mxu0 %v2068
      %v2422 = vpop.f32.mrb[0].mxu0
      %v2423 = vadd.f32 0.0, %v2422
      %v2424 = vpop.f32.mrb[0].mxu0
      %v2425 = vadd.f32 0.0, %v2424
      %v2426 = vpop.f32.mrb[0].mxu0
      %v2427 = vadd.f32 0.0, %v2426
      %v2428 = vpop.f32.mrb[0].mxu0
      %v2429 = vadd.f32 0.0, %v2428
      %2430 = vmatprep.mubr.bf16.mxu0 %v2071
      %2431 = vmatmul.mubr.bf16.gmra.mrb[0].mxu0 %v2070
      %v2432 = vpop.f32.mrb[0].mxu0
      %v2433 = vadd.f32 0.0, %v2432
      %v2434 = vpop.f32.mrb[0].mxu0
      %v2435 = vadd.f32 0.0, %v2434
      %v2436 = vpop.f32.mrb[0].mxu0
      %v2437 = vadd.f32 0.0, %v2436
      %v2438 = vpop.f32.mrb[0].mxu0
      %v2439 = vadd.f32 0.0, %v2438
      %2440 = vmatprep.mubr.bf16.mxu0 %v2073
      %2441 = vmatmul.mubr.bf16.gmra.mrb[0].mxu0 %v2072
      %v2442 = vpop.f32.mrb[0].mxu0
      %v2443 = vadd.f32 0.0, %v2442
      %v2444 = vpop.f32.mrb[0].mxu0
      %v2445 = vadd.f32 0.0, %v2444
      %v2446 = vpop.f32.mrb[0].mxu0
      %v2447 = vadd.f32 0.0, %v2446
      %v2448 = vpop.f32.mrb[0].mxu0
      %v2449 = vadd.f32 0.0, %v2448
      %2450 = vmatprep.mubr.bf16.mxu0 %v2075
      %2451 = vmatmul.mubr.bf16.gmra.mrb[0].mxu0 %v2074
      %v2452 = vpop.f32.mrb[0].mxu0
      %v2453 = vadd.f32 0.0, %v2452
      %v2454 = vpop.f32.mrb[0].mxu0
      %v2455 = vadd.f32 0.0, %v2454
      %v2456 = vpop.f32.mrb[0].mxu0
      %v2457 = vadd.f32 0.0, %v2456
      %v2458 = vpop.f32.mrb[0].mxu0
      %v2459 = vadd.f32 0.0, %v2458
      %2460 = vmatprep.mubr.bf16.mxu0 %v2077
      %2461 = vmatmul.mubr.bf16.gmra.mrb[0].mxu0 %v2076
      %v2462 = vpop.f32.mrb[0].mxu0
      %v2463 = vadd.f32 0.0, %v2462
      %v2464 = vpop.f32.mrb[0].mxu0
      %v2465 = vadd.f32 0.0, %v2464
      %v2466 = vpop.f32.mrb[0].mxu0
      %v2467 = vadd.f32 0.0, %v2466
      %v2468 = vpop.f32.mrb[0].mxu0
      %v2469 = vadd.f32 0.0, %v2468
      %2470 = vmatprep.mubr.bf16.mxu0 %v2079
      %2471 = vmatmul.mubr.bf16.gmra.mrb[0].mxu0 %v2078
      %v2472 = vpop.f32.mrb[0].mxu0
      %v2473 = vadd.f32 0.0, %v2472
      %v2474 = vpop.f32.mrb[0].mxu0
      %v2475 = vadd.f32 0.0, %v2474
      %v2476 = vpop.f32.mrb[0].mxu0
      %v2477 = vadd.f32 0.0, %v2476
      %v2478 = vpop.f32.mrb[0].mxu0
      %v2479 = vadd.f32 0.0, %v2478
      %2480 = vmatprep.mubr.bf16.mxu0 %v2081
      %2481 = vmatmul.mubr.bf16.gmra.mrb[0].mxu0 %v2080
      %v2482 = vpop.f32.mrb[0].mxu0
      %v2483 = vadd.f32 0.0, %v2482
      %v2484 = vpop.f32.mrb[0].mxu0
      %v2485 = vadd.f32 0.0, %v2484
      %v2486 = vpop.f32.mrb[0].mxu0
      %v2487 = vadd.f32 0.0, %v2486
      %v2488 = vpop.f32.mrb[0].mxu0
      %v2489 = vadd.f32 0.0, %v2488
      %2490 = vmatprep.mubr.bf16.mxu0 %v2083
      %2491 = vmatmul.mubr.bf16.gmra.mrb[0].mxu0 %v2082
      %v2492 = vpop.f32.mrb[0].mxu0
      %v2493 = vadd.f32 0.0, %v2492
      %v2494 = vpop.f32.mrb[0].mxu0
      %v2495 = vadd.f32 0.0, %v2494
      %v2496 = vpop.f32.mrb[0].mxu0
      %v2497 = vadd.f32 0.0, %v2496
      %v2498 = vpop.f32.mrb[0].mxu0
      %v2499 = vadd.f32 0.0, %v2498
      %2500 = vmatprep.mubr.bf16.mxu0 %v2085
      %2501 = vmatmul.mubr.bf16.gmra.mrb[0].mxu0 %v2084
      %v2502 = vpop.f32.mrb[0].mxu0
      %v2503 = vadd.f32 0.0, %v2502
      %v2504 = vpop.f32.mrb[0].mxu0
      %v2505 = vadd.f32 0.0, %v2504
      %v2506 = vpop.f32.mrb[0].mxu0
      %v2507 = vadd.f32 0.0, %v2506
      %v2508 = vpop.f32.mrb[0].mxu0
      %v2509 = vadd.f32 0.0, %v2508
      %2510 = vmatprep.mubr.bf16.mxu0 %v2087
      %2511 = vmatmul.mubr.bf16.gmra.mrb[0].mxu0 %v2086
      %v2512 = vpop.f32.mrb[0].mxu0
      %v2513 = vadd.f32 0.0, %v2512
      %v2514 = vpop.f32.mrb[0].mxu0
      %v2515 = vadd.f32 0.0, %v2514
      %v2516 = vpop.f32.mrb[0].mxu0
      %v2517 = vadd.f32 0.0, %v2516
      %v2518 = vpop.f32.mrb[0].mxu0
      %v2519 = vadd.f32 0.0, %v2518
      %2520 = vmatprep.mubr.bf16.mxu0 %v2089
      %2521 = vmatmul.mubr.bf16.gmra.mrb[0].mxu0 %v2088
      %v2522 = vpop.f32.mrb[0].mxu0
      %v2523 = vadd.f32 0.0, %v2522
      %v2524 = vpop.f32.mrb[0].mxu0
      %v2525 = vadd.f32 0.0, %v2524
      %v2526 = vpop.f32.mrb[0].mxu0
      %v2527 = vadd.f32 0.0, %v2526
      %v2528 = vpop.f32.mrb[0].mxu0
      %v2529 = vadd.f32 0.0, %v2528
      %2530 = vmatprep.mubr.bf16.mxu0 %v2091
      %2531 = vmatmul.mubr.bf16.gmra.mrb[0].mxu0 %v2090
      %v2532 = vpop.f32.mrb[0].mxu0
      %v2533 = vadd.f32 0.0, %v2532
      %v2534 = vpop.f32.mrb[0].mxu0
      %v2535 = vadd.f32 0.0, %v2534
      %v2536 = vpop.f32.mrb[0].mxu0
      %v2537 = vadd.f32 0.0, %v2536
      %v2538 = vpop.f32.mrb[0].mxu0
      %v2539 = vadd.f32 0.0, %v2538
      %2540 = vmatprep.mubr.bf16.mxu0 %v2093
      %2541 = vmatmul.mubr.bf16.gmra.mrb[0].mxu0 %v2092
      %v2542 = vpop.f32.mrb[0].mxu0
      %v2543 = vadd.f32 0.0, %v2542
      %v2544 = vpop.f32.mrb[0].mxu0
      %v2545 = vadd.f32 0.0, %v2544
      %v2546 = vpop.f32.mrb[0].mxu0
      %v2547 = vadd.f32 0.0, %v2546
      %v2548 = vpop.f32.mrb[0].mxu0
      %v2549 = vadd.f32 0.0, %v2548
      %2550 = vmatprep.mubr.bf16.mxu0 %v2095
      %2551 = vmatmul.mubr.bf16.gmra.mrb[0].mxu0 %v2094
      %v2552 = vpop.f32.mrb[0].mxu0
      %v2553 = vadd.f32 0.0, %v2552
      %v2554 = vpop.f32.mrb[0].mxu0
      %v2555 = vadd.f32 0.0, %v2554
      %v2556 = vpop.f32.mrb[0].mxu0
      %v2557 = vadd.f32 0.0, %v2556
      %v2558 = vpop.f32.mrb[0].mxu0
      %v2559 = vadd.f32 0.0, %v2558
      %2560 = vmatprep.mubr.bf16.mxu0 %v2097
      %2561 = vmatmul.mubr.bf16.gmra.mrb[0].mxu0 %v2096
      %v2562 = vpop.f32.mrb[0].mxu0
      %v2563 = vadd.f32 0.0, %v2562
      %v2564 = vpop.f32.mrb[0].mxu0
      %v2565 = vadd.f32 0.0, %v2564
      %v2566 = vpop.f32.mrb[0].mxu0
      %v2567 = vadd.f32 0.0, %v2566
      %v2568 = vpop.f32.mrb[0].mxu0
      %v2569 = vadd.f32 0.0, %v2568
      %2570 = vmatprep.mubr.bf16.mxu0 %v2099
      %2571 = vmatmul.mubr.bf16.gmra.mrb[0].mxu0 %v2098
      %v2572 = vpop.f32.mrb[0].mxu0
      %v2573 = vadd.f32 0.0, %v2572
      %v2574 = vpop.f32.mrb[0].mxu0
      %v2575 = vadd.f32 0.0, %v2574
      %v2576 = vpop.f32.mrb[0].mxu0
      %v2577 = vadd.f32 0.0, %v2576
      %v2578 = vpop.f32.mrb[0].mxu0
      %v2579 = vadd.f32 0.0, %v2578
      %2580 = vmatprep.mubr.bf16.mxu0 %v2101
      %2581 = vmatmul.mubr.bf16.gmra.mrb[0].mxu0 %v2100
      %v2582 = vpop.f32.mrb[0].mxu0
      %v2583 = vadd.f32 0.0, %v2582
      %v2584 = vpop.f32.mrb[0].mxu0
      %v2585 = vadd.f32 0.0, %v2584
      %v2586 = vpop.f32.mrb[0].mxu0
      %v2587 = vadd.f32 0.0, %v2586
      %v2588 = vpop.f32.mrb[0].mxu0
      %v2589 = vadd.f32 0.0, %v2588
      %2590 = vmatprep.mubr.bf16.mxu0 %v2103
      %2591 = vmatmul.mubr.bf16.gmra.mrb[0].mxu0 %v2102
      %v2592 = vpop.f32.mrb[0].mxu0
      %v2593 = vadd.f32 0.0, %v2592
      %v2594 = vpop.f32.mrb[0].mxu0
      %v2595 = vadd.f32 0.0, %v2594
      %v2596 = vpop.f32.mrb[0].mxu0
      %v2597 = vadd.f32 0.0, %v2596
      %v2598 = vpop.f32.mrb[0].mxu0
      %v2599 = vadd.f32 0.0, %v2598
      %2600 = vmatprep.mubr.bf16.mxu0 %v2105
      %2601 = vmatmul.mubr.bf16.gmra.mrb[0].mxu0 %v2104
      %v2602 = vpop.f32.mrb[0].mxu0
      %v2603 = vadd.f32 0.0, %v2602
      %v2604 = vpop.f32.mrb[0].mxu0
      %v2605 = vadd.f32 0.0, %v2604
      %v2606 = vpop.f32.mrb[0].mxu0
      %v2607 = vadd.f32 0.0, %v2606
      %v2608 = vpop.f32.mrb[0].mxu0
      %v2609 = vadd.f32 0.0, %v2608
      %2610 = vmatprep.mubr.bf16.mxu0 %v2107
      %2611 = vmatmul.mubr.bf16.gmra.mrb[0].mxu0 %v2106
      %v2612 = vpop.f32.mrb[0].mxu0
      %v2613 = vadd.f32 0.0, %v2612
      %v2614 = vpop.f32.mrb[0].mxu0
      %v2615 = vadd.f32 0.0, %v2614
      %v2616 = vpop.f32.mrb[0].mxu0
      %v2617 = vadd.f32 0.0, %v2616
      %v2618 = vpop.f32.mrb[0].mxu0
      %v2619 = vadd.f32 0.0, %v2618
      %2620 = vmatprep.mubr.bf16.mxu0 %v2109
      %2621 = vmatmul.mubr.bf16.gmra.mrb[0].mxu0 %v2108
      %v2622 = vpop.f32.mrb[0].mxu0
      %v2623 = vadd.f32 0.0, %v2622
      %v2624 = vpop.f32.mrb[0].mxu0
      %v2625 = vadd.f32 0.0, %v2624
      %v2626 = vpop.f32.mrb[0].mxu0
      %v2627 = vadd.f32 0.0, %v2626
      %v2628 = vpop.f32.mrb[0].mxu0
      %v2629 = vadd.f32 0.0, %v2628
      %2630 = vmatprep.mubr.bf16.mxu0 %v2111
      %2631 = vmatmul.mubr.bf16.gmra.mrb[0].mxu0 %v2110
      %v2632 = vpop.f32.mrb[0].mxu0
      %v2633 = vadd.f32 0.0, %v2632
      %v2634 = vpop.f32.mrb[0].mxu0
      %v2635 = vadd.f32 0.0, %v2634
      %v2636 = vpop.f32.mrb[0].mxu0
      %v2637 = vadd.f32 0.0, %v2636
      %v2638 = vpop.f32.mrb[0].mxu0
      %v2639 = vadd.f32 0.0, %v2638
      %2640 = vmatprep.mubr.bf16.mxu0 %v2113
      %2641 = vmatmul.mubr.bf16.gmra.mrb[0].mxu0 %v2112
      %v2642 = vpop.f32.mrb[0].mxu0
      %v2643 = vadd.f32 0.0, %v2642
      %v2644 = vpop.f32.mrb[0].mxu0
      %v2645 = vadd.f32 0.0, %v2644
      %v2646 = vpop.f32.mrb[0].mxu0
      %v2647 = vadd.f32 0.0, %v2646
      %v2648 = vpop.f32.mrb[0].mxu0
      %v2649 = vadd.f32 0.0, %v2648
      %2650 = vmatprep.mubr.bf16.mxu0 %v2115
      %2651 = vmatmul.mubr.bf16.gmra.mrb[0].mxu0 %v2114
      %v2652 = vpop.f32.mrb[0].mxu0
      %v2653 = vadd.f32 0.0, %v2652
      %v2654 = vpop.f32.mrb[0].mxu0
      %v2655 = vadd.f32 0.0, %v2654
      %v2656 = vpop.f32.mrb[0].mxu0
      %v2657 = vadd.f32 0.0, %v2656
      %v2658 = vpop.f32.mrb[0].mxu0
      %v2659 = vadd.f32 0.0, %v2658
      %2660 = vdwg.mxu0
      %v2661 = vpack.c.bf16 %v2347, %v2343
      %v2662 = vpack.c.bf16 %v2349, %v2345
      %v2663 = vpack.c.bf16 %v2357, %v2353
      %v2664 = vpack.c.bf16 %v2359, %v2355
      %v2665 = vpack.c.bf16 %v2367, %v2363
      %v2666 = vpack.c.bf16 %v2369, %v2365
      %v2667 = vpack.c.bf16 %v2377, %v2373
      %v2668 = vpack.c.bf16 %v2379, %v2375
      %v2669 = vpack.c.bf16 %v2387, %v2383
      %v2670 = vpack.c.bf16 %v2389, %v2385
      %v2671 = vpack.c.bf16 %v2397, %v2393
      %v2672 = vpack.c.bf16 %v2399, %v2395
      %v2673 = vpack.c.bf16 %v2407, %v2403
      %v2674 = vpack.c.bf16 %v2409, %v2405
      %v2675 = vpack.c.bf16 %v2417, %v2413
      %v2676 = vpack.c.bf16 %v2419, %v2415
      %v2677 = vpack.c.bf16 %v2427, %v2423
      %v2678 = vpack.c.bf16 %v2429, %v2425
      %v2679 = vpack.c.bf16 %v2437, %v2433
      %v2680 = vpack.c.bf16 %v2439, %v2435
      %v2681 = vpack.c.bf16 %v2447, %v2443
      %v2682 = vpack.c.bf16 %v2449, %v2445
      %v2683 = vpack.c.bf16 %v2457, %v2453
      %v2684 = vpack.c.bf16 %v2459, %v2455
      %v2685 = vpack.c.bf16 %v2467, %v2463
      %v2686 = vpack.c.bf16 %v2469, %v2465
      %v2687 = vpack.c.bf16 %v2477, %v2473
      %v2688 = vpack.c.bf16 %v2479, %v2475
      %v2689 = vpack.c.bf16 %v2487, %v2483
      %v2690 = vpack.c.bf16 %v2489, %v2485
      %v2691 = vpack.c.bf16 %v2497, %v2493
      %v2692 = vpack.c.bf16 %v2499, %v2495
      %v2693 = vpack.c.bf16 %v2507, %v2503
      %v2694 = vpack.c.bf16 %v2509, %v2505
      %v2695 = vpack.c.bf16 %v2517, %v2513
      %v2696 = vpack.c.bf16 %v2519, %v2515
      %v2697 = vpack.c.bf16 %v2527, %v2523
      %v2698 = vpack.c.bf16 %v2529, %v2525
      %v2699 = vpack.c.bf16 %v2537, %v2533
      %v2700 = vpack.c.bf16 %v2539, %v2535
      %v2701 = vpack.c.bf16 %v2547, %v2543
      %v2702 = vpack.c.bf16 %v2549, %v2545
      %v2703 = vpack.c.bf16 %v2557, %v2553
      %v2704 = vpack.c.bf16 %v2559, %v2555
      %v2705 = vpack.c.bf16 %v2567, %v2563
      %v2706 = vpack.c.bf16 %v2569, %v2565
      %v2707 = vpack.c.bf16 %v2577, %v2573
      %v2708 = vpack.c.bf16 %v2579, %v2575
      %v2709 = vpack.c.bf16 %v2587, %v2583
      %v2710 = vpack.c.bf16 %v2589, %v2585
      %v2711 = vpack.c.bf16 %v2597, %v2593
      %v2712 = vpack.c.bf16 %v2599, %v2595
      %v2713 = vpack.c.bf16 %v2607, %v2603
      %v2714 = vpack.c.bf16 %v2609, %v2605
      %v2715 = vpack.c.bf16 %v2617, %v2613
      %v2716 = vpack.c.bf16 %v2619, %v2615
      %v2717 = vpack.c.bf16 %v2627, %v2623
      %v2718 = vpack.c.bf16 %v2629, %v2625
      %v2719 = vpack.c.bf16 %v2637, %v2633
      %v2720 = vpack.c.bf16 %v2639, %v2635
      %v2721 = vpack.c.bf16 %v2647, %v2643
      %v2722 = vpack.c.bf16 %v2649, %v2645
      %v2723 = vpack.c.bf16 %v2657, %v2653
      %v2724 = vpack.c.bf16 %v2659, %v2655
      %v2725 = vld [vmem:[%s6] sm:$0x3]
      %v2728 = vunpack.c.l.s4 1966171168
      %v2729 = vunpack.c.0.s8 %v2728
      %v2730 = vlaneseq
      %v2731 = vshrl.u32 %v2730, 7
      %v2732 = vsub.s32 %v2729, %v2731
      %v2733 = vrot.slane %v2725, %v2732
      %v2734 = vcombine.high %v2733, %v2733
      %v2736 = vunpack.c.l.s4 1966171168
      %v2737 = vunpack.c.0.s8 %v2736
      %v2738 = vlaneseq
      %v2739 = vshrl.u32 %v2738, 7
      %v2740 = vsub.s32 %v2737, %v2739
      %v2741 = vrot.slane %v2733, %v2740
      %v2743 = vunpack.c.l.s4 1966171168
      %v2744 = vunpack.c.0.s8 %v2743
      %v2745 = vlaneseq
      %v2746 = vshrl.u32 %v2745, 7
      %v2747 = vsub.s32 %v2744, %v2746
      %v2748 = vrot.slane %v2734, %v2747
      %v2750 = vpack.i.b16 %v2741, %v2741
      %v2752 = vlaneseq
      %v2753 = vshrl.u32 %v2752, 7
      %v2754 = vsub.s32 0, %v2753
      %v2755 = vrot.slane %v2750, %v2754
      %v2757 = vpack.i.b16 %v2748, %v2748
      %v2759 = vlaneseq
      %v2760 = vshrl.u32 %v2759, 7
      %v2761 = vsub.s32 0, %v2760
      %v2762 = vrot.slane %v2757, %v2761
      %v2763 = vadd.bf16 %v2661, %v2755
      %v2764 = vadd.bf16 %v2662, %v2762
      %v2765 = vadd.bf16 %v2663, %v2755
      %v2766 = vadd.bf16 %v2664, %v2762
      %v2767 = vadd.bf16 %v2665, %v2755
      %v2768 = vadd.bf16 %v2666, %v2762
      %v2769 = vadd.bf16 %v2667, %v2755
      %v2770 = vadd.bf16 %v2668, %v2762
      %v2771 = vadd.bf16 %v2669, %v2755
      %v2772 = vadd.bf16 %v2670, %v2762
      %v2773 = vadd.bf16 %v2671, %v2755
      %v2774 = vadd.bf16 %v2672, %v2762
      %v2775 = vadd.bf16 %v2673, %v2755
      %v2776 = vadd.bf16 %v2674, %v2762
      %v2777 = vadd.bf16 %v2675, %v2755
      %v2778 = vadd.bf16 %v2676, %v2762
      %v2779 = vadd.bf16 %v2677, %v2755
      %v2780 = vadd.bf16 %v2678, %v2762
      %v2781 = vadd.bf16 %v2679, %v2755
      %v2782 = vadd.bf16 %v2680, %v2762
      %v2783 = vadd.bf16 %v2681, %v2755
      %v2784 = vadd.bf16 %v2682, %v2762
      %v2785 = vadd.bf16 %v2683, %v2755
      %v2786 = vadd.bf16 %v2684, %v2762
      %v2787 = vadd.bf16 %v2685, %v2755
      %v2788 = vadd.bf16 %v2686, %v2762
      %v2789 = vadd.bf16 %v2687, %v2755
      %v2790 = vadd.bf16 %v2688, %v2762
      %v2791 = vadd.bf16 %v2689, %v2755
      %v2792 = vadd.bf16 %v2690, %v2762
      %v2793 = vadd.bf16 %v2691, %v2755
      %v2794 = vadd.bf16 %v2692, %v2762
      %v2795 = vadd.bf16 %v2693, %v2755
      %v2796 = vadd.bf16 %v2694, %v2762
      %v2797 = vadd.bf16 %v2695, %v2755
      %v2798 = vadd.bf16 %v2696, %v2762
      %v2799 = vadd.bf16 %v2697, %v2755
      %v2800 = vadd.bf16 %v2698, %v2762
      %v2801 = vadd.bf16 %v2699, %v2755
      %v2802 = vadd.bf16 %v2700, %v2762
      %v2803 = vadd.bf16 %v2701, %v2755
      %v2804 = vadd.bf16 %v2702, %v2762
      %v2805 = vadd.bf16 %v2703, %v2755
      %v2806 = vadd.bf16 %v2704, %v2762
      %v2807 = vadd.bf16 %v2705, %v2755
      %v2808 = vadd.bf16 %v2706, %v2762
      %v2809 = vadd.bf16 %v2707, %v2755
      %v2810 = vadd.bf16 %v2708, %v2762
      %v2811 = vadd.bf16 %v2709, %v2755
      %v2812 = vadd.bf16 %v2710, %v2762
      %v2813 = vadd.bf16 %v2711, %v2755
      %v2814 = vadd.bf16 %v2712, %v2762
      %v2815 = vadd.bf16 %v2713, %v2755
      %v2816 = vadd.bf16 %v2714, %v2762
      %v2817 = vadd.bf16 %v2715, %v2755
      %v2818 = vadd.bf16 %v2716, %v2762
      %v2819 = vadd.bf16 %v2717, %v2755
      %v2820 = vadd.bf16 %v2718, %v2762
      %v2821 = vadd.bf16 %v2719, %v2755
      %v2822 = vadd.bf16 %v2720, %v2762
      %v2823 = vadd.bf16 %v2721, %v2755
      %v2824 = vadd.bf16 %v2722, %v2762
      %v2825 = vadd.bf16 %v2723, %v2755
      %v2826 = vadd.bf16 %v2724, %v2762
      %v2827 = vmax.bf16 %v2763, 0
      %v2828 = vmax.bf16 %v2764, 0
      %v2829 = vmax.bf16 %v2765, 0
      %v2830 = vmax.bf16 %v2766, 0
      %v2831 = vmax.bf16 %v2767, 0
      %v2832 = vmax.bf16 %v2768, 0
      %v2833 = vmax.bf16 %v2769, 0
      %v2834 = vmax.bf16 %v2770, 0
      %v2835 = vmax.bf16 %v2771, 0
      %v2836 = vmax.bf16 %v2772, 0
      %v2837 = vmax.bf16 %v2773, 0
      %v2838 = vmax.bf16 %v2774, 0
      %v2839 = vmax.bf16 %v2775, 0
      %v2840 = vmax.bf16 %v2776, 0
      %v2841 = vmax.bf16 %v2777, 0
      %v2842 = vmax.bf16 %v2778, 0
      %v2843 = vmax.bf16 %v2779, 0
      %v2844 = vmax.bf16 %v2780, 0
      %v2845 = vmax.bf16 %v2781, 0
      %v2846 = vmax.bf16 %v2782, 0
      %v2847 = vmax.bf16 %v2783, 0
      %v2848 = vmax.bf16 %v2784, 0
      %v2849 = vmax.bf16 %v2785, 0
      %v2850 = vmax.bf16 %v2786, 0
      %v2851 = vmax.bf16 %v2787, 0
      %v2852 = vmax.bf16 %v2788, 0
      %v2853 = vmax.bf16 %v2789, 0
      %v2854 = vmax.bf16 %v2790, 0
      %v2855 = vmax.bf16 %v2791, 0
      %v2856 = vmax.bf16 %v2792, 0
      %v2857 = vmax.bf16 %v2793, 0
      %v2858 = vmax.bf16 %v2794, 0
      %v2859 = vmax.bf16 %v2795, 0
      %v2860 = vmax.bf16 %v2796, 0
      %v2861 = vmax.bf16 %v2797, 0
      %v2862 = vmax.bf16 %v2798, 0
      %v2863 = vmax.bf16 %v2799, 0
      %v2864 = vmax.bf16 %v2800, 0
      %v2865 = vmax.bf16 %v2801, 0
      %v2866 = vmax.bf16 %v2802, 0
      %v2867 = vmax.bf16 %v2803, 0
      %v2868 = vmax.bf16 %v2804, 0
      %v2869 = vmax.bf16 %v2805, 0
      %v2870 = vmax.bf16 %v2806, 0
      %v2871 = vmax.bf16 %v2807, 0
      %v2872 = vmax.bf16 %v2808, 0
      %v2873 = vmax.bf16 %v2809, 0
      %v2874 = vmax.bf16 %v2810, 0
      %v2875 = vmax.bf16 %v2811, 0
      %v2876 = vmax.bf16 %v2812, 0
      %v2877 = vmax.bf16 %v2813, 0
      %v2878 = vmax.bf16 %v2814, 0
      %v2879 = vmax.bf16 %v2815, 0
      %v2880 = vmax.bf16 %v2816, 0
      %v2881 = vmax.bf16 %v2817, 0
      %v2882 = vmax.bf16 %v2818, 0
      %v2883 = vmax.bf16 %v2819, 0
      %v2884 = vmax.bf16 %v2820, 0
      %v2885 = vmax.bf16 %v2821, 0
      %v2886 = vmax.bf16 %v2822, 0
      %v2887 = vmax.bf16 %v2823, 0
      %v2888 = vmax.bf16 %v2824, 0
      %v2889 = vmax.bf16 %v2825, 0
      %v2890 = vmax.bf16 %v2826, 0
      %v2891 = vld [vmem:[%s7] sm:$0xff]
      %v2892 = vld [vmem:[%s7 + $0x8] sm:$0xff]
      %v2893 = vld [vmem:[%s7 + $0x10] sm:$0xff]
      %v2894 = vld [vmem:[%s7 + $0x18] sm:$0xff]
      %v2895 = vld [vmem:[%s7 + $0x20] sm:$0xff]
      %v2896 = vld [vmem:[%s7 + $0x28] sm:$0xff]
      %v2897 = vld [vmem:[%s7 + $0x30] sm:$0xff]
      %v2898 = vld [vmem:[%s7 + $0x38] sm:$0xff]
      %v2899 = vld [vmem:[%s7 + $0x40] sm:$0xff]
      %v2900 = vld [vmem:[%s7 + $0x48] sm:$0xff]
      %v2901 = vld [vmem:[%s7 + $0x50] sm:$0xff]
      %v2902 = vld [vmem:[%s7 + $0x58] sm:$0xff]
      %v2903 = vld [vmem:[%s7 + $0x60] sm:$0xff]
      %v2904 = vld [vmem:[%s7 + $0x68] sm:$0xff]
      %v2905 = vld [vmem:[%s7 + $0x70] sm:$0xff]
      %v2906 = vld [vmem:[%s7 + $0x78] sm:$0xff]
      %v2907 = vld [vmem:[%s7 + $0x80] sm:$0xff]
      %v2908 = vld [vmem:[%s7 + $0x88] sm:$0xff]
      %v2909 = vld [vmem:[%s7 + $0x90] sm:$0xff]
      %v2910 = vld [vmem:[%s7 + $0x98] sm:$0xff]
      %v2911 = vld [vmem:[%s7 + $0xa0] sm:$0xff]
      %v2912 = vld [vmem:[%s7 + $0xa8] sm:$0xff]
      %v2913 = vld [vmem:[%s7 + $0xb0] sm:$0xff]
      %v2914 = vld [vmem:[%s7 + $0xb8] sm:$0xff]
      %v2915 = vld [vmem:[%s7 + $0xc0] sm:$0xff]
      %v2916 = vld [vmem:[%s7 + $0xc8] sm:$0xff]
      %v2917 = vld [vmem:[%s7 + $0xd0] sm:$0xff]
      %v2918 = vld [vmem:[%s7 + $0xd8] sm:$0xff]
      %v2919 = vld [vmem:[%s7 + $0xe0] sm:$0xff]
      %v2920 = vld [vmem:[%s7 + $0xe8] sm:$0xff]
      %v2921 = vld [vmem:[%s7 + $0xf0] sm:$0xff]
      %v2922 = vld [vmem:[%s7 + $0xf8] sm:$0xff]
      %v2955 = vunpack.c.l.b16 %v2891
      %v2956 = vunpack.c.h.b16 %v2891
      %v2957 = vunpack.c.l.b16 %v2892
      %v2958 = vunpack.c.h.b16 %v2892
      %v2959 = vunpack.c.l.b16 %v2893
      %v2960 = vunpack.c.h.b16 %v2893
      %v2961 = vunpack.c.l.b16 %v2894
      %v2962 = vunpack.c.h.b16 %v2894
      %v2963 = vunpack.c.l.b16 %v2895
      %v2964 = vunpack.c.h.b16 %v2895
      %v2965 = vunpack.c.l.b16 %v2896
      %v2966 = vunpack.c.h.b16 %v2896
      %v2967 = vunpack.c.l.b16 %v2897
      %v2968 = vunpack.c.h.b16 %v2897
      %v2969 = vunpack.c.l.b16 %v2898
      %v2970 = vunpack.c.h.b16 %v2898
      %v2971 = vunpack.c.l.b16 %v2899
      %v2972 = vunpack.c.h.b16 %v2899
      %v2973 = vunpack.c.l.b16 %v2900
      %v2974 = vunpack.c.h.b16 %v2900
      %v2975 = vunpack.c.l.b16 %v2901
      %v2976 = vunpack.c.h.b16 %v2901
      %v2977 = vunpack.c.l.b16 %v2902
      %v2978 = vunpack.c.h.b16 %v2902
      %v2979 = vunpack.c.l.b16 %v2903
      %v2980 = vunpack.c.h.b16 %v2903
      %v2981 = vunpack.c.l.b16 %v2904
      %v2982 = vunpack.c.h.b16 %v2904
      %v2983 = vunpack.c.l.b16 %v2905
      %v2984 = vunpack.c.h.b16 %v2905
      %v2985 = vunpack.c.l.b16 %v2906
      %v2986 = vunpack.c.h.b16 %v2906
      %v2987 = vunpack.c.l.b16 %v2907
      %v2988 = vunpack.c.h.b16 %v2907
      %v2989 = vunpack.c.l.b16 %v2908
      %v2990 = vunpack.c.h.b16 %v2908
      %v2991 = vunpack.c.l.b16 %v2909
      %v2992 = vunpack.c.h.b16 %v2909
      %v2993 = vunpack.c.l.b16 %v2910
      %v2994 = vunpack.c.h.b16 %v2910
      %v2995 = vunpack.c.l.b16 %v2911
      %v2996 = vunpack.c.h.b16 %v2911
      %v2997 = vunpack.c.l.b16 %v2912
      %v2998 = vunpack.c.h.b16 %v2912
      %v2999 = vunpack.c.l.b16 %v2913
      %v3000 = vunpack.c.h.b16 %v2913
      %v3001 = vunpack.c.l.b16 %v2914
      %v3002 = vunpack.c.h.b16 %v2914
      %v3003 = vunpack.c.l.b16 %v2915
      %v3004 = vunpack.c.h.b16 %v2915
      %v3005 = vunpack.c.l.b16 %v2916
      %v3006 = vunpack.c.h.b16 %v2916
      %v3007 = vunpack.c.l.b16 %v2917
      %v3008 = vunpack.c.h.b16 %v2917
      %v3009 = vunpack.c.l.b16 %v2918
      %v3010 = vunpack.c.h.b16 %v2918
      %v3011 = vunpack.c.l.b16 %v2919
      %v3012 = vunpack.c.h.b16 %v2919
      %v3013 = vunpack.c.l.b16 %v2920
      %v3014 = vunpack.c.h.b16 %v2920
      %v3015 = vunpack.c.l.b16 %v2921
      %v3016 = vunpack.c.h.b16 %v2921
      %v3017 = vunpack.c.l.b16 %v2922
      %v3018 = vunpack.c.h.b16 %v2922
      %v3019 = vpack.c.b16 %v2957, %v2955
      %v3020 = vpack.c.b16 %v2958, %v2956
      %v3021 = vpack.c.b16 %v2961, %v2959
      %v3022 = vpack.c.b16 %v2962, %v2960
      %v3023 = vpack.c.b16 %v2965, %v2963
      %v3024 = vpack.c.b16 %v2966, %v2964
      %v3025 = vpack.c.b16 %v2969, %v2967
      %v3026 = vpack.c.b16 %v2970, %v2968
      %v3027 = vpack.c.b16 %v2973, %v2971
      %v3028 = vpack.c.b16 %v2974, %v2972
      %v3029 = vpack.c.b16 %v2977, %v2975
      %v3030 = vpack.c.b16 %v2978, %v2976
      %v3031 = vpack.c.b16 %v2981, %v2979
      %v3032 = vpack.c.b16 %v2982, %v2980
      %v3033 = vpack.c.b16 %v2985, %v2983
      %v3034 = vpack.c.b16 %v2986, %v2984
      %v3035 = vpack.c.b16 %v2989, %v2987
      %v3036 = vpack.c.b16 %v2990, %v2988
      %v3037 = vpack.c.b16 %v2993, %v2991
      %v3038 = vpack.c.b16 %v2994, %v2992
      %v3039 = vpack.c.b16 %v2997, %v2995
      %v3040 = vpack.c.b16 %v2998, %v2996
      %v3041 = vpack.c.b16 %v3001, %v2999
      %v3042 = vpack.c.b16 %v3002, %v3000
      %v3043 = vpack.c.b16 %v3005, %v3003
      %v3044 = vpack.c.b16 %v3006, %v3004
      %v3045 = vpack.c.b16 %v3009, %v3007
      %v3046 = vpack.c.b16 %v3010, %v3008
      %v3047 = vpack.c.b16 %v3013, %v3011
      %v3048 = vpack.c.b16 %v3014, %v3012
      %v3049 = vpack.c.b16 %v3017, %v3015
      %v3050 = vpack.c.b16 %v3018, %v3016
      %3083 = vmatprep.subr.bf16.mxu0 %v3020
      %3084 = vmatpush1.bf16.msra.mxu0 %v3019
      %3085 = vmatprep.subr.bf16.mxu0 %v3022
      %3086 = vmatpush1.bf16.msra.mxu0 %v3021
      %3087 = vmatprep.subr.bf16.mxu0 %v3024
      %3088 = vmatpush1.bf16.msra.mxu0 %v3023
      %3089 = vmatprep.subr.bf16.mxu0 %v3026
      %3090 = vmatpush1.bf16.msra.mxu0 %v3025
      %3091 = vmatprep.subr.bf16.mxu0 %v3028
      %3092 = vmatpush1.bf16.msra.mxu0 %v3027
      %3093 = vmatprep.subr.bf16.mxu0 %v3030
      %3094 = vmatpush1.bf16.msra.mxu0 %v3029
      %3095 = vmatprep.subr.bf16.mxu0 %v3032
      %3096 = vmatpush1.bf16.msra.mxu0 %v3031
      %3097 = vmatprep.subr.bf16.mxu0 %v3034
      %3098 = vmatpush1.bf16.msra.mxu0 %v3033
      %3099 = vmatprep.subr.bf16.mxu0 %v3036
      %3100 = vmatpush1.bf16.msra.mxu0 %v3035
      %3101 = vmatprep.subr.bf16.mxu0 %v3038
      %3102 = vmatpush1.bf16.msra.mxu0 %v3037
      %3103 = vmatprep.subr.bf16.mxu0 %v3040
      %3104 = vmatpush1.bf16.msra.mxu0 %v3039
      %3105 = vmatprep.subr.bf16.mxu0 %v3042
      %3106 = vmatpush1.bf16.msra.mxu0 %v3041
      %3107 = vmatprep.subr.bf16.mxu0 %v3044
      %3108 = vmatpush1.bf16.msra.mxu0 %v3043
      %3109 = vmatprep.subr.bf16.mxu0 %v3046
      %3110 = vmatpush1.bf16.msra.mxu0 %v3045
      %3111 = vmatprep.subr.bf16.mxu0 %v3048
      %3112 = vmatpush1.bf16.msra.mxu0 %v3047
      %3113 = vmatprep.subr.bf16.mxu0 %v3050
      %3114 = vmatpush1.bf16.msra.mxu0 %v3049
      %3115 = vmatprep.mubr.bf16.mxu0 %v2828
      %3116 = vmatmul.mubr.bf16.gmra.mrb[0].mxu0 %v2827
      %v3117 = vpop.f32.mrb[0].mxu0
      %v3118 = vadd.f32 0.0, %v3117
      %v3119 = vpop.f32.mrb[0].mxu0
      %v3120 = vadd.f32 0.0, %v3119
      %v3121 = vpop.f32.mrb[0].mxu0
      %v3122 = vadd.f32 0.0, %v3121
      %v3123 = vpop.f32.mrb[0].mxu0
      %v3124 = vadd.f32 0.0, %v3123
      %3125 = vmatprep.mubr.bf16.mxu0 %v2830
      %3126 = vmatmul.mubr.bf16.gmra.mrb[0].mxu0 %v2829
      %v3127 = vpop.f32.mrb[0].mxu0
      %v3128 = vadd.f32 0.0, %v3127
      %v3129 = vpop.f32.mrb[0].mxu0
      %v3130 = vadd.f32 0.0, %v3129
      %v3131 = vpop.f32.mrb[0].mxu0
      %v3132 = vadd.f32 0.0, %v3131
      %v3133 = vpop.f32.mrb[0].mxu0
      %v3134 = vadd.f32 0.0, %v3133
      %3135 = vmatprep.mubr.bf16.mxu0 %v2832
      %3136 = vmatmul.mubr.bf16.gmra.mrb[0].mxu0 %v2831
      %v3137 = vpop.f32.mrb[0].mxu0
      %v3138 = vadd.f32 0.0, %v3137
      %v3139 = vpop.f32.mrb[0].mxu0
      %v3140 = vadd.f32 0.0, %v3139
      %v3141 = vpop.f32.mrb[0].mxu0
      %v3142 = vadd.f32 0.0, %v3141
      %v3143 = vpop.f32.mrb[0].mxu0
      %v3144 = vadd.f32 0.0, %v3143
      %3145 = vmatprep.mubr.bf16.mxu0 %v2834
      %3146 = vmatmul.mubr.bf16.gmra.mrb[0].mxu0 %v2833
      %v3147 = vpop.f32.mrb[0].mxu0
      %v3148 = vadd.f32 0.0, %v3147
      %v3149 = vpop.f32.mrb[0].mxu0
      %v3150 = vadd.f32 0.0, %v3149
      %v3151 = vpop.f32.mrb[0].mxu0
      %v3152 = vadd.f32 0.0, %v3151
      %v3153 = vpop.f32.mrb[0].mxu0
      %v3154 = vadd.f32 0.0, %v3153
      %3155 = vmatprep.mubr.bf16.mxu0 %v2836
      %3156 = vmatmul.mubr.bf16.gmra.mrb[0].mxu0 %v2835
      %v3157 = vpop.f32.mrb[0].mxu0
      %v3158 = vadd.f32 0.0, %v3157
      %v3159 = vpop.f32.mrb[0].mxu0
      %v3160 = vadd.f32 0.0, %v3159
      %v3161 = vpop.f32.mrb[0].mxu0
      %v3162 = vadd.f32 0.0, %v3161
      %v3163 = vpop.f32.mrb[0].mxu0
      %v3164 = vadd.f32 0.0, %v3163
      %3165 = vmatprep.mubr.bf16.mxu0 %v2838
      %3166 = vmatmul.mubr.bf16.gmra.mrb[0].mxu0 %v2837
      %v3167 = vpop.f32.mrb[0].mxu0
      %v3168 = vadd.f32 0.0, %v3167
      %v3169 = vpop.f32.mrb[0].mxu0
      %v3170 = vadd.f32 0.0, %v3169
      %v3171 = vpop.f32.mrb[0].mxu0
      %v3172 = vadd.f32 0.0, %v3171
      %v3173 = vpop.f32.mrb[0].mxu0
      %v3174 = vadd.f32 0.0, %v3173
      %3175 = vmatprep.mubr.bf16.mxu0 %v2840
      %3176 = vmatmul.mubr.bf16.gmra.mrb[0].mxu0 %v2839
      %v3177 = vpop.f32.mrb[0].mxu0
      %v3178 = vadd.f32 0.0, %v3177
      %v3179 = vpop.f32.mrb[0].mxu0
      %v3180 = vadd.f32 0.0, %v3179
      %v3181 = vpop.f32.mrb[0].mxu0
      %v3182 = vadd.f32 0.0, %v3181
      %v3183 = vpop.f32.mrb[0].mxu0
      %v3184 = vadd.f32 0.0, %v3183
      %3185 = vmatprep.mubr.bf16.mxu0 %v2842
      %3186 = vmatmul.mubr.bf16.gmra.mrb[0].mxu0 %v2841
      %v3187 = vpop.f32.mrb[0].mxu0
      %v3188 = vadd.f32 0.0, %v3187
      %v3189 = vpop.f32.mrb[0].mxu0
      %v3190 = vadd.f32 0.0, %v3189
      %v3191 = vpop.f32.mrb[0].mxu0
      %v3192 = vadd.f32 0.0, %v3191
      %v3193 = vpop.f32.mrb[0].mxu0
      %v3194 = vadd.f32 0.0, %v3193
      %3195 = vmatprep.mubr.bf16.mxu0 %v2844
      %3196 = vmatmul.mubr.bf16.gmra.mrb[0].mxu0 %v2843
      %v3197 = vpop.f32.mrb[0].mxu0
      %v3198 = vadd.f32 0.0, %v3197
      %v3199 = vpop.f32.mrb[0].mxu0
      %v3200 = vadd.f32 0.0, %v3199
      %v3201 = vpop.f32.mrb[0].mxu0
      %v3202 = vadd.f32 0.0, %v3201
      %v3203 = vpop.f32.mrb[0].mxu0
      %v3204 = vadd.f32 0.0, %v3203
      %3205 = vmatprep.mubr.bf16.mxu0 %v2846
      %3206 = vmatmul.mubr.bf16.gmra.mrb[0].mxu0 %v2845
      %v3207 = vpop.f32.mrb[0].mxu0
      %v3208 = vadd.f32 0.0, %v3207
      %v3209 = vpop.f32.mrb[0].mxu0
      %v3210 = vadd.f32 0.0, %v3209
      %v3211 = vpop.f32.mrb[0].mxu0
      %v3212 = vadd.f32 0.0, %v3211
      %v3213 = vpop.f32.mrb[0].mxu0
      %v3214 = vadd.f32 0.0, %v3213
      %3215 = vmatprep.mubr.bf16.mxu0 %v2848
      %3216 = vmatmul.mubr.bf16.gmra.mrb[0].mxu0 %v2847
      %v3217 = vpop.f32.mrb[0].mxu0
      %v3218 = vadd.f32 0.0, %v3217
      %v3219 = vpop.f32.mrb[0].mxu0
      %v3220 = vadd.f32 0.0, %v3219
      %v3221 = vpop.f32.mrb[0].mxu0
      %v3222 = vadd.f32 0.0, %v3221
      %v3223 = vpop.f32.mrb[0].mxu0
      %v3224 = vadd.f32 0.0, %v3223
      %3225 = vmatprep.mubr.bf16.mxu0 %v2850
      %3226 = vmatmul.mubr.bf16.gmra.mrb[0].mxu0 %v2849
      %v3227 = vpop.f32.mrb[0].mxu0
      %v3228 = vadd.f32 0.0, %v3227
      %v3229 = vpop.f32.mrb[0].mxu0
      %v3230 = vadd.f32 0.0, %v3229
      %v3231 = vpop.f32.mrb[0].mxu0
      %v3232 = vadd.f32 0.0, %v3231
      %v3233 = vpop.f32.mrb[0].mxu0
      %v3234 = vadd.f32 0.0, %v3233
      %3235 = vmatprep.mubr.bf16.mxu0 %v2852
      %3236 = vmatmul.mubr.bf16.gmra.mrb[0].mxu0 %v2851
      %v3237 = vpop.f32.mrb[0].mxu0
      %v3238 = vadd.f32 0.0, %v3237
      %v3239 = vpop.f32.mrb[0].mxu0
      %v3240 = vadd.f32 0.0, %v3239
      %v3241 = vpop.f32.mrb[0].mxu0
      %v3242 = vadd.f32 0.0, %v3241
      %v3243 = vpop.f32.mrb[0].mxu0
      %v3244 = vadd.f32 0.0, %v3243
      %3245 = vmatprep.mubr.bf16.mxu0 %v2854
      %3246 = vmatmul.mubr.bf16.gmra.mrb[0].mxu0 %v2853
      %v3247 = vpop.f32.mrb[0].mxu0
      %v3248 = vadd.f32 0.0, %v3247
      %v3249 = vpop.f32.mrb[0].mxu0
      %v3250 = vadd.f32 0.0, %v3249
      %v3251 = vpop.f32.mrb[0].mxu0
      %v3252 = vadd.f32 0.0, %v3251
      %v3253 = vpop.f32.mrb[0].mxu0
      %v3254 = vadd.f32 0.0, %v3253
      %3255 = vmatprep.mubr.bf16.mxu0 %v2856
      %3256 = vmatmul.mubr.bf16.gmra.mrb[0].mxu0 %v2855
      %v3257 = vpop.f32.mrb[0].mxu0
      %v3258 = vadd.f32 0.0, %v3257
      %v3259 = vpop.f32.mrb[0].mxu0
      %v3260 = vadd.f32 0.0, %v3259
      %v3261 = vpop.f32.mrb[0].mxu0
      %v3262 = vadd.f32 0.0, %v3261
      %v3263 = vpop.f32.mrb[0].mxu0
      %v3264 = vadd.f32 0.0, %v3263
      %3265 = vmatprep.mubr.bf16.mxu0 %v2858
      %3266 = vmatmul.mubr.bf16.gmra.mrb[0].mxu0 %v2857
      %v3267 = vpop.f32.mrb[0].mxu0
      %v3268 = vadd.f32 0.0, %v3267
      %v3269 = vpop.f32.mrb[0].mxu0
      %v3270 = vadd.f32 0.0, %v3269
      %v3271 = vpop.f32.mrb[0].mxu0
      %v3272 = vadd.f32 0.0, %v3271
      %v3273 = vpop.f32.mrb[0].mxu0
      %v3274 = vadd.f32 0.0, %v3273
      %3275 = vmatprep.mubr.bf16.mxu0 %v2860
      %3276 = vmatmul.mubr.bf16.gmra.mrb[0].mxu0 %v2859
      %v3277 = vpop.f32.mrb[0].mxu0
      %v3278 = vadd.f32 0.0, %v3277
      %v3279 = vpop.f32.mrb[0].mxu0
      %v3280 = vadd.f32 0.0, %v3279
      %v3281 = vpop.f32.mrb[0].mxu0
      %v3282 = vadd.f32 0.0, %v3281
      %v3283 = vpop.f32.mrb[0].mxu0
      %v3284 = vadd.f32 0.0, %v3283
      %3285 = vmatprep.mubr.bf16.mxu0 %v2862
      %3286 = vmatmul.mubr.bf16.gmra.mrb[0].mxu0 %v2861
      %v3287 = vpop.f32.mrb[0].mxu0
      %v3288 = vadd.f32 0.0, %v3287
      %v3289 = vpop.f32.mrb[0].mxu0
      %v3290 = vadd.f32 0.0, %v3289
      %v3291 = vpop.f32.mrb[0].mxu0
      %v3292 = vadd.f32 0.0, %v3291
      %v3293 = vpop.f32.mrb[0].mxu0
      %v3294 = vadd.f32 0.0, %v3293
      %3295 = vmatprep.mubr.bf16.mxu0 %v2864
      %3296 = vmatmul.mubr.bf16.gmra.mrb[0].mxu0 %v2863
      %v3297 = vpop.f32.mrb[0].mxu0
      %v3298 = vadd.f32 0.0, %v3297
      %v3299 = vpop.f32.mrb[0].mxu0
      %v3300 = vadd.f32 0.0, %v3299
      %v3301 = vpop.f32.mrb[0].mxu0
      %v3302 = vadd.f32 0.0, %v3301
      %v3303 = vpop.f32.mrb[0].mxu0
      %v3304 = vadd.f32 0.0, %v3303
      %3305 = vmatprep.mubr.bf16.mxu0 %v2866
      %3306 = vmatmul.mubr.bf16.gmra.mrb[0].mxu0 %v2865
      %v3307 = vpop.f32.mrb[0].mxu0
      %v3308 = vadd.f32 0.0, %v3307
      %v3309 = vpop.f32.mrb[0].mxu0
      %v3310 = vadd.f32 0.0, %v3309
      %v3311 = vpop.f32.mrb[0].mxu0
      %v3312 = vadd.f32 0.0, %v3311
      %v3313 = vpop.f32.mrb[0].mxu0
      %v3314 = vadd.f32 0.0, %v3313
      %3315 = vmatprep.mubr.bf16.mxu0 %v2868
      %3316 = vmatmul.mubr.bf16.gmra.mrb[0].mxu0 %v2867
      %v3317 = vpop.f32.mrb[0].mxu0
      %v3318 = vadd.f32 0.0, %v3317
      %v3319 = vpop.f32.mrb[0].mxu0
      %v3320 = vadd.f32 0.0, %v3319
      %v3321 = vpop.f32.mrb[0].mxu0
      %v3322 = vadd.f32 0.0, %v3321
      %v3323 = vpop.f32.mrb[0].mxu0
      %v3324 = vadd.f32 0.0, %v3323
      %3325 = vmatprep.mubr.bf16.mxu0 %v2870
      %3326 = vmatmul.mubr.bf16.gmra.mrb[0].mxu0 %v2869
      %v3327 = vpop.f32.mrb[0].mxu0
      %v3328 = vadd.f32 0.0, %v3327
      %v3329 = vpop.f32.mrb[0].mxu0
      %v3330 = vadd.f32 0.0, %v3329
      %v3331 = vpop.f32.mrb[0].mxu0
      %v3332 = vadd.f32 0.0, %v3331
      %v3333 = vpop.f32.mrb[0].mxu0
      %v3334 = vadd.f32 0.0, %v3333
      %3335 = vmatprep.mubr.bf16.mxu0 %v2872
      %3336 = vmatmul.mubr.bf16.gmra.mrb[0].mxu0 %v2871
      %v3337 = vpop.f32.mrb[0].mxu0
      %v3338 = vadd.f32 0.0, %v3337
      %v3339 = vpop.f32.mrb[0].mxu0
      %v3340 = vadd.f32 0.0, %v3339
      %v3341 = vpop.f32.mrb[0].mxu0
      %v3342 = vadd.f32 0.0, %v3341
      %v3343 = vpop.f32.mrb[0].mxu0
      %v3344 = vadd.f32 0.0, %v3343
      %3345 = vmatprep.mubr.bf16.mxu0 %v2874
      %3346 = vmatmul.mubr.bf16.gmra.mrb[0].mxu0 %v2873
      %v3347 = vpop.f32.mrb[0].mxu0
      %v3348 = vadd.f32 0.0, %v3347
      %v3349 = vpop.f32.mrb[0].mxu0
      %v3350 = vadd.f32 0.0, %v3349
      %v3351 = vpop.f32.mrb[0].mxu0
      %v3352 = vadd.f32 0.0, %v3351
      %v3353 = vpop.f32.mrb[0].mxu0
      %v3354 = vadd.f32 0.0, %v3353
      %3355 = vmatprep.mubr.bf16.mxu0 %v2876
      %3356 = vmatmul.mubr.bf16.gmra.mrb[0].mxu0 %v2875
      %v3357 = vpop.f32.mrb[0].mxu0
      %v3358 = vadd.f32 0.0, %v3357
      %v3359 = vpop.f32.mrb[0].mxu0
      %v3360 = vadd.f32 0.0, %v3359
      %v3361 = vpop.f32.mrb[0].mxu0
      %v3362 = vadd.f32 0.0, %v3361
      %v3363 = vpop.f32.mrb[0].mxu0
      %v3364 = vadd.f32 0.0, %v3363
      %3365 = vmatprep.mubr.bf16.mxu0 %v2878
      %3366 = vmatmul.mubr.bf16.gmra.mrb[0].mxu0 %v2877
      %v3367 = vpop.f32.mrb[0].mxu0
      %v3368 = vadd.f32 0.0, %v3367
      %v3369 = vpop.f32.mrb[0].mxu0
      %v3370 = vadd.f32 0.0, %v3369
      %v3371 = vpop.f32.mrb[0].mxu0
      %v3372 = vadd.f32 0.0, %v3371
      %v3373 = vpop.f32.mrb[0].mxu0
      %v3374 = vadd.f32 0.0, %v3373
      %3375 = vmatprep.mubr.bf16.mxu0 %v2880
      %3376 = vmatmul.mubr.bf16.gmra.mrb[0].mxu0 %v2879
      %v3377 = vpop.f32.mrb[0].mxu0
      %v3378 = vadd.f32 0.0, %v3377
      %v3379 = vpop.f32.mrb[0].mxu0
      %v3380 = vadd.f32 0.0, %v3379
      %v3381 = vpop.f32.mrb[0].mxu0
      %v3382 = vadd.f32 0.0, %v3381
      %v3383 = vpop.f32.mrb[0].mxu0
      %v3384 = vadd.f32 0.0, %v3383
      %3385 = vmatprep.mubr.bf16.mxu0 %v2882
      %3386 = vmatmul.mubr.bf16.gmra.mrb[0].mxu0 %v2881
      %v3387 = vpop.f32.mrb[0].mxu0
      %v3388 = vadd.f32 0.0, %v3387
      %v3389 = vpop.f32.mrb[0].mxu0
      %v3390 = vadd.f32 0.0, %v3389
      %v3391 = vpop.f32.mrb[0].mxu0
      %v3392 = vadd.f32 0.0, %v3391
      %v3393 = vpop.f32.mrb[0].mxu0
      %v3394 = vadd.f32 0.0, %v3393
      %3395 = vmatprep.mubr.bf16.mxu0 %v2884
      %3396 = vmatmul.mubr.bf16.gmra.mrb[0].mxu0 %v2883
      %v3397 = vpop.f32.mrb[0].mxu0
      %v3398 = vadd.f32 0.0, %v3397
      %v3399 = vpop.f32.mrb[0].mxu0
      %v3400 = vadd.f32 0.0, %v3399
      %v3401 = vpop.f32.mrb[0].mxu0
      %v3402 = vadd.f32 0.0, %v3401
      %v3403 = vpop.f32.mrb[0].mxu0
      %v3404 = vadd.f32 0.0, %v3403
      %3405 = vmatprep.mubr.bf16.mxu0 %v2886
      %3406 = vmatmul.mubr.bf16.gmra.mrb[0].mxu0 %v2885
      %v3407 = vpop.f32.mrb[0].mxu0
      %v3408 = vadd.f32 0.0, %v3407
      %v3409 = vpop.f32.mrb[0].mxu0
      %v3410 = vadd.f32 0.0, %v3409
      %v3411 = vpop.f32.mrb[0].mxu0
      %v3412 = vadd.f32 0.0, %v3411
      %v3413 = vpop.f32.mrb[0].mxu0
      %v3414 = vadd.f32 0.0, %v3413
      %3415 = vmatprep.mubr.bf16.mxu0 %v2888
      %3416 = vmatmul.mubr.bf16.gmra.mrb[0].mxu0 %v2887
      %v3417 = vpop.f32.mrb[0].mxu0
      %v3418 = vadd.f32 0.0, %v3417
      %v3419 = vpop.f32.mrb[0].mxu0
      %v3420 = vadd.f32 0.0, %v3419
      %v3421 = vpop.f32.mrb[0].mxu0
      %v3422 = vadd.f32 0.0, %v3421
      %v3423 = vpop.f32.mrb[0].mxu0
      %v3424 = vadd.f32 0.0, %v3423
      %3425 = vmatprep.mubr.bf16.mxu0 %v2890
      %3426 = vmatmul.mubr.bf16.gmra.mrb[0].mxu0 %v2889
      %v3427 = vpop.f32.mrb[0].mxu0
      %v3428 = vadd.f32 0.0, %v3427
      %v3429 = vpop.f32.mrb[0].mxu0
      %v3430 = vadd.f32 0.0, %v3429
      %v3431 = vpop.f32.mrb[0].mxu0
      %v3432 = vadd.f32 0.0, %v3431
      %v3433 = vpop.f32.mrb[0].mxu0
      %v3434 = vadd.f32 0.0, %v3433
      %3435 = vdwg.mxu0
      %v3436 = vpack.c.bf16 %v3122, %v3118
      %v3437 = vpack.c.bf16 %v3124, %v3120
      %v3438 = vpack.c.bf16 %v3132, %v3128
      %v3439 = vpack.c.bf16 %v3134, %v3130
      %v3440 = vpack.c.bf16 %v3142, %v3138
      %v3441 = vpack.c.bf16 %v3144, %v3140
      %v3442 = vpack.c.bf16 %v3152, %v3148
      %v3443 = vpack.c.bf16 %v3154, %v3150
      %v3444 = vpack.c.bf16 %v3162, %v3158
      %v3445 = vpack.c.bf16 %v3164, %v3160
      %v3446 = vpack.c.bf16 %v3172, %v3168
      %v3447 = vpack.c.bf16 %v3174, %v3170
      %v3448 = vpack.c.bf16 %v3182, %v3178
      %v3449 = vpack.c.bf16 %v3184, %v3180
      %v3450 = vpack.c.bf16 %v3192, %v3188
      %v3451 = vpack.c.bf16 %v3194, %v3190
      %v3452 = vpack.c.bf16 %v3202, %v3198
      %v3453 = vpack.c.bf16 %v3204, %v3200
      %v3454 = vpack.c.bf16 %v3212, %v3208
      %v3455 = vpack.c.bf16 %v3214, %v3210
      %v3456 = vpack.c.bf16 %v3222, %v3218
      %v3457 = vpack.c.bf16 %v3224, %v3220
      %v3458 = vpack.c.bf16 %v3232, %v3228
      %v3459 = vpack.c.bf16 %v3234, %v3230
      %v3460 = vpack.c.bf16 %v3242, %v3238
      %v3461 = vpack.c.bf16 %v3244, %v3240
      %v3462 = vpack.c.bf16 %v3252, %v3248
      %v3463 = vpack.c.bf16 %v3254, %v3250
      %v3464 = vpack.c.bf16 %v3262, %v3258
      %v3465 = vpack.c.bf16 %v3264, %v3260
      %v3466 = vpack.c.bf16 %v3272, %v3268
      %v3467 = vpack.c.bf16 %v3274, %v3270
      %v3468 = vpack.c.bf16 %v3282, %v3278
      %v3469 = vpack.c.bf16 %v3284, %v3280
      %v3470 = vpack.c.bf16 %v3292, %v3288
      %v3471 = vpack.c.bf16 %v3294, %v3290
      %v3472 = vpack.c.bf16 %v3302, %v3298
      %v3473 = vpack.c.bf16 %v3304, %v3300
      %v3474 = vpack.c.bf16 %v3312, %v3308
      %v3475 = vpack.c.bf16 %v3314, %v3310
      %v3476 = vpack.c.bf16 %v3322, %v3318
      %v3477 = vpack.c.bf16 %v3324, %v3320
      %v3478 = vpack.c.bf16 %v3332, %v3328
      %v3479 = vpack.c.bf16 %v3334, %v3330
      %v3480 = vpack.c.bf16 %v3342, %v3338
      %v3481 = vpack.c.bf16 %v3344, %v3340
      %v3482 = vpack.c.bf16 %v3352, %v3348
      %v3483 = vpack.c.bf16 %v3354, %v3350
      %v3484 = vpack.c.bf16 %v3362, %v3358
      %v3485 = vpack.c.bf16 %v3364, %v3360
      %v3486 = vpack.c.bf16 %v3372, %v3368
      %v3487 = vpack.c.bf16 %v3374, %v3370
      %v3488 = vpack.c.bf16 %v3382, %v3378
      %v3489 = vpack.c.bf16 %v3384, %v3380
      %v3490 = vpack.c.bf16 %v3392, %v3388
      %v3491 = vpack.c.bf16 %v3394, %v3390
      %v3492 = vpack.c.bf16 %v3402, %v3398
      %v3493 = vpack.c.bf16 %v3404, %v3400
      %v3494 = vpack.c.bf16 %v3412, %v3408
      %v3495 = vpack.c.bf16 %v3414, %v3410
      %v3496 = vpack.c.bf16 %v3422, %v3418
      %v3497 = vpack.c.bf16 %v3424, %v3420
      %v3498 = vpack.c.bf16 %v3432, %v3428
      %v3499 = vpack.c.bf16 %v3434, %v3430
      %v3500 = vld [vmem:[%s8] sm:$0x3]
      %v3503 = vunpack.c.l.s4 1966171168
      %v3504 = vunpack.c.0.s8 %v3503
      %v3505 = vlaneseq
      %v3506 = vshrl.u32 %v3505, 7
      %v3507 = vsub.s32 %v3504, %v3506
      %v3508 = vrot.slane %v3500, %v3507
      %v3509 = vcombine.high %v3508, %v3508
      %v3511 = vunpack.c.l.s4 1966171168
      %v3512 = vunpack.c.0.s8 %v3511
      %v3513 = vlaneseq
      %v3514 = vshrl.u32 %v3513, 7
      %v3515 = vsub.s32 %v3512, %v3514
      %v3516 = vrot.slane %v3508, %v3515
      %v3518 = vunpack.c.l.s4 1966171168
      %v3519 = vunpack.c.0.s8 %v3518
      %v3520 = vlaneseq
      %v3521 = vshrl.u32 %v3520, 7
      %v3522 = vsub.s32 %v3519, %v3521
      %v3523 = vrot.slane %v3509, %v3522
      %v3525 = vpack.i.b16 %v3516, %v3516
      %v3527 = vlaneseq
      %v3528 = vshrl.u32 %v3527, 7
      %v3529 = vsub.s32 0, %v3528
      %v3530 = vrot.slane %v3525, %v3529
      %v3532 = vpack.i.b16 %v3523, %v3523
      %v3534 = vlaneseq
      %v3535 = vshrl.u32 %v3534, 7
      %v3536 = vsub.s32 0, %v3535
      %v3537 = vrot.slane %v3532, %v3536
      %v3538 = vadd.bf16 %v3436, %v3530
      %v3539 = vadd.bf16 %v3437, %v3537
      %v3540 = vadd.bf16 %v3438, %v3530
      %v3541 = vadd.bf16 %v3439, %v3537
      %v3542 = vadd.bf16 %v3440, %v3530
      %v3543 = vadd.bf16 %v3441, %v3537
      %v3544 = vadd.bf16 %v3442, %v3530
      %v3545 = vadd.bf16 %v3443, %v3537
      %v3546 = vadd.bf16 %v3444, %v3530
      %v3547 = vadd.bf16 %v3445, %v3537
      %v3548 = vadd.bf16 %v3446, %v3530
      %v3549 = vadd.bf16 %v3447, %v3537
      %v3550 = vadd.bf16 %v3448, %v3530
      %v3551 = vadd.bf16 %v3449, %v3537
      %v3552 = vadd.bf16 %v3450, %v3530
      %v3553 = vadd.bf16 %v3451, %v3537
      %v3554 = vadd.bf16 %v3452, %v3530
      %v3555 = vadd.bf16 %v3453, %v3537
      %v3556 = vadd.bf16 %v3454, %v3530
      %v3557 = vadd.bf16 %v3455, %v3537
      %v3558 = vadd.bf16 %v3456, %v3530
      %v3559 = vadd.bf16 %v3457, %v3537
      %v3560 = vadd.bf16 %v3458, %v3530
      %v3561 = vadd.bf16 %v3459, %v3537
      %v3562 = vadd.bf16 %v3460, %v3530
      %v3563 = vadd.bf16 %v3461, %v3537
      %v3564 = vadd.bf16 %v3462, %v3530
      %v3565 = vadd.bf16 %v3463, %v3537
      %v3566 = vadd.bf16 %v3464, %v3530
      %v3567 = vadd.bf16 %v3465, %v3537
      %v3568 = vadd.bf16 %v3466, %v3530
      %v3569 = vadd.bf16 %v3467, %v3537
      %v3570 = vadd.bf16 %v3468, %v3530
      %v3571 = vadd.bf16 %v3469, %v3537
      %v3572 = vadd.bf16 %v3470, %v3530
      %v3573 = vadd.bf16 %v3471, %v3537
      %v3574 = vadd.bf16 %v3472, %v3530
      %v3575 = vadd.bf16 %v3473, %v3537
      %v3576 = vadd.bf16 %v3474, %v3530
      %v3577 = vadd.bf16 %v3475, %v3537
      %v3578 = vadd.bf16 %v3476, %v3530
      %v3579 = vadd.bf16 %v3477, %v3537
      %v3580 = vadd.bf16 %v3478, %v3530
      %v3581 = vadd.bf16 %v3479, %v3537
      %v3582 = vadd.bf16 %v3480, %v3530
      %v3583 = vadd.bf16 %v3481, %v3537
      %v3584 = vadd.bf16 %v3482, %v3530
      %v3585 = vadd.bf16 %v3483, %v3537
      %v3586 = vadd.bf16 %v3484, %v3530
      %v3587 = vadd.bf16 %v3485, %v3537
      %v3588 = vadd.bf16 %v3486, %v3530
      %v3589 = vadd.bf16 %v3487, %v3537
      %v3590 = vadd.bf16 %v3488, %v3530
      %v3591 = vadd.bf16 %v3489, %v3537
      %v3592 = vadd.bf16 %v3490, %v3530
      %v3593 = vadd.bf16 %v3491, %v3537
      %v3594 = vadd.bf16 %v3492, %v3530
      %v3595 = vadd.bf16 %v3493, %v3537
      %v3596 = vadd.bf16 %v3494, %v3530
      %v3597 = vadd.bf16 %v3495, %v3537
      %v3598 = vadd.bf16 %v3496, %v3530
      %v3599 = vadd.bf16 %v3497, %v3537
      %v3600 = vadd.bf16 %v3498, %v3530
      %v3601 = vadd.bf16 %v3499, %v3537
      %v3602 = vmax.bf16 %v3538, 0
      %v3603 = vmax.bf16 %v3539, 0
      %v3604 = vmax.bf16 %v3540, 0
      %v3605 = vmax.bf16 %v3541, 0
      %v3606 = vmax.bf16 %v3542, 0
      %v3607 = vmax.bf16 %v3543, 0
      %v3608 = vmax.bf16 %v3544, 0
      %v3609 = vmax.bf16 %v3545, 0
      %v3610 = vmax.bf16 %v3546, 0
      %v3611 = vmax.bf16 %v3547, 0
      %v3612 = vmax.bf16 %v3548, 0
      %v3613 = vmax.bf16 %v3549, 0
      %v3614 = vmax.bf16 %v3550, 0
      %v3615 = vmax.bf16 %v3551, 0
      %v3616 = vmax.bf16 %v3552, 0
      %v3617 = vmax.bf16 %v3553, 0
      %v3618 = vmax.bf16 %v3554, 0
      %v3619 = vmax.bf16 %v3555, 0
      %v3620 = vmax.bf16 %v3556, 0
      %v3621 = vmax.bf16 %v3557, 0
      %v3622 = vmax.bf16 %v3558, 0
      %v3623 = vmax.bf16 %v3559, 0
      %v3624 = vmax.bf16 %v3560, 0
      %v3625 = vmax.bf16 %v3561, 0
      %v3626 = vmax.bf16 %v3562, 0
      %v3627 = vmax.bf16 %v3563, 0
      %v3628 = vmax.bf16 %v3564, 0
      %v3629 = vmax.bf16 %v3565, 0
      %v3630 = vmax.bf16 %v3566, 0
      %v3631 = vmax.bf16 %v3567, 0
      %v3632 = vmax.bf16 %v3568, 0
      %v3633 = vmax.bf16 %v3569, 0
      %v3634 = vmax.bf16 %v3570, 0
      %v3635 = vmax.bf16 %v3571, 0
      %v3636 = vmax.bf16 %v3572, 0
      %v3637 = vmax.bf16 %v3573, 0
      %v3638 = vmax.bf16 %v3574, 0
      %v3639 = vmax.bf16 %v3575, 0
      %v3640 = vmax.bf16 %v3576, 0
      %v3641 = vmax.bf16 %v3577, 0
      %v3642 = vmax.bf16 %v3578, 0
      %v3643 = vmax.bf16 %v3579, 0
      %v3644 = vmax.bf16 %v3580, 0
      %v3645 = vmax.bf16 %v3581, 0
      %v3646 = vmax.bf16 %v3582, 0
      %v3647 = vmax.bf16 %v3583, 0
      %v3648 = vmax.bf16 %v3584, 0
      %v3649 = vmax.bf16 %v3585, 0
      %v3650 = vmax.bf16 %v3586, 0
      %v3651 = vmax.bf16 %v3587, 0
      %v3652 = vmax.bf16 %v3588, 0
      %v3653 = vmax.bf16 %v3589, 0
      %v3654 = vmax.bf16 %v3590, 0
      %v3655 = vmax.bf16 %v3591, 0
      %v3656 = vmax.bf16 %v3592, 0
      %v3657 = vmax.bf16 %v3593, 0
      %v3658 = vmax.bf16 %v3594, 0
      %v3659 = vmax.bf16 %v3595, 0
      %v3660 = vmax.bf16 %v3596, 0
      %v3661 = vmax.bf16 %v3597, 0
      %v3662 = vmax.bf16 %v3598, 0
      %v3663 = vmax.bf16 %v3599, 0
      %v3664 = vmax.bf16 %v3600, 0
      %v3665 = vmax.bf16 %v3601, 0
      %v3666 = vld [vmem:[%s9] sm:$0xff]
      %v3667 = vld [vmem:[%s9 + $0x8] sm:$0xff]
      %v3668 = vld [vmem:[%s9 + $0x10] sm:$0xff]
      %v3669 = vld [vmem:[%s9 + $0x18] sm:$0xff]
      %v3670 = vld [vmem:[%s9 + $0x20] sm:$0xff]
      %v3671 = vld [vmem:[%s9 + $0x28] sm:$0xff]
      %v3672 = vld [vmem:[%s9 + $0x30] sm:$0xff]
      %v3673 = vld [vmem:[%s9 + $0x38] sm:$0xff]
      %v3674 = vld [vmem:[%s9 + $0x40] sm:$0xff]
      %v3675 = vld [vmem:[%s9 + $0x48] sm:$0xff]
      %v3676 = vld [vmem:[%s9 + $0x50] sm:$0xff]
      %v3677 = vld [vmem:[%s9 + $0x58] sm:$0xff]
      %v3678 = vld [vmem:[%s9 + $0x60] sm:$0xff]
      %v3679 = vld [vmem:[%s9 + $0x68] sm:$0xff]
      %v3680 = vld [vmem:[%s9 + $0x70] sm:$0xff]
      %v3681 = vld [vmem:[%s9 + $0x78] sm:$0xff]
      %v3682 = vld [vmem:[%s9 + $0x80] sm:$0xff]
      %v3683 = vld [vmem:[%s9 + $0x88] sm:$0xff]
      %v3684 = vld [vmem:[%s9 + $0x90] sm:$0xff]
      %v3685 = vld [vmem:[%s9 + $0x98] sm:$0xff]
      %v3686 = vld [vmem:[%s9 + $0xa0] sm:$0xff]
      %v3687 = vld [vmem:[%s9 + $0xa8] sm:$0xff]
      %v3688 = vld [vmem:[%s9 + $0xb0] sm:$0xff]
      %v3689 = vld [vmem:[%s9 + $0xb8] sm:$0xff]
      %v3690 = vld [vmem:[%s9 + $0xc0] sm:$0xff]
      %v3691 = vld [vmem:[%s9 + $0xc8] sm:$0xff]
      %v3692 = vld [vmem:[%s9 + $0xd0] sm:$0xff]
      %v3693 = vld [vmem:[%s9 + $0xd8] sm:$0xff]
      %v3694 = vld [vmem:[%s9 + $0xe0] sm:$0xff]
      %v3695 = vld [vmem:[%s9 + $0xe8] sm:$0xff]
      %v3696 = vld [vmem:[%s9 + $0xf0] sm:$0xff]
      %v3697 = vld [vmem:[%s9 + $0xf8] sm:$0xff]
      %v3730 = vunpack.c.l.b16 %v3666
      %v3731 = vunpack.c.h.b16 %v3666
      %v3732 = vunpack.c.l.b16 %v3667
      %v3733 = vunpack.c.h.b16 %v3667
      %v3734 = vunpack.c.l.b16 %v3668
      %v3735 = vunpack.c.h.b16 %v3668
      %v3736 = vunpack.c.l.b16 %v3669
      %v3737 = vunpack.c.h.b16 %v3669
      %v3738 = vunpack.c.l.b16 %v3670
      %v3739 = vunpack.c.h.b16 %v3670
      %v3740 = vunpack.c.l.b16 %v3671
      %v3741 = vunpack.c.h.b16 %v3671
      %v3742 = vunpack.c.l.b16 %v3672
      %v3743 = vunpack.c.h.b16 %v3672
      %v3744 = vunpack.c.l.b16 %v3673
      %v3745 = vunpack.c.h.b16 %v3673
      %v3746 = vunpack.c.l.b16 %v3674
      %v3747 = vunpack.c.h.b16 %v3674
      %v3748 = vunpack.c.l.b16 %v3675
      %v3749 = vunpack.c.h.b16 %v3675
      %v3750 = vunpack.c.l.b16 %v3676
      %v3751 = vunpack.c.h.b16 %v3676
      %v3752 = vunpack.c.l.b16 %v3677
      %v3753 = vunpack.c.h.b16 %v3677
      %v3754 = vunpack.c.l.b16 %v3678
      %v3755 = vunpack.c.h.b16 %v3678
      %v3756 = vunpack.c.l.b16 %v3679
      %v3757 = vunpack.c.h.b16 %v3679
      %v3758 = vunpack.c.l.b16 %v3680
      %v3759 = vunpack.c.h.b16 %v3680
      %v3760 = vunpack.c.l.b16 %v3681
      %v3761 = vunpack.c.h.b16 %v3681
      %v3762 = vunpack.c.l.b16 %v3682
      %v3763 = vunpack.c.h.b16 %v3682
      %v3764 = vunpack.c.l.b16 %v3683
      %v3765 = vunpack.c.h.b16 %v3683
      %v3766 = vunpack.c.l.b16 %v3684
      %v3767 = vunpack.c.h.b16 %v3684
      %v3768 = vunpack.c.l.b16 %v3685
      %v3769 = vunpack.c.h.b16 %v3685
      %v3770 = vunpack.c.l.b16 %v3686
      %v3771 = vunpack.c.h.b16 %v3686
      %v3772 = vunpack.c.l.b16 %v3687
      %v3773 = vunpack.c.h.b16 %v3687
      %v3774 = vunpack.c.l.b16 %v3688
      %v3775 = vunpack.c.h.b16 %v3688
      %v3776 = vunpack.c.l.b16 %v3689
      %v3777 = vunpack.c.h.b16 %v3689
      %v3778 = vunpack.c.l.b16 %v3690
      %v3779 = vunpack.c.h.b16 %v3690
      %v3780 = vunpack.c.l.b16 %v3691
      %v3781 = vunpack.c.h.b16 %v3691
      %v3782 = vunpack.c.l.b16 %v3692
      %v3783 = vunpack.c.h.b16 %v3692
      %v3784 = vunpack.c.l.b16 %v3693
      %v3785 = vunpack.c.h.b16 %v3693
      %v3786 = vunpack.c.l.b16 %v3694
      %v3787 = vunpack.c.h.b16 %v3694
      %v3788 = vunpack.c.l.b16 %v3695
      %v3789 = vunpack.c.h.b16 %v3695
      %v3790 = vunpack.c.l.b16 %v3696
      %v3791 = vunpack.c.h.b16 %v3696
      %v3792 = vunpack.c.l.b16 %v3697
      %v3793 = vunpack.c.h.b16 %v3697
      %v3794 = vpack.c.b16 %v3732, %v3730
      %v3795 = vpack.c.b16 %v3733, %v3731
      %v3796 = vpack.c.b16 %v3736, %v3734
      %v3797 = vpack.c.b16 %v3737, %v3735
      %v3798 = vpack.c.b16 %v3740, %v3738
      %v3799 = vpack.c.b16 %v3741, %v3739
      %v3800 = vpack.c.b16 %v3744, %v3742
      %v3801 = vpack.c.b16 %v3745, %v3743
      %v3802 = vpack.c.b16 %v3748, %v3746
      %v3803 = vpack.c.b16 %v3749, %v3747
      %v3804 = vpack.c.b16 %v3752, %v3750
      %v3805 = vpack.c.b16 %v3753, %v3751
      %v3806 = vpack.c.b16 %v3756, %v3754
      %v3807 = vpack.c.b16 %v3757, %v3755
      %v3808 = vpack.c.b16 %v3760, %v3758
      %v3809 = vpack.c.b16 %v3761, %v3759
      %v3810 = vpack.c.b16 %v3764, %v3762
      %v3811 = vpack.c.b16 %v3765, %v3763
      %v3812 = vpack.c.b16 %v3768, %v3766
      %v3813 = vpack.c.b16 %v3769, %v3767
      %v3814 = vpack.c.b16 %v3772, %v3770
      %v3815 = vpack.c.b16 %v3773, %v3771
      %v3816 = vpack.c.b16 %v3776, %v3774
      %v3817 = vpack.c.b16 %v3777, %v3775
      %v3818 = vpack.c.b16 %v3780, %v3778
      %v3819 = vpack.c.b16 %v3781, %v3779
      %v3820 = vpack.c.b16 %v3784, %v3782
      %v3821 = vpack.c.b16 %v3785, %v3783
      %v3822 = vpack.c.b16 %v3788, %v3786
      %v3823 = vpack.c.b16 %v3789, %v3787
      %v3824 = vpack.c.b16 %v3792, %v3790
      %v3825 = vpack.c.b16 %v3793, %v3791
      %3858 = vmatprep.subr.bf16.mxu0 %v3795
      %3859 = vmatpush1.bf16.msra.mxu0 %v3794
      %3860 = vmatprep.subr.bf16.mxu0 %v3797
      %3861 = vmatpush1.bf16.msra.mxu0 %v3796
      %3862 = vmatprep.subr.bf16.mxu0 %v3799
      %3863 = vmatpush1.bf16.msra.mxu0 %v3798
      %3864 = vmatprep.subr.bf16.mxu0 %v3801
      %3865 = vmatpush1.bf16.msra.mxu0 %v3800
      %3866 = vmatprep.subr.bf16.mxu0 %v3803
      %3867 = vmatpush1.bf16.msra.mxu0 %v3802
      %3868 = vmatprep.subr.bf16.mxu0 %v3805
      %3869 = vmatpush1.bf16.msra.mxu0 %v3804
      %3870 = vmatprep.subr.bf16.mxu0 %v3807
      %3871 = vmatpush1.bf16.msra.mxu0 %v3806
      %3872 = vmatprep.subr.bf16.mxu0 %v3809
      %3873 = vmatpush1.bf16.msra.mxu0 %v3808
      %3874 = vmatprep.subr.bf16.mxu0 %v3811
      %3875 = vmatpush1.bf16.msra.mxu0 %v3810
      %3876 = vmatprep.subr.bf16.mxu0 %v3813
      %3877 = vmatpush1.bf16.msra.mxu0 %v3812
      %3878 = vmatprep.subr.bf16.mxu0 %v3815
      %3879 = vmatpush1.bf16.msra.mxu0 %v3814
      %3880 = vmatprep.subr.bf16.mxu0 %v3817
      %3881 = vmatpush1.bf16.msra.mxu0 %v3816
      %3882 = vmatprep.subr.bf16.mxu0 %v3819
      %3883 = vmatpush1.bf16.msra.mxu0 %v3818
      %3884 = vmatprep.subr.bf16.mxu0 %v3821
      %3885 = vmatpush1.bf16.msra.mxu0 %v3820
      %3886 = vmatprep.subr.bf16.mxu0 %v3823
      %3887 = vmatpush1.bf16.msra.mxu0 %v3822
      %3888 = vmatprep.subr.bf16.mxu0 %v3825
      %3889 = vmatpush1.bf16.msra.mxu0 %v3824
      %3890 = vmatprep.mubr.bf16.mxu0 %v3603
      %3891 = vmatmul.mubr.bf16.gmra.mrb[0].mxu0 %v3602
      %v3892 = vpop.f32.mrb[0].mxu0
      %v3893 = vadd.f32 0.0, %v3892
      %v3894 = vpop.f32.mrb[0].mxu0
      %v3895 = vadd.f32 0.0, %v3894
      %v3896 = vpop.f32.mrb[0].mxu0
      %v3897 = vadd.f32 0.0, %v3896
      %v3898 = vpop.f32.mrb[0].mxu0
      %v3899 = vadd.f32 0.0, %v3898
      %3900 = vmatprep.mubr.bf16.mxu0 %v3605
      %3901 = vmatmul.mubr.bf16.gmra.mrb[0].mxu0 %v3604
      %v3902 = vpop.f32.mrb[0].mxu0
      %v3903 = vadd.f32 0.0, %v3902
      %v3904 = vpop.f32.mrb[0].mxu0
      %v3905 = vadd.f32 0.0, %v3904
      %v3906 = vpop.f32.mrb[0].mxu0
      %v3907 = vadd.f32 0.0, %v3906
      %v3908 = vpop.f32.mrb[0].mxu0
      %v3909 = vadd.f32 0.0, %v3908
      %3910 = vmatprep.mubr.bf16.mxu0 %v3607
      %3911 = vmatmul.mubr.bf16.gmra.mrb[0].mxu0 %v3606
      %v3912 = vpop.f32.mrb[0].mxu0
      %v3913 = vadd.f32 0.0, %v3912
      %v3914 = vpop.f32.mrb[0].mxu0
      %v3915 = vadd.f32 0.0, %v3914
      %v3916 = vpop.f32.mrb[0].mxu0
      %v3917 = vadd.f32 0.0, %v3916
      %v3918 = vpop.f32.mrb[0].mxu0
      %v3919 = vadd.f32 0.0, %v3918
      %3920 = vmatprep.mubr.bf16.mxu0 %v3609
      %3921 = vmatmul.mubr.bf16.gmra.mrb[0].mxu0 %v3608
      %v3922 = vpop.f32.mrb[0].mxu0
      %v3923 = vadd.f32 0.0, %v3922
      %v3924 = vpop.f32.mrb[0].mxu0
      %v3925 = vadd.f32 0.0, %v3924
      %v3926 = vpop.f32.mrb[0].mxu0
      %v3927 = vadd.f32 0.0, %v3926
      %v3928 = vpop.f32.mrb[0].mxu0
      %v3929 = vadd.f32 0.0, %v3928
      %3930 = vmatprep.mubr.bf16.mxu0 %v3611
      %3931 = vmatmul.mubr.bf16.gmra.mrb[0].mxu0 %v3610
      %v3932 = vpop.f32.mrb[0].mxu0
      %v3933 = vadd.f32 0.0, %v3932
      %v3934 = vpop.f32.mrb[0].mxu0
      %v3935 = vadd.f32 0.0, %v3934
      %v3936 = vpop.f32.mrb[0].mxu0
      %v3937 = vadd.f32 0.0, %v3936
      %v3938 = vpop.f32.mrb[0].mxu0
      %v3939 = vadd.f32 0.0, %v3938
      %3940 = vmatprep.mubr.bf16.mxu0 %v3613
      %3941 = vmatmul.mubr.bf16.gmra.mrb[0].mxu0 %v3612
      %v3942 = vpop.f32.mrb[0].mxu0
      %v3943 = vadd.f32 0.0, %v3942
      %v3944 = vpop.f32.mrb[0].mxu0
      %v3945 = vadd.f32 0.0, %v3944
      %v3946 = vpop.f32.mrb[0].mxu0
      %v3947 = vadd.f32 0.0, %v3946
      %v3948 = vpop.f32.mrb[0].mxu0
      %v3949 = vadd.f32 0.0, %v3948
      %3950 = vmatprep.mubr.bf16.mxu0 %v3615
      %3951 = vmatmul.mubr.bf16.gmra.mrb[0].mxu0 %v3614
      %v3952 = vpop.f32.mrb[0].mxu0
      %v3953 = vadd.f32 0.0, %v3952
      %v3954 = vpop.f32.mrb[0].mxu0
      %v3955 = vadd.f32 0.0, %v3954
      %v3956 = vpop.f32.mrb[0].mxu0
      %v3957 = vadd.f32 0.0, %v3956
      %v3958 = vpop.f32.mrb[0].mxu0
      %v3959 = vadd.f32 0.0, %v3958
      %3960 = vmatprep.mubr.bf16.mxu0 %v3617
      %3961 = vmatmul.mubr.bf16.gmra.mrb[0].mxu0 %v3616
      %v3962 = vpop.f32.mrb[0].mxu0
      %v3963 = vadd.f32 0.0, %v3962
      %v3964 = vpop.f32.mrb[0].mxu0
      %v3965 = vadd.f32 0.0, %v3964
      %v3966 = vpop.f32.mrb[0].mxu0
      %v3967 = vadd.f32 0.0, %v3966
      %v3968 = vpop.f32.mrb[0].mxu0
      %v3969 = vadd.f32 0.0, %v3968
      %3970 = vmatprep.mubr.bf16.mxu0 %v3619
      %3971 = vmatmul.mubr.bf16.gmra.mrb[0].mxu0 %v3618
      %v3972 = vpop.f32.mrb[0].mxu0
      %v3973 = vadd.f32 0.0, %v3972
      %v3974 = vpop.f32.mrb[0].mxu0
      %v3975 = vadd.f32 0.0, %v3974
      %v3976 = vpop.f32.mrb[0].mxu0
      %v3977 = vadd.f32 0.0, %v3976
      %v3978 = vpop.f32.mrb[0].mxu0
      %v3979 = vadd.f32 0.0, %v3978
      %3980 = vmatprep.mubr.bf16.mxu0 %v3621
      %3981 = vmatmul.mubr.bf16.gmra.mrb[0].mxu0 %v3620
      %v3982 = vpop.f32.mrb[0].mxu0
      %v3983 = vadd.f32 0.0, %v3982
      %v3984 = vpop.f32.mrb[0].mxu0
      %v3985 = vadd.f32 0.0, %v3984
      %v3986 = vpop.f32.mrb[0].mxu0
      %v3987 = vadd.f32 0.0, %v3986
      %v3988 = vpop.f32.mrb[0].mxu0
      %v3989 = vadd.f32 0.0, %v3988
      %3990 = vmatprep.mubr.bf16.mxu0 %v3623
      %3991 = vmatmul.mubr.bf16.gmra.mrb[0].mxu0 %v3622
      %v3992 = vpop.f32.mrb[0].mxu0
      %v3993 = vadd.f32 0.0, %v3992
      %v3994 = vpop.f32.mrb[0].mxu0
      %v3995 = vadd.f32 0.0, %v3994
      %v3996 = vpop.f32.mrb[0].mxu0
      %v3997 = vadd.f32 0.0, %v3996
      %v3998 = vpop.f32.mrb[0].mxu0
      %v3999 = vadd.f32 0.0, %v3998
      %4000 = vmatprep.mubr.bf16.mxu0 %v3625
      %4001 = vmatmul.mubr.bf16.gmra.mrb[0].mxu0 %v3624
      %v4002 = vpop.f32.mrb[0].mxu0
      %v4003 = vadd.f32 0.0, %v4002
      %v4004 = vpop.f32.mrb[0].mxu0
      %v4005 = vadd.f32 0.0, %v4004
      %v4006 = vpop.f32.mrb[0].mxu0
      %v4007 = vadd.f32 0.0, %v4006
      %v4008 = vpop.f32.mrb[0].mxu0
      %v4009 = vadd.f32 0.0, %v4008
      %4010 = vmatprep.mubr.bf16.mxu0 %v3627
      %4011 = vmatmul.mubr.bf16.gmra.mrb[0].mxu0 %v3626
      %v4012 = vpop.f32.mrb[0].mxu0
      %v4013 = vadd.f32 0.0, %v4012
      %v4014 = vpop.f32.mrb[0].mxu0
      %v4015 = vadd.f32 0.0, %v4014
      %v4016 = vpop.f32.mrb[0].mxu0
      %v4017 = vadd.f32 0.0, %v4016
      %v4018 = vpop.f32.mrb[0].mxu0
      %v4019 = vadd.f32 0.0, %v4018
      %4020 = vmatprep.mubr.bf16.mxu0 %v3629
      %4021 = vmatmul.mubr.bf16.gmra.mrb[0].mxu0 %v3628
      %v4022 = vpop.f32.mrb[0].mxu0
      %v4023 = vadd.f32 0.0, %v4022
      %v4024 = vpop.f32.mrb[0].mxu0
      %v4025 = vadd.f32 0.0, %v4024
      %v4026 = vpop.f32.mrb[0].mxu0
      %v4027 = vadd.f32 0.0, %v4026
      %v4028 = vpop.f32.mrb[0].mxu0
      %v4029 = vadd.f32 0.0, %v4028
      %4030 = vmatprep.mubr.bf16.mxu0 %v3631
      %4031 = vmatmul.mubr.bf16.gmra.mrb[0].mxu0 %v3630
      %v4032 = vpop.f32.mrb[0].mxu0
      %v4033 = vadd.f32 0.0, %v4032
      %v4034 = vpop.f32.mrb[0].mxu0
      %v4035 = vadd.f32 0.0, %v4034
      %v4036 = vpop.f32.mrb[0].mxu0
      %v4037 = vadd.f32 0.0, %v4036
      %v4038 = vpop.f32.mrb[0].mxu0
      %v4039 = vadd.f32 0.0, %v4038
      %4040 = vmatprep.mubr.bf16.mxu0 %v3633
      %4041 = vmatmul.mubr.bf16.gmra.mrb[0].mxu0 %v3632
      %v4042 = vpop.f32.mrb[0].mxu0
      %v4043 = vadd.f32 0.0, %v4042
      %v4044 = vpop.f32.mrb[0].mxu0
      %v4045 = vadd.f32 0.0, %v4044
      %v4046 = vpop.f32.mrb[0].mxu0
      %v4047 = vadd.f32 0.0, %v4046
      %v4048 = vpop.f32.mrb[0].mxu0
      %v4049 = vadd.f32 0.0, %v4048
      %4050 = vmatprep.mubr.bf16.mxu0 %v3635
      %4051 = vmatmul.mubr.bf16.gmra.mrb[0].mxu0 %v3634
      %v4052 = vpop.f32.mrb[0].mxu0
      %v4053 = vadd.f32 0.0, %v4052
      %v4054 = vpop.f32.mrb[0].mxu0
      %v4055 = vadd.f32 0.0, %v4054
      %v4056 = vpop.f32.mrb[0].mxu0
      %v4057 = vadd.f32 0.0, %v4056
      %v4058 = vpop.f32.mrb[0].mxu0
      %v4059 = vadd.f32 0.0, %v4058
      %4060 = vmatprep.mubr.bf16.mxu0 %v3637
      %4061 = vmatmul.mubr.bf16.gmra.mrb[0].mxu0 %v3636
      %v4062 = vpop.f32.mrb[0].mxu0
      %v4063 = vadd.f32 0.0, %v4062
      %v4064 = vpop.f32.mrb[0].mxu0
      %v4065 = vadd.f32 0.0, %v4064
      %v4066 = vpop.f32.mrb[0].mxu0
      %v4067 = vadd.f32 0.0, %v4066
      %v4068 = vpop.f32.mrb[0].mxu0
      %v4069 = vadd.f32 0.0, %v4068
      %4070 = vmatprep.mubr.bf16.mxu0 %v3639
      %4071 = vmatmul.mubr.bf16.gmra.mrb[0].mxu0 %v3638
      %v4072 = vpop.f32.mrb[0].mxu0
      %v4073 = vadd.f32 0.0, %v4072
      %v4074 = vpop.f32.mrb[0].mxu0
      %v4075 = vadd.f32 0.0, %v4074
      %v4076 = vpop.f32.mrb[0].mxu0
      %v4077 = vadd.f32 0.0, %v4076
      %v4078 = vpop.f32.mrb[0].mxu0
      %v4079 = vadd.f32 0.0, %v4078
      %4080 = vmatprep.mubr.bf16.mxu0 %v3641
      %4081 = vmatmul.mubr.bf16.gmra.mrb[0].mxu0 %v3640
      %v4082 = vpop.f32.mrb[0].mxu0
      %v4083 = vadd.f32 0.0, %v4082
      %v4084 = vpop.f32.mrb[0].mxu0
      %v4085 = vadd.f32 0.0, %v4084
      %v4086 = vpop.f32.mrb[0].mxu0
      %v4087 = vadd.f32 0.0, %v4086
      %v4088 = vpop.f32.mrb[0].mxu0
      %v4089 = vadd.f32 0.0, %v4088
      %4090 = vmatprep.mubr.bf16.mxu0 %v3643
      %4091 = vmatmul.mubr.bf16.gmra.mrb[0].mxu0 %v3642
      %v4092 = vpop.f32.mrb[0].mxu0
      %v4093 = vadd.f32 0.0, %v4092
      %v4094 = vpop.f32.mrb[0].mxu0
      %v4095 = vadd.f32 0.0, %v4094
      %v4096 = vpop.f32.mrb[0].mxu0
      %v4097 = vadd.f32 0.0, %v4096
      %v4098 = vpop.f32.mrb[0].mxu0
      %v4099 = vadd.f32 0.0, %v4098
      %4100 = vmatprep.mubr.bf16.mxu0 %v3645
      %4101 = vmatmul.mubr.bf16.gmra.mrb[0].mxu0 %v3644
      %v4102 = vpop.f32.mrb[0].mxu0
      %v4103 = vadd.f32 0.0, %v4102
      %v4104 = vpop.f32.mrb[0].mxu0
      %v4105 = vadd.f32 0.0, %v4104
      %v4106 = vpop.f32.mrb[0].mxu0
      %v4107 = vadd.f32 0.0, %v4106
      %v4108 = vpop.f32.mrb[0].mxu0
      %v4109 = vadd.f32 0.0, %v4108
      %4110 = vmatprep.mubr.bf16.mxu0 %v3647
      %4111 = vmatmul.mubr.bf16.gmra.mrb[0].mxu0 %v3646
      %v4112 = vpop.f32.mrb[0].mxu0
      %v4113 = vadd.f32 0.0, %v4112
      %v4114 = vpop.f32.mrb[0].mxu0
      %v4115 = vadd.f32 0.0, %v4114
      %v4116 = vpop.f32.mrb[0].mxu0
      %v4117 = vadd.f32 0.0, %v4116
      %v4118 = vpop.f32.mrb[0].mxu0
      %v4119 = vadd.f32 0.0, %v4118
      %4120 = vmatprep.mubr.bf16.mxu0 %v3649
      %4121 = vmatmul.mubr.bf16.gmra.mrb[0].mxu0 %v3648
      %v4122 = vpop.f32.mrb[0].mxu0
      %v4123 = vadd.f32 0.0, %v4122
      %v4124 = vpop.f32.mrb[0].mxu0
      %v4125 = vadd.f32 0.0, %v4124
      %v4126 = vpop.f32.mrb[0].mxu0
      %v4127 = vadd.f32 0.0, %v4126
      %v4128 = vpop.f32.mrb[0].mxu0
      %v4129 = vadd.f32 0.0, %v4128
      %4130 = vmatprep.mubr.bf16.mxu0 %v3651
      %4131 = vmatmul.mubr.bf16.gmra.mrb[0].mxu0 %v3650
      %v4132 = vpop.f32.mrb[0].mxu0
      %v4133 = vadd.f32 0.0, %v4132
      %v4134 = vpop.f32.mrb[0].mxu0
      %v4135 = vadd.f32 0.0, %v4134
      %v4136 = vpop.f32.mrb[0].mxu0
      %v4137 = vadd.f32 0.0, %v4136
      %v4138 = vpop.f32.mrb[0].mxu0
      %v4139 = vadd.f32 0.0, %v4138
      %4140 = vmatprep.mubr.bf16.mxu0 %v3653
      %4141 = vmatmul.mubr.bf16.gmra.mrb[0].mxu0 %v3652
      %v4142 = vpop.f32.mrb[0].mxu0
      %v4143 = vadd.f32 0.0, %v4142
      %v4144 = vpop.f32.mrb[0].mxu0
      %v4145 = vadd.f32 0.0, %v4144
      %v4146 = vpop.f32.mrb[0].mxu0
      %v4147 = vadd.f32 0.0, %v4146
      %v4148 = vpop.f32.mrb[0].mxu0
      %v4149 = vadd.f32 0.0, %v4148
      %4150 = vmatprep.mubr.bf16.mxu0 %v3655
      %4151 = vmatmul.mubr.bf16.gmra.mrb[0].mxu0 %v3654
      %v4152 = vpop.f32.mrb[0].mxu0
      %v4153 = vadd.f32 0.0, %v4152
      %v4154 = vpop.f32.mrb[0].mxu0
      %v4155 = vadd.f32 0.0, %v4154
      %v4156 = vpop.f32.mrb[0].mxu0
      %v4157 = vadd.f32 0.0, %v4156
      %v4158 = vpop.f32.mrb[0].mxu0
      %v4159 = vadd.f32 0.0, %v4158
      %4160 = vmatprep.mubr.bf16.mxu0 %v3657
      %4161 = vmatmul.mubr.bf16.gmra.mrb[0].mxu0 %v3656
      %v4162 = vpop.f32.mrb[0].mxu0
      %v4163 = vadd.f32 0.0, %v4162
      %v4164 = vpop.f32.mrb[0].mxu0
      %v4165 = vadd.f32 0.0, %v4164
      %v4166 = vpop.f32.mrb[0].mxu0
      %v4167 = vadd.f32 0.0, %v4166
      %v4168 = vpop.f32.mrb[0].mxu0
      %v4169 = vadd.f32 0.0, %v4168
      %4170 = vmatprep.mubr.bf16.mxu0 %v3659
      %4171 = vmatmul.mubr.bf16.gmra.mrb[0].mxu0 %v3658
      %v4172 = vpop.f32.mrb[0].mxu0
      %v4173 = vadd.f32 0.0, %v4172
      %v4174 = vpop.f32.mrb[0].mxu0
      %v4175 = vadd.f32 0.0, %v4174
      %v4176 = vpop.f32.mrb[0].mxu0
      %v4177 = vadd.f32 0.0, %v4176
      %v4178 = vpop.f32.mrb[0].mxu0
      %v4179 = vadd.f32 0.0, %v4178
      %4180 = vmatprep.mubr.bf16.mxu0 %v3661
      %4181 = vmatmul.mubr.bf16.gmra.mrb[0].mxu0 %v3660
      %v4182 = vpop.f32.mrb[0].mxu0
      %v4183 = vadd.f32 0.0, %v4182
      %v4184 = vpop.f32.mrb[0].mxu0
      %v4185 = vadd.f32 0.0, %v4184
      %v4186 = vpop.f32.mrb[0].mxu0
      %v4187 = vadd.f32 0.0, %v4186
      %v4188 = vpop.f32.mrb[0].mxu0
      %v4189 = vadd.f32 0.0, %v4188
      %4190 = vmatprep.mubr.bf16.mxu0 %v3663
      %4191 = vmatmul.mubr.bf16.gmra.mrb[0].mxu0 %v3662
      %v4192 = vpop.f32.mrb[0].mxu0
      %v4193 = vadd.f32 0.0, %v4192
      %v4194 = vpop.f32.mrb[0].mxu0
      %v4195 = vadd.f32 0.0, %v4194
      %v4196 = vpop.f32.mrb[0].mxu0
      %v4197 = vadd.f32 0.0, %v4196
      %v4198 = vpop.f32.mrb[0].mxu0
      %v4199 = vadd.f32 0.0, %v4198
      %4200 = vmatprep.mubr.bf16.mxu0 %v3665
      %4201 = vmatmul.mubr.bf16.gmra.mrb[0].mxu0 %v3664
      %v4202 = vpop.f32.mrb[0].mxu0
      %v4203 = vadd.f32 0.0, %v4202
      %v4204 = vpop.f32.mrb[0].mxu0
      %v4205 = vadd.f32 0.0, %v4204
      %v4206 = vpop.f32.mrb[0].mxu0
      %v4207 = vadd.f32 0.0, %v4206
      %v4208 = vpop.f32.mrb[0].mxu0
      %v4209 = vadd.f32 0.0, %v4208
      %4210 = vdwg.mxu0
      %v4211 = vpack.c.bf16 %v3897, %v3893
      %v4212 = vpack.c.bf16 %v3899, %v3895
      %v4213 = vpack.c.bf16 %v3907, %v3903
      %v4214 = vpack.c.bf16 %v3909, %v3905
      %v4215 = vpack.c.bf16 %v3917, %v3913
      %v4216 = vpack.c.bf16 %v3919, %v3915
      %v4217 = vpack.c.bf16 %v3927, %v3923
      %v4218 = vpack.c.bf16 %v3929, %v3925
      %v4219 = vpack.c.bf16 %v3937, %v3933
      %v4220 = vpack.c.bf16 %v3939, %v3935
      %v4221 = vpack.c.bf16 %v3947, %v3943
      %v4222 = vpack.c.bf16 %v3949, %v3945
      %v4223 = vpack.c.bf16 %v3957, %v3953
      %v4224 = vpack.c.bf16 %v3959, %v3955
      %v4225 = vpack.c.bf16 %v3967, %v3963
      %v4226 = vpack.c.bf16 %v3969, %v3965
      %v4227 = vpack.c.bf16 %v3977, %v3973
      %v4228 = vpack.c.bf16 %v3979, %v3975
      %v4229 = vpack.c.bf16 %v3987, %v3983
      %v4230 = vpack.c.bf16 %v3989, %v3985
      %v4231 = vpack.c.bf16 %v3997, %v3993
      %v4232 = vpack.c.bf16 %v3999, %v3995
      %v4233 = vpack.c.bf16 %v4007, %v4003
      %v4234 = vpack.c.bf16 %v4009, %v4005
      %v4235 = vpack.c.bf16 %v4017, %v4013
      %v4236 = vpack.c.bf16 %v4019, %v4015
      %v4237 = vpack.c.bf16 %v4027, %v4023
      %v4238 = vpack.c.bf16 %v4029, %v4025
      %v4239 = vpack.c.bf16 %v4037, %v4033
      %v4240 = vpack.c.bf16 %v4039, %v4035
      %v4241 = vpack.c.bf16 %v4047, %v4043
      %v4242 = vpack.c.bf16 %v4049, %v4045
      %v4243 = vpack.c.bf16 %v4057, %v4053
      %v4244 = vpack.c.bf16 %v4059, %v4055
      %v4245 = vpack.c.bf16 %v4067, %v4063
      %v4246 = vpack.c.bf16 %v4069, %v4065
      %v4247 = vpack.c.bf16 %v4077, %v4073
      %v4248 = vpack.c.bf16 %v4079, %v4075
      %v4249 = vpack.c.bf16 %v4087, %v4083
      %v4250 = vpack.c.bf16 %v4089, %v4085
      %v4251 = vpack.c.bf16 %v4097, %v4093
      %v4252 = vpack.c.bf16 %v4099, %v4095
      %v4253 = vpack.c.bf16 %v4107, %v4103
      %v4254 = vpack.c.bf16 %v4109, %v4105
      %v4255 = vpack.c.bf16 %v4117, %v4113
      %v4256 = vpack.c.bf16 %v4119, %v4115
      %v4257 = vpack.c.bf16 %v4127, %v4123
      %v4258 = vpack.c.bf16 %v4129, %v4125
      %v4259 = vpack.c.bf16 %v4137, %v4133
      %v4260 = vpack.c.bf16 %v4139, %v4135
      %v4261 = vpack.c.bf16 %v4147, %v4143
      %v4262 = vpack.c.bf16 %v4149, %v4145
      %v4263 = vpack.c.bf16 %v4157, %v4153
      %v4264 = vpack.c.bf16 %v4159, %v4155
      %v4265 = vpack.c.bf16 %v4167, %v4163
      %v4266 = vpack.c.bf16 %v4169, %v4165
      %v4267 = vpack.c.bf16 %v4177, %v4173
      %v4268 = vpack.c.bf16 %v4179, %v4175
      %v4269 = vpack.c.bf16 %v4187, %v4183
      %v4270 = vpack.c.bf16 %v4189, %v4185
      %v4271 = vpack.c.bf16 %v4197, %v4193
      %v4272 = vpack.c.bf16 %v4199, %v4195
      %v4273 = vpack.c.bf16 %v4207, %v4203
      %v4274 = vpack.c.bf16 %v4209, %v4205
      %v4275 = vld [vmem:[%s10] sm:$0x3]
      %v4278 = vunpack.c.l.s4 1966171168
      %v4279 = vunpack.c.0.s8 %v4278
      %v4280 = vlaneseq
      %v4281 = vshrl.u32 %v4280, 7
      %v4282 = vsub.s32 %v4279, %v4281
      %v4283 = vrot.slane %v4275, %v4282
      %v4284 = vcombine.high %v4283, %v4283
      %v4286 = vunpack.c.l.s4 1966171168
      %v4287 = vunpack.c.0.s8 %v4286
      %v4288 = vlaneseq
      %v4289 = vshrl.u32 %v4288, 7
      %v4290 = vsub.s32 %v4287, %v4289
      %v4291 = vrot.slane %v4283, %v4290
      %v4293 = vunpack.c.l.s4 1966171168
      %v4294 = vunpack.c.0.s8 %v4293
      %v4295 = vlaneseq
      %v4296 = vshrl.u32 %v4295, 7
      %v4297 = vsub.s32 %v4294, %v4296
      %v4298 = vrot.slane %v4284, %v4297
      %v4300 = vpack.i.b16 %v4291, %v4291
      %v4302 = vlaneseq
      %v4303 = vshrl.u32 %v4302, 7
      %v4304 = vsub.s32 0, %v4303
      %v4305 = vrot.slane %v4300, %v4304
      %v4307 = vpack.i.b16 %v4298, %v4298
      %v4309 = vlaneseq
      %v4310 = vshrl.u32 %v4309, 7
      %v4311 = vsub.s32 0, %v4310
      %v4312 = vrot.slane %v4307, %v4311
      %v4313 = vadd.bf16 %v4211, %v4305
      %v4314 = vadd.bf16 %v4212, %v4312
      %v4315 = vadd.bf16 %v4213, %v4305
      %v4316 = vadd.bf16 %v4214, %v4312
      %v4317 = vadd.bf16 %v4215, %v4305
      %v4318 = vadd.bf16 %v4216, %v4312
      %v4319 = vadd.bf16 %v4217, %v4305
      %v4320 = vadd.bf16 %v4218, %v4312
      %v4321 = vadd.bf16 %v4219, %v4305
      %v4322 = vadd.bf16 %v4220, %v4312
      %v4323 = vadd.bf16 %v4221, %v4305
      %v4324 = vadd.bf16 %v4222, %v4312
      %v4325 = vadd.bf16 %v4223, %v4305
      %v4326 = vadd.bf16 %v4224, %v4312
      %v4327 = vadd.bf16 %v4225, %v4305
      %v4328 = vadd.bf16 %v4226, %v4312
      %v4329 = vadd.bf16 %v4227, %v4305
      %v4330 = vadd.bf16 %v4228, %v4312
      %v4331 = vadd.bf16 %v4229, %v4305
      %v4332 = vadd.bf16 %v4230, %v4312
      %v4333 = vadd.bf16 %v4231, %v4305
      %v4334 = vadd.bf16 %v4232, %v4312
      %v4335 = vadd.bf16 %v4233, %v4305
      %v4336 = vadd.bf16 %v4234, %v4312
      %v4337 = vadd.bf16 %v4235, %v4305
      %v4338 = vadd.bf16 %v4236, %v4312
      %v4339 = vadd.bf16 %v4237, %v4305
      %v4340 = vadd.bf16 %v4238, %v4312
      %v4341 = vadd.bf16 %v4239, %v4305
      %v4342 = vadd.bf16 %v4240, %v4312
      %v4343 = vadd.bf16 %v4241, %v4305
      %v4344 = vadd.bf16 %v4242, %v4312
      %v4345 = vadd.bf16 %v4243, %v4305
      %v4346 = vadd.bf16 %v4244, %v4312
      %v4347 = vadd.bf16 %v4245, %v4305
      %v4348 = vadd.bf16 %v4246, %v4312
      %v4349 = vadd.bf16 %v4247, %v4305
      %v4350 = vadd.bf16 %v4248, %v4312
      %v4351 = vadd.bf16 %v4249, %v4305
      %v4352 = vadd.bf16 %v4250, %v4312
      %v4353 = vadd.bf16 %v4251, %v4305
      %v4354 = vadd.bf16 %v4252, %v4312
      %v4355 = vadd.bf16 %v4253, %v4305
      %v4356 = vadd.bf16 %v4254, %v4312
      %v4357 = vadd.bf16 %v4255, %v4305
      %v4358 = vadd.bf16 %v4256, %v4312
      %v4359 = vadd.bf16 %v4257, %v4305
      %v4360 = vadd.bf16 %v4258, %v4312
      %v4361 = vadd.bf16 %v4259, %v4305
      %v4362 = vadd.bf16 %v4260, %v4312
      %v4363 = vadd.bf16 %v4261, %v4305
      %v4364 = vadd.bf16 %v4262, %v4312
      %v4365 = vadd.bf16 %v4263, %v4305
      %v4366 = vadd.bf16 %v4264, %v4312
      %v4367 = vadd.bf16 %v4265, %v4305
      %v4368 = vadd.bf16 %v4266, %v4312
      %v4369 = vadd.bf16 %v4267, %v4305
      %v4370 = vadd.bf16 %v4268, %v4312
      %v4371 = vadd.bf16 %v4269, %v4305
      %v4372 = vadd.bf16 %v4270, %v4312
      %v4373 = vadd.bf16 %v4271, %v4305
      %v4374 = vadd.bf16 %v4272, %v4312
      %v4375 = vadd.bf16 %v4273, %v4305
      %v4376 = vadd.bf16 %v4274, %v4312
      %v4377 = vmax.bf16 %v4313, 0
      %v4378 = vmax.bf16 %v4314, 0
      %v4379 = vmax.bf16 %v4315, 0
      %v4380 = vmax.bf16 %v4316, 0
      %v4381 = vmax.bf16 %v4317, 0
      %v4382 = vmax.bf16 %v4318, 0
      %v4383 = vmax.bf16 %v4319, 0
      %v4384 = vmax.bf16 %v4320, 0
      %v4385 = vmax.bf16 %v4321, 0
      %v4386 = vmax.bf16 %v4322, 0
      %v4387 = vmax.bf16 %v4323, 0
      %v4388 = vmax.bf16 %v4324, 0
      %v4389 = vmax.bf16 %v4325, 0
      %v4390 = vmax.bf16 %v4326, 0
      %v4391 = vmax.bf16 %v4327, 0
      %v4392 = vmax.bf16 %v4328, 0
      %v4393 = vmax.bf16 %v4329, 0
      %v4394 = vmax.bf16 %v4330, 0
      %v4395 = vmax.bf16 %v4331, 0
      %v4396 = vmax.bf16 %v4332, 0
      %v4397 = vmax.bf16 %v4333, 0
      %v4398 = vmax.bf16 %v4334, 0
      %v4399 = vmax.bf16 %v4335, 0
      %v4400 = vmax.bf16 %v4336, 0
      %v4401 = vmax.bf16 %v4337, 0
      %v4402 = vmax.bf16 %v4338, 0
      %v4403 = vmax.bf16 %v4339, 0
      %v4404 = vmax.bf16 %v4340, 0
      %v4405 = vmax.bf16 %v4341, 0
      %v4406 = vmax.bf16 %v4342, 0
      %v4407 = vmax.bf16 %v4343, 0
      %v4408 = vmax.bf16 %v4344, 0
      %v4409 = vmax.bf16 %v4345, 0
      %v4410 = vmax.bf16 %v4346, 0
      %v4411 = vmax.bf16 %v4347, 0
      %v4412 = vmax.bf16 %v4348, 0
      %v4413 = vmax.bf16 %v4349, 0
      %v4414 = vmax.bf16 %v4350, 0
      %v4415 = vmax.bf16 %v4351, 0
      %v4416 = vmax.bf16 %v4352, 0
      %v4417 = vmax.bf16 %v4353, 0
      %v4418 = vmax.bf16 %v4354, 0
      %v4419 = vmax.bf16 %v4355, 0
      %v4420 = vmax.bf16 %v4356, 0
      %v4421 = vmax.bf16 %v4357, 0
      %v4422 = vmax.bf16 %v4358, 0
      %v4423 = vmax.bf16 %v4359, 0
      %v4424 = vmax.bf16 %v4360, 0
      %v4425 = vmax.bf16 %v4361, 0
      %v4426 = vmax.bf16 %v4362, 0
      %v4427 = vmax.bf16 %v4363, 0
      %v4428 = vmax.bf16 %v4364, 0
      %v4429 = vmax.bf16 %v4365, 0
      %v4430 = vmax.bf16 %v4366, 0
      %v4431 = vmax.bf16 %v4367, 0
      %v4432 = vmax.bf16 %v4368, 0
      %v4433 = vmax.bf16 %v4369, 0
      %v4434 = vmax.bf16 %v4370, 0
      %v4435 = vmax.bf16 %v4371, 0
      %v4436 = vmax.bf16 %v4372, 0
      %v4437 = vmax.bf16 %v4373, 0
      %v4438 = vmax.bf16 %v4374, 0
      %v4439 = vmax.bf16 %v4375, 0
      %v4440 = vmax.bf16 %v4376, 0
      %v4441 = vld [vmem:[%s11] sm:$0xf]
      %v4442 = vld [vmem:[%s11 + $0x4] sm:$0xf]
      %v4443 = vld [vmem:[%s11 + $0x8] sm:$0xf]
      %v4444 = vld [vmem:[%s11 + $0xc] sm:$0xf]
      %v4445 = vld [vmem:[%s11 + $0x10] sm:$0xf]
      %v4446 = vld [vmem:[%s11 + $0x14] sm:$0xf]
      %v4447 = vld [vmem:[%s11 + $0x18] sm:$0xf]
      %v4448 = vld [vmem:[%s11 + $0x1c] sm:$0xf]
      %v4449 = vld [vmem:[%s11 + $0x20] sm:$0xf]
      %v4450 = vld [vmem:[%s11 + $0x24] sm:$0xf]
      %v4451 = vld [vmem:[%s11 + $0x28] sm:$0xf]
      %v4452 = vld [vmem:[%s11 + $0x2c] sm:$0xf]
      %v4453 = vld [vmem:[%s11 + $0x30] sm:$0xf]
      %v4454 = vld [vmem:[%s11 + $0x34] sm:$0xf]
      %v4455 = vld [vmem:[%s11 + $0x38] sm:$0xf]
      %v4456 = vld [vmem:[%s11 + $0x3c] sm:$0xf]
      %v4457 = vld [vmem:[%s11 + $0x40] sm:$0xf]
      %v4458 = vld [vmem:[%s11 + $0x44] sm:$0xf]
      %v4459 = vld [vmem:[%s11 + $0x48] sm:$0xf]
      %v4460 = vld [vmem:[%s11 + $0x4c] sm:$0xf]
      %v4461 = vld [vmem:[%s11 + $0x50] sm:$0xf]
      %v4462 = vld [vmem:[%s11 + $0x54] sm:$0xf]
      %v4463 = vld [vmem:[%s11 + $0x58] sm:$0xf]
      %v4464 = vld [vmem:[%s11 + $0x5c] sm:$0xf]
      %v4465 = vld [vmem:[%s11 + $0x60] sm:$0xf]
      %v4466 = vld [vmem:[%s11 + $0x64] sm:$0xf]
      %v4467 = vld [vmem:[%s11 + $0x68] sm:$0xf]
      %v4468 = vld [vmem:[%s11 + $0x6c] sm:$0xf]
      %v4469 = vld [vmem:[%s11 + $0x70] sm:$0xf]
      %v4470 = vld [vmem:[%s11 + $0x74] sm:$0xf]
      %v4471 = vld [vmem:[%s11 + $0x78] sm:$0xf]
      %v4472 = vld [vmem:[%s11 + $0x7c] sm:$0xf]
      %v4505 = vunpack.c.l.b16 %v4441
      %v4506 = vunpack.c.l.b16 %v4442
      %v4507 = vunpack.c.l.b16 %v4443
      %v4508 = vunpack.c.l.b16 %v4444
      %v4509 = vunpack.c.l.b16 %v4445
      %v4510 = vunpack.c.l.b16 %v4446
      %v4511 = vunpack.c.l.b16 %v4447
      %v4512 = vunpack.c.l.b16 %v4448
      %v4513 = vunpack.c.l.b16 %v4449
      %v4514 = vunpack.c.l.b16 %v4450
      %v4515 = vunpack.c.l.b16 %v4451
      %v4516 = vunpack.c.l.b16 %v4452
      %v4517 = vunpack.c.l.b16 %v4453
      %v4518 = vunpack.c.l.b16 %v4454
      %v4519 = vunpack.c.l.b16 %v4455
      %v4520 = vunpack.c.l.b16 %v4456
      %v4521 = vunpack.c.l.b16 %v4457
      %v4522 = vunpack.c.l.b16 %v4458
      %v4523 = vunpack.c.l.b16 %v4459
      %v4524 = vunpack.c.l.b16 %v4460
      %v4525 = vunpack.c.l.b16 %v4461
      %v4526 = vunpack.c.l.b16 %v4462
      %v4527 = vunpack.c.l.b16 %v4463
      %v4528 = vunpack.c.l.b16 %v4464
      %v4529 = vunpack.c.l.b16 %v4465
      %v4530 = vunpack.c.l.b16 %v4466
      %v4531 = vunpack.c.l.b16 %v4467
      %v4532 = vunpack.c.l.b16 %v4468
      %v4533 = vunpack.c.l.b16 %v4469
      %v4534 = vunpack.c.l.b16 %v4470
      %v4535 = vunpack.c.l.b16 %v4471
      %v4536 = vunpack.c.l.b16 %v4472
      %v4537 = vpack.c.b16 %v4506, %v4505
      %v4538 = vpack.c.b16 %v4508, %v4507
      %v4539 = vpack.c.b16 %v4510, %v4509
      %v4540 = vpack.c.b16 %v4512, %v4511
      %v4541 = vpack.c.b16 %v4514, %v4513
      %v4542 = vpack.c.b16 %v4516, %v4515
      %v4543 = vpack.c.b16 %v4518, %v4517
      %v4544 = vpack.c.b16 %v4520, %v4519
      %v4545 = vpack.c.b16 %v4522, %v4521
      %v4546 = vpack.c.b16 %v4524, %v4523
      %v4547 = vpack.c.b16 %v4526, %v4525
      %v4548 = vpack.c.b16 %v4528, %v4527
      %v4549 = vpack.c.b16 %v4530, %v4529
      %v4550 = vpack.c.b16 %v4532, %v4531
      %v4551 = vpack.c.b16 %v4534, %v4533
      %v4552 = vpack.c.b16 %v4536, %v4535
      %4569 = vmatprep.subr.bf16.mxu0 0
      %4570 = vmatpush1.bf16.msra.mxu0 %v4537
      %4571 = vmatprep.subr.bf16.mxu0 0
      %4572 = vmatpush1.bf16.msra.mxu0 %v4538
      %4573 = vmatprep.subr.bf16.mxu0 0
      %4574 = vmatpush1.bf16.msra.mxu0 %v4539
      %4575 = vmatprep.subr.bf16.mxu0 0
      %4576 = vmatpush1.bf16.msra.mxu0 %v4540
      %4577 = vmatprep.subr.bf16.mxu0 0
      %4578 = vmatpush1.bf16.msra.mxu0 %v4541
      %4579 = vmatprep.subr.bf16.mxu0 0
      %4580 = vmatpush1.bf16.msra.mxu0 %v4542
      %4581 = vmatprep.subr.bf16.mxu0 0
      %4582 = vmatpush1.bf16.msra.mxu0 %v4543
      %4583 = vmatprep.subr.bf16.mxu0 0
      %4584 = vmatpush1.bf16.msra.mxu0 %v4544
      %4585 = vmatprep.subr.bf16.mxu0 0
      %4586 = vmatpush1.bf16.msra.mxu0 %v4545
      %4587 = vmatprep.subr.bf16.mxu0 0
      %4588 = vmatpush1.bf16.msra.mxu0 %v4546
      %4589 = vmatprep.subr.bf16.mxu0 0
      %4590 = vmatpush1.bf16.msra.mxu0 %v4547
      %4591 = vmatprep.subr.bf16.mxu0 0
      %4592 = vmatpush1.bf16.msra.mxu0 %v4548
      %4593 = vmatprep.subr.bf16.mxu0 0
      %4594 = vmatpush1.bf16.msra.mxu0 %v4549
      %4595 = vmatprep.subr.bf16.mxu0 0
      %4596 = vmatpush1.bf16.msra.mxu0 %v4550
      %4597 = vmatprep.subr.bf16.mxu0 0
      %4598 = vmatpush1.bf16.msra.mxu0 %v4551
      %4599 = vmatprep.subr.bf16.mxu0 0
      %4600 = vmatpush1.bf16.msra.mxu0 %v4552
      %4601 = vmatprep.mubr.bf16.mxu0 %v4378
      %4602 = vmatmul.mubr.bf16.gmra.mrb[0].mxu0 %v4377
      %v4603 = vpop.f32.mrb[0].mxu0
      %v4604 = vadd.f32 0.0, %v4603
      %v4605 = vpop.f32.mrb[0].mxu0
      %v4606 = vpop.f32.mrb[0].mxu0
      %v4607 = vadd.f32 0.0, %v4606
      %v4608 = vpop.f32.mrb[0].mxu0
      %4609 = vmatprep.mubr.bf16.mxu0 %v4380
      %4610 = vmatmul.mubr.bf16.gmra.mrb[0].mxu0 %v4379
      %v4611 = vpop.f32.mrb[0].mxu0
      %v4612 = vadd.f32 0.0, %v4611
      %v4613 = vpop.f32.mrb[0].mxu0
      %v4614 = vpop.f32.mrb[0].mxu0
      %v4615 = vadd.f32 0.0, %v4614
      %v4616 = vpop.f32.mrb[0].mxu0
      %4617 = vmatprep.mubr.bf16.mxu0 %v4382
      %4618 = vmatmul.mubr.bf16.gmra.mrb[0].mxu0 %v4381
      %v4619 = vpop.f32.mrb[0].mxu0
      %v4620 = vadd.f32 0.0, %v4619
      %v4621 = vpop.f32.mrb[0].mxu0
      %v4622 = vpop.f32.mrb[0].mxu0
      %v4623 = vadd.f32 0.0, %v4622
      %v4624 = vpop.f32.mrb[0].mxu0
      %4625 = vmatprep.mubr.bf16.mxu0 %v4384
      %4626 = vmatmul.mubr.bf16.gmra.mrb[0].mxu0 %v4383
      %v4627 = vpop.f32.mrb[0].mxu0
      %v4628 = vadd.f32 0.0, %v4627
      %v4629 = vpop.f32.mrb[0].mxu0
      %v4630 = vpop.f32.mrb[0].mxu0
      %v4631 = vadd.f32 0.0, %v4630
      %v4632 = vpop.f32.mrb[0].mxu0
      %4633 = vmatprep.mubr.bf16.mxu0 %v4386
      %4634 = vmatmul.mubr.bf16.gmra.mrb[0].mxu0 %v4385
      %v4635 = vpop.f32.mrb[0].mxu0
      %v4636 = vadd.f32 0.0, %v4635
      %v4637 = vpop.f32.mrb[0].mxu0
      %v4638 = vpop.f32.mrb[0].mxu0
      %v4639 = vadd.f32 0.0, %v4638
      %v4640 = vpop.f32.mrb[0].mxu0
      %4641 = vmatprep.mubr.bf16.mxu0 %v4388
      %4642 = vmatmul.mubr.bf16.gmra.mrb[0].mxu0 %v4387
      %v4643 = vpop.f32.mrb[0].mxu0
      %v4644 = vadd.f32 0.0, %v4643
      %v4645 = vpop.f32.mrb[0].mxu0
      %v4646 = vpop.f32.mrb[0].mxu0
      %v4647 = vadd.f32 0.0, %v4646
      %v4648 = vpop.f32.mrb[0].mxu0
      %4649 = vmatprep.mubr.bf16.mxu0 %v4390
      %4650 = vmatmul.mubr.bf16.gmra.mrb[0].mxu0 %v4389
      %v4651 = vpop.f32.mrb[0].mxu0
      %v4652 = vadd.f32 0.0, %v4651
      %v4653 = vpop.f32.mrb[0].mxu0
      %v4654 = vpop.f32.mrb[0].mxu0
      %v4655 = vadd.f32 0.0, %v4654
      %v4656 = vpop.f32.mrb[0].mxu0
      %4657 = vmatprep.mubr.bf16.mxu0 %v4392
      %4658 = vmatmul.mubr.bf16.gmra.mrb[0].mxu0 %v4391
      %v4659 = vpop.f32.mrb[0].mxu0
      %v4660 = vadd.f32 0.0, %v4659
      %v4661 = vpop.f32.mrb[0].mxu0
      %v4662 = vpop.f32.mrb[0].mxu0
      %v4663 = vadd.f32 0.0, %v4662
      %v4664 = vpop.f32.mrb[0].mxu0
      %4665 = vmatprep.mubr.bf16.mxu0 %v4394
      %4666 = vmatmul.mubr.bf16.gmra.mrb[0].mxu0 %v4393
      %v4667 = vpop.f32.mrb[0].mxu0
      %v4668 = vadd.f32 0.0, %v4667
      %v4669 = vpop.f32.mrb[0].mxu0
      %v4670 = vpop.f32.mrb[0].mxu0
      %v4671 = vadd.f32 0.0, %v4670
      %v4672 = vpop.f32.mrb[0].mxu0
      %4673 = vmatprep.mubr.bf16.mxu0 %v4396
      %4674 = vmatmul.mubr.bf16.gmra.mrb[0].mxu0 %v4395
      %v4675 = vpop.f32.mrb[0].mxu0
      %v4676 = vadd.f32 0.0, %v4675
      %v4677 = vpop.f32.mrb[0].mxu0
      %v4678 = vpop.f32.mrb[0].mxu0
      %v4679 = vadd.f32 0.0, %v4678
      %v4680 = vpop.f32.mrb[0].mxu0
      %4681 = vmatprep.mubr.bf16.mxu0 %v4398
      %4682 = vmatmul.mubr.bf16.gmra.mrb[0].mxu0 %v4397
      %v4683 = vpop.f32.mrb[0].mxu0
      %v4684 = vadd.f32 0.0, %v4683
      %v4685 = vpop.f32.mrb[0].mxu0
      %v4686 = vpop.f32.mrb[0].mxu0
      %v4687 = vadd.f32 0.0, %v4686
      %v4688 = vpop.f32.mrb[0].mxu0
      %4689 = vmatprep.mubr.bf16.mxu0 %v4400
      %4690 = vmatmul.mubr.bf16.gmra.mrb[0].mxu0 %v4399
      %v4691 = vpop.f32.mrb[0].mxu0
      %v4692 = vadd.f32 0.0, %v4691
      %v4693 = vpop.f32.mrb[0].mxu0
      %v4694 = vpop.f32.mrb[0].mxu0
      %v4695 = vadd.f32 0.0, %v4694
      %v4696 = vpop.f32.mrb[0].mxu0
      %4697 = vmatprep.mubr.bf16.mxu0 %v4402
      %4698 = vmatmul.mubr.bf16.gmra.mrb[0].mxu0 %v4401
      %v4699 = vpop.f32.mrb[0].mxu0
      %v4700 = vadd.f32 0.0, %v4699
      %v4701 = vpop.f32.mrb[0].mxu0
      %v4702 = vpop.f32.mrb[0].mxu0
      %v4703 = vadd.f32 0.0, %v4702
      %v4704 = vpop.f32.mrb[0].mxu0
      %4705 = vmatprep.mubr.bf16.mxu0 %v4404
      %4706 = vmatmul.mubr.bf16.gmra.mrb[0].mxu0 %v4403
      %v4707 = vpop.f32.mrb[0].mxu0
      %v4708 = vadd.f32 0.0, %v4707
      %v4709 = vpop.f32.mrb[0].mxu0
      %v4710 = vpop.f32.mrb[0].mxu0
      %v4711 = vadd.f32 0.0, %v4710
      %v4712 = vpop.f32.mrb[0].mxu0
      %4713 = vmatprep.mubr.bf16.mxu0 %v4406
      %4714 = vmatmul.mubr.bf16.gmra.mrb[0].mxu0 %v4405
      %v4715 = vpop.f32.mrb[0].mxu0
      %v4716 = vadd.f32 0.0, %v4715
      %v4717 = vpop.f32.mrb[0].mxu0
      %v4718 = vpop.f32.mrb[0].mxu0
      %v4719 = vadd.f32 0.0, %v4718
      %v4720 = vpop.f32.mrb[0].mxu0
      %4721 = vmatprep.mubr.bf16.mxu0 %v4408
      %4722 = vmatmul.mubr.bf16.gmra.mrb[0].mxu0 %v4407
      %v4723 = vpop.f32.mrb[0].mxu0
      %v4724 = vadd.f32 0.0, %v4723
      %v4725 = vpop.f32.mrb[0].mxu0
      %v4726 = vpop.f32.mrb[0].mxu0
      %v4727 = vadd.f32 0.0, %v4726
      %v4728 = vpop.f32.mrb[0].mxu0
      %4729 = vmatprep.mubr.bf16.mxu0 %v4410
      %4730 = vmatmul.mubr.bf16.gmra.mrb[0].mxu0 %v4409
      %v4731 = vpop.f32.mrb[0].mxu0
      %v4732 = vadd.f32 0.0, %v4731
      %v4733 = vpop.f32.mrb[0].mxu0
      %v4734 = vpop.f32.mrb[0].mxu0
      %v4735 = vadd.f32 0.0, %v4734
      %v4736 = vpop.f32.mrb[0].mxu0
      %4737 = vmatprep.mubr.bf16.mxu0 %v4412
      %4738 = vmatmul.mubr.bf16.gmra.mrb[0].mxu0 %v4411
      %v4739 = vpop.f32.mrb[0].mxu0
      %v4740 = vadd.f32 0.0, %v4739
      %v4741 = vpop.f32.mrb[0].mxu0
      %v4742 = vpop.f32.mrb[0].mxu0
      %v4743 = vadd.f32 0.0, %v4742
      %v4744 = vpop.f32.mrb[0].mxu0
      %4745 = vmatprep.mubr.bf16.mxu0 %v4414
      %4746 = vmatmul.mubr.bf16.gmra.mrb[0].mxu0 %v4413
      %v4747 = vpop.f32.mrb[0].mxu0
      %v4748 = vadd.f32 0.0, %v4747
      %v4749 = vpop.f32.mrb[0].mxu0
      %v4750 = vpop.f32.mrb[0].mxu0
      %v4751 = vadd.f32 0.0, %v4750
      %v4752 = vpop.f32.mrb[0].mxu0
      %4753 = vmatprep.mubr.bf16.mxu0 %v4416
      %4754 = vmatmul.mubr.bf16.gmra.mrb[0].mxu0 %v4415
      %v4755 = vpop.f32.mrb[0].mxu0
      %v4756 = vadd.f32 0.0, %v4755
      %v4757 = vpop.f32.mrb[0].mxu0
      %v4758 = vpop.f32.mrb[0].mxu0
      %v4759 = vadd.f32 0.0, %v4758
      %v4760 = vpop.f32.mrb[0].mxu0
      %4761 = vmatprep.mubr.bf16.mxu0 %v4418
      %4762 = vmatmul.mubr.bf16.gmra.mrb[0].mxu0 %v4417
      %v4763 = vpop.f32.mrb[0].mxu0
      %v4764 = vadd.f32 0.0, %v4763
      %v4765 = vpop.f32.mrb[0].mxu0
      %v4766 = vpop.f32.mrb[0].mxu0
      %v4767 = vadd.f32 0.0, %v4766
      %v4768 = vpop.f32.mrb[0].mxu0
      %4769 = vmatprep.mubr.bf16.mxu0 %v4420
      %4770 = vmatmul.mubr.bf16.gmra.mrb[0].mxu0 %v4419
      %v4771 = vpop.f32.mrb[0].mxu0
      %v4772 = vadd.f32 0.0, %v4771
      %v4773 = vpop.f32.mrb[0].mxu0
      %v4774 = vpop.f32.mrb[0].mxu0
      %v4775 = vadd.f32 0.0, %v4774
      %v4776 = vpop.f32.mrb[0].mxu0
      %4777 = vmatprep.mubr.bf16.mxu0 %v4422
      %4778 = vmatmul.mubr.bf16.gmra.mrb[0].mxu0 %v4421
      %v4779 = vpop.f32.mrb[0].mxu0
      %v4780 = vadd.f32 0.0, %v4779
      %v4781 = vpop.f32.mrb[0].mxu0
      %v4782 = vpop.f32.mrb[0].mxu0
      %v4783 = vadd.f32 0.0, %v4782
      %v4784 = vpop.f32.mrb[0].mxu0
      %4785 = vmatprep.mubr.bf16.mxu0 %v4424
      %4786 = vmatmul.mubr.bf16.gmra.mrb[0].mxu0 %v4423
      %v4787 = vpop.f32.mrb[0].mxu0
      %v4788 = vadd.f32 0.0, %v4787
      %v4789 = vpop.f32.mrb[0].mxu0
      %v4790 = vpop.f32.mrb[0].mxu0
      %v4791 = vadd.f32 0.0, %v4790
      %v4792 = vpop.f32.mrb[0].mxu0
      %4793 = vmatprep.mubr.bf16.mxu0 %v4426
      %4794 = vmatmul.mubr.bf16.gmra.mrb[0].mxu0 %v4425
      %v4795 = vpop.f32.mrb[0].mxu0
      %v4796 = vadd.f32 0.0, %v4795
      %v4797 = vpop.f32.mrb[0].mxu0
      %v4798 = vpop.f32.mrb[0].mxu0
      %v4799 = vadd.f32 0.0, %v4798
      %v4800 = vpop.f32.mrb[0].mxu0
      %4801 = vmatprep.mubr.bf16.mxu0 %v4428
      %4802 = vmatmul.mubr.bf16.gmra.mrb[0].mxu0 %v4427
      %v4803 = vpop.f32.mrb[0].mxu0
      %v4804 = vadd.f32 0.0, %v4803
      %v4805 = vpop.f32.mrb[0].mxu0
      %v4806 = vpop.f32.mrb[0].mxu0
      %v4807 = vadd.f32 0.0, %v4806
      %v4808 = vpop.f32.mrb[0].mxu0
      %4809 = vmatprep.mubr.bf16.mxu0 %v4430
      %4810 = vmatmul.mubr.bf16.gmra.mrb[0].mxu0 %v4429
      %v4811 = vpop.f32.mrb[0].mxu0
      %v4812 = vadd.f32 0.0, %v4811
      %v4813 = vpop.f32.mrb[0].mxu0
      %v4814 = vpop.f32.mrb[0].mxu0
      %v4815 = vadd.f32 0.0, %v4814
      %v4816 = vpop.f32.mrb[0].mxu0
      %4817 = vmatprep.mubr.bf16.mxu0 %v4432
      %4818 = vmatmul.mubr.bf16.gmra.mrb[0].mxu0 %v4431
      %v4819 = vpop.f32.mrb[0].mxu0
      %v4820 = vadd.f32 0.0, %v4819
      %v4821 = vpop.f32.mrb[0].mxu0
      %v4822 = vpop.f32.mrb[0].mxu0
      %v4823 = vadd.f32 0.0, %v4822
      %v4824 = vpop.f32.mrb[0].mxu0
      %4825 = vmatprep.mubr.bf16.mxu0 %v4434
      %4826 = vmatmul.mubr.bf16.gmra.mrb[0].mxu0 %v4433
      %v4827 = vpop.f32.mrb[0].mxu0
      %v4828 = vadd.f32 0.0, %v4827
      %v4829 = vpop.f32.mrb[0].mxu0
      %v4830 = vpop.f32.mrb[0].mxu0
      %v4831 = vadd.f32 0.0, %v4830
      %v4832 = vpop.f32.mrb[0].mxu0
      %4833 = vmatprep.mubr.bf16.mxu0 %v4436
      %4834 = vmatmul.mubr.bf16.gmra.mrb[0].mxu0 %v4435
      %v4835 = vpop.f32.mrb[0].mxu0
      %v4836 = vadd.f32 0.0, %v4835
      %v4837 = vpop.f32.mrb[0].mxu0
      %v4838 = vpop.f32.mrb[0].mxu0
      %v4839 = vadd.f32 0.0, %v4838
      %v4840 = vpop.f32.mrb[0].mxu0
      %4841 = vmatprep.mubr.bf16.mxu0 %v4438
      %4842 = vmatmul.mubr.bf16.gmra.mrb[0].mxu0 %v4437
      %v4843 = vpop.f32.mrb[0].mxu0
      %v4844 = vadd.f32 0.0, %v4843
      %v4845 = vpop.f32.mrb[0].mxu0
      %v4846 = vpop.f32.mrb[0].mxu0
      %v4847 = vadd.f32 0.0, %v4846
      %v4848 = vpop.f32.mrb[0].mxu0
      %4849 = vmatprep.mubr.bf16.mxu0 %v4440
      %4850 = vmatmul.mubr.bf16.gmra.mrb[0].mxu0 %v4439
      %v4851 = vpop.f32.mrb[0].mxu0
      %v4852 = vadd.f32 0.0, %v4851
      %v4853 = vpop.f32.mrb[0].mxu0
      %v4854 = vpop.f32.mrb[0].mxu0
      %v4855 = vadd.f32 0.0, %v4854
      %v4856 = vpop.f32.mrb[0].mxu0
      %4857 = vdwg.mxu0
      %v4858 = vpack.c.bf16 %v4607, %v4604
      %v4859 = vpack.c.bf16 %v4615, %v4612
      %v4860 = vpack.c.bf16 %v4623, %v4620
      %v4861 = vpack.c.bf16 %v4631, %v4628
      %v4862 = vpack.c.bf16 %v4639, %v4636
      %v4863 = vpack.c.bf16 %v4647, %v4644
      %v4864 = vpack.c.bf16 %v4655, %v4652
      %v4865 = vpack.c.bf16 %v4663, %v4660
      %v4866 = vpack.c.bf16 %v4671, %v4668
      %v4867 = vpack.c.bf16 %v4679, %v4676
      %v4868 = vpack.c.bf16 %v4687, %v4684
      %v4869 = vpack.c.bf16 %v4695, %v4692
      %v4870 = vpack.c.bf16 %v4703, %v4700
      %v4871 = vpack.c.bf16 %v4711, %v4708
      %v4872 = vpack.c.bf16 %v4719, %v4716
      %v4873 = vpack.c.bf16 %v4727, %v4724
      %v4874 = vpack.c.bf16 %v4735, %v4732
      %v4875 = vpack.c.bf16 %v4743, %v4740
      %v4876 = vpack.c.bf16 %v4751, %v4748
      %v4877 = vpack.c.bf16 %v4759, %v4756
      %v4878 = vpack.c.bf16 %v4767, %v4764
      %v4879 = vpack.c.bf16 %v4775, %v4772
      %v4880 = vpack.c.bf16 %v4783, %v4780
      %v4881 = vpack.c.bf16 %v4791, %v4788
      %v4882 = vpack.c.bf16 %v4799, %v4796
      %v4883 = vpack.c.bf16 %v4807, %v4804
      %v4884 = vpack.c.bf16 %v4815, %v4812
      %v4885 = vpack.c.bf16 %v4823, %v4820
      %v4886 = vpack.c.bf16 %v4831, %v4828
      %v4887 = vpack.c.bf16 %v4839, %v4836
      %v4888 = vpack.c.bf16 %v4847, %v4844
      %v4889 = vpack.c.bf16 %v4855, %v4852
      %v4890 = vld [vmem:[%s12] sm:$0x1]
      %v4892 = vpack.i.b16 %v4890, %v4890
      %v4894 = vlaneseq
      %v4895 = vshrl.u32 %v4894, 7
      %v4896 = vsub.s32 0, %v4895
      %v4897 = vrot.slane %v4892, %v4896
      %v4898 = vadd.bf16 %v4858, %v4897
      %v4899 = vadd.bf16 %v4859, %v4897
      %v4900 = vadd.bf16 %v4860, %v4897
      %v4901 = vadd.bf16 %v4861, %v4897
      %v4902 = vadd.bf16 %v4862, %v4897
      %v4903 = vadd.bf16 %v4863, %v4897
      %v4904 = vadd.bf16 %v4864, %v4897
      %v4905 = vadd.bf16 %v4865, %v4897
      %v4906 = vadd.bf16 %v4866, %v4897
      %v4907 = vadd.bf16 %v4867, %v4897
      %v4908 = vadd.bf16 %v4868, %v4897
      %v4909 = vadd.bf16 %v4869, %v4897
      %v4910 = vadd.bf16 %v4870, %v4897
      %v4911 = vadd.bf16 %v4871, %v4897
      %v4912 = vadd.bf16 %v4872, %v4897
      %v4913 = vadd.bf16 %v4873, %v4897
      %v4914 = vadd.bf16 %v4874, %v4897
      %v4915 = vadd.bf16 %v4875, %v4897
      %v4916 = vadd.bf16 %v4876, %v4897
      %v4917 = vadd.bf16 %v4877, %v4897
      %v4918 = vadd.bf16 %v4878, %v4897
      %v4919 = vadd.bf16 %v4879, %v4897
      %v4920 = vadd.bf16 %v4880, %v4897
      %v4921 = vadd.bf16 %v4881, %v4897
      %v4922 = vadd.bf16 %v4882, %v4897
      %v4923 = vadd.bf16 %v4883, %v4897
      %v4924 = vadd.bf16 %v4884, %v4897
      %v4925 = vadd.bf16 %v4885, %v4897
      %v4926 = vadd.bf16 %v4886, %v4897
      %v4927 = vadd.bf16 %v4887, %v4897
      %v4928 = vadd.bf16 %v4888, %v4897
      %v4929 = vadd.bf16 %v4889, %v4897
      %v4930 = vmax.bf16 %v4898, 0
      %v4931 = vmax.bf16 %v4899, 0
      %v4932 = vmax.bf16 %v4900, 0
      %v4933 = vmax.bf16 %v4901, 0
      %v4934 = vmax.bf16 %v4902, 0
      %v4935 = vmax.bf16 %v4903, 0
      %v4936 = vmax.bf16 %v4904, 0
      %v4937 = vmax.bf16 %v4905, 0
      %v4938 = vmax.bf16 %v4906, 0
      %v4939 = vmax.bf16 %v4907, 0
      %v4940 = vmax.bf16 %v4908, 0
      %v4941 = vmax.bf16 %v4909, 0
      %v4942 = vmax.bf16 %v4910, 0
      %v4943 = vmax.bf16 %v4911, 0
      %v4944 = vmax.bf16 %v4912, 0
      %v4945 = vmax.bf16 %v4913, 0
      %v4946 = vmax.bf16 %v4914, 0
      %v4947 = vmax.bf16 %v4915, 0
      %v4948 = vmax.bf16 %v4916, 0
      %v4949 = vmax.bf16 %v4917, 0
      %v4950 = vmax.bf16 %v4918, 0
      %v4951 = vmax.bf16 %v4919, 0
      %v4952 = vmax.bf16 %v4920, 0
      %v4953 = vmax.bf16 %v4921, 0
      %v4954 = vmax.bf16 %v4922, 0
      %v4955 = vmax.bf16 %v4923, 0
      %v4956 = vmax.bf16 %v4924, 0
      %v4957 = vmax.bf16 %v4925, 0
      %v4958 = vmax.bf16 %v4926, 0
      %v4959 = vmax.bf16 %v4927, 0
      %v4960 = vmax.bf16 %v4928, 0
      %v4961 = vmax.bf16 %v4929, 0
      %v4962 = vld [vmem:[%s13] sm:$0xf]
      %v4963 = vld [vmem:[%s13 + $0x4] sm:$0xf]
      %v4964 = vld [vmem:[%s13 + $0x8] sm:$0xf]
      %v4965 = vld [vmem:[%s13 + $0xc] sm:$0xf]
      %v4966 = vld [vmem:[%s13 + $0x10] sm:$0xf]
      %v4967 = vld [vmem:[%s13 + $0x14] sm:$0xf]
      %v4968 = vld [vmem:[%s13 + $0x18] sm:$0xf]
      %v4969 = vld [vmem:[%s13 + $0x1c] sm:$0xf]
      %v4978 = vunpack.c.l.b16 %v4962
      %v4979 = vunpack.c.l.b16 %v4963
      %v4980 = vunpack.c.l.b16 %v4964
      %v4981 = vunpack.c.l.b16 %v4965
      %v4982 = vunpack.c.l.b16 %v4966
      %v4983 = vunpack.c.l.b16 %v4967
      %v4984 = vunpack.c.l.b16 %v4968
      %v4985 = vunpack.c.l.b16 %v4969
      %v4986 = vpack.c.b16 %v4979, %v4978
      %v4987 = vpack.c.b16 %v4981, %v4980
      %v4988 = vpack.c.b16 %v4983, %v4982
      %v4989 = vpack.c.b16 %v4985, %v4984
      %vm4994 = vcmask 523264
      %v4996 = vsel %vm4994, %v4930, 0
      %v4999 = vsel %vm4994, %v4931, 0
      %v5002 = vsel %vm4994, %v4932, 0
      %v5005 = vsel %vm4994, %v4933, 0
      %v5008 = vsel %vm4994, %v4934, 0
      %v5011 = vsel %vm4994, %v4935, 0
      %v5014 = vsel %vm4994, %v4936, 0
      %v5017 = vsel %vm4994, %v4937, 0
      %v5020 = vsel %vm4994, %v4938, 0
      %v5023 = vsel %vm4994, %v4939, 0
      %v5026 = vsel %vm4994, %v4940, 0
      %v5029 = vsel %vm4994, %v4941, 0
      %v5032 = vsel %vm4994, %v4942, 0
      %v5035 = vsel %vm4994, %v4943, 0
      %v5038 = vsel %vm4994, %v4944, 0
      %v5041 = vsel %vm4994, %v4945, 0
      %v5044 = vsel %vm4994, %v4946, 0
      %v5047 = vsel %vm4994, %v4947, 0
      %v5050 = vsel %vm4994, %v4948, 0
      %v5053 = vsel %vm4994, %v4949, 0
      %v5056 = vsel %vm4994, %v4950, 0
      %v5059 = vsel %vm4994, %v4951, 0
      %v5062 = vsel %vm4994, %v4952, 0
      %v5065 = vsel %vm4994, %v4953, 0
      %v5068 = vsel %vm4994, %v4954, 0
      %v5071 = vsel %vm4994, %v4955, 0
      %v5074 = vsel %vm4994, %v4956, 0
      %v5077 = vsel %vm4994, %v4957, 0
      %v5080 = vsel %vm4994, %v4958, 0
      %v5083 = vsel %vm4994, %v4959, 0
      %v5086 = vsel %vm4994, %v4960, 0
      %v5089 = vsel %vm4994, %v4961, 0
      %5091 = vmatprep.subr.bf16.mxu0 0
      %5092 = vmatpush1.bf16.msra.mxu0 %v4986
      %5093 = vmatprep.subr.bf16.mxu0 0
      %5094 = vmatpush1.bf16.msra.mxu0 %v4987
      %5095 = vmatprep.subr.bf16.mxu0 0
      %5096 = vmatpush1.bf16.msra.mxu0 %v4988
      %5097 = vmatprep.subr.bf16.mxu0 0
      %5098 = vmatpush1.bf16.msra.mxu0 %v4989
      %5099 = vmatprep.subr.bf16.mxu0 0
      %5100 = vmatpush1.bf16.msra.mxu0 0
      %5101 = vmatprep.subr.bf16.mxu0 0
      %5102 = vmatpush1.bf16.msra.mxu0 0
      %5103 = vmatprep.subr.bf16.mxu0 0
      %5104 = vmatpush1.bf16.msra.mxu0 0
      %5105 = vmatprep.subr.bf16.mxu0 0
      %5106 = vmatpush1.bf16.msra.mxu0 0
      %5107 = vmatprep.subr.bf16.mxu0 0
      %5108 = vmatpush1.bf16.msra.mxu0 0
      %5109 = vmatprep.subr.bf16.mxu0 0
      %5110 = vmatpush1.bf16.msra.mxu0 0
      %5111 = vmatprep.subr.bf16.mxu0 0
      %5112 = vmatpush1.bf16.msra.mxu0 0
      %5113 = vmatprep.subr.bf16.mxu0 0
      %5114 = vmatpush1.bf16.msra.mxu0 0
      %5115 = vmatprep.subr.bf16.mxu0 0
      %5116 = vmatpush1.bf16.msra.mxu0 0
      %5117 = vmatprep.subr.bf16.mxu0 0
      %5118 = vmatpush1.bf16.msra.mxu0 0
      %5119 = vmatprep.subr.bf16.mxu0 0
      %5120 = vmatpush1.bf16.msra.mxu0 0
      %5121 = vmatprep.subr.bf16.mxu0 0
      %5122 = vmatpush1.bf16.msra.mxu0 0
      %5123 = vmatprep.mubr.bf16.mxu0 0
      %5124 = vmatmul.mubr.bf16.gmra.mrb[0].mxu0 %v4996
      %v5125 = vpop.f32.mrb[0].mxu0
      %v5126 = vadd.f32 0.0, %v5125
      %v5127 = vpop.f32.mrb[0].mxu0
      %v5128 = vpop.f32.mrb[0].mxu0
      %v5129 = vadd.f32 0.0, %v5128
      %v5130 = vpop.f32.mrb[0].mxu0
      %5131 = vmatprep.mubr.bf16.mxu0 0
      %5132 = vmatmul.mubr.bf16.gmra.mrb[0].mxu0 %v4999
      %v5133 = vpop.f32.mrb[0].mxu0
      %v5134 = vadd.f32 0.0, %v5133
      %v5135 = vpop.f32.mrb[0].mxu0
      %v5136 = vpop.f32.mrb[0].mxu0
      %v5137 = vadd.f32 0.0, %v5136
      %v5138 = vpop.f32.mrb[0].mxu0
      %5139 = vmatprep.mubr.bf16.mxu0 0
      %5140 = vmatmul.mubr.bf16.gmra.mrb[0].mxu0 %v5002
      %v5141 = vpop.f32.mrb[0].mxu0
      %v5142 = vadd.f32 0.0, %v5141
      %v5143 = vpop.f32.mrb[0].mxu0
      %v5144 = vpop.f32.mrb[0].mxu0
      %v5145 = vadd.f32 0.0, %v5144
      %v5146 = vpop.f32.mrb[0].mxu0
      %5147 = vmatprep.mubr.bf16.mxu0 0
      %5148 = vmatmul.mubr.bf16.gmra.mrb[0].mxu0 %v5005
      %v5149 = vpop.f32.mrb[0].mxu0
      %v5150 = vadd.f32 0.0, %v5149
      %v5151 = vpop.f32.mrb[0].mxu0
      %v5152 = vpop.f32.mrb[0].mxu0
      %v5153 = vadd.f32 0.0, %v5152
      %v5154 = vpop.f32.mrb[0].mxu0
      %5155 = vmatprep.mubr.bf16.mxu0 0
      %5156 = vmatmul.mubr.bf16.gmra.mrb[0].mxu0 %v5008
      %v5157 = vpop.f32.mrb[0].mxu0
      %v5158 = vadd.f32 0.0, %v5157
      %v5159 = vpop.f32.mrb[0].mxu0
      %v5160 = vpop.f32.mrb[0].mxu0
      %v5161 = vadd.f32 0.0, %v5160
      %v5162 = vpop.f32.mrb[0].mxu0
      %5163 = vmatprep.mubr.bf16.mxu0 0
      %5164 = vmatmul.mubr.bf16.gmra.mrb[0].mxu0 %v5011
      %v5165 = vpop.f32.mrb[0].mxu0
      %v5166 = vadd.f32 0.0, %v5165
      %v5167 = vpop.f32.mrb[0].mxu0
      %v5168 = vpop.f32.mrb[0].mxu0
      %v5169 = vadd.f32 0.0, %v5168
      %v5170 = vpop.f32.mrb[0].mxu0
      %5171 = vmatprep.mubr.bf16.mxu0 0
      %5172 = vmatmul.mubr.bf16.gmra.mrb[0].mxu0 %v5014
      %v5173 = vpop.f32.mrb[0].mxu0
      %v5174 = vadd.f32 0.0, %v5173
      %v5175 = vpop.f32.mrb[0].mxu0
      %v5176 = vpop.f32.mrb[0].mxu0
      %v5177 = vadd.f32 0.0, %v5176
      %v5178 = vpop.f32.mrb[0].mxu0
      %5179 = vmatprep.mubr.bf16.mxu0 0
      %5180 = vmatmul.mubr.bf16.gmra.mrb[0].mxu0 %v5017
      %v5181 = vpop.f32.mrb[0].mxu0
      %v5182 = vadd.f32 0.0, %v5181
      %v5183 = vpop.f32.mrb[0].mxu0
      %v5184 = vpop.f32.mrb[0].mxu0
      %v5185 = vadd.f32 0.0, %v5184
      %v5186 = vpop.f32.mrb[0].mxu0
      %5187 = vmatprep.mubr.bf16.mxu0 0
      %5188 = vmatmul.mubr.bf16.gmra.mrb[0].mxu0 %v5020
      %v5189 = vpop.f32.mrb[0].mxu0
      %v5190 = vadd.f32 0.0, %v5189
      %v5191 = vpop.f32.mrb[0].mxu0
      %v5192 = vpop.f32.mrb[0].mxu0
      %v5193 = vadd.f32 0.0, %v5192
      %v5194 = vpop.f32.mrb[0].mxu0
      %5195 = vmatprep.mubr.bf16.mxu0 0
      %5196 = vmatmul.mubr.bf16.gmra.mrb[0].mxu0 %v5023
      %v5197 = vpop.f32.mrb[0].mxu0
      %v5198 = vadd.f32 0.0, %v5197
      %v5199 = vpop.f32.mrb[0].mxu0
      %v5200 = vpop.f32.mrb[0].mxu0
      %v5201 = vadd.f32 0.0, %v5200
      %v5202 = vpop.f32.mrb[0].mxu0
      %5203 = vmatprep.mubr.bf16.mxu0 0
      %5204 = vmatmul.mubr.bf16.gmra.mrb[0].mxu0 %v5026
      %v5205 = vpop.f32.mrb[0].mxu0
      %v5206 = vadd.f32 0.0, %v5205
      %v5207 = vpop.f32.mrb[0].mxu0
      %v5208 = vpop.f32.mrb[0].mxu0
      %v5209 = vadd.f32 0.0, %v5208
      %v5210 = vpop.f32.mrb[0].mxu0
      %5211 = vmatprep.mubr.bf16.mxu0 0
      %5212 = vmatmul.mubr.bf16.gmra.mrb[0].mxu0 %v5029
      %v5213 = vpop.f32.mrb[0].mxu0
      %v5214 = vadd.f32 0.0, %v5213
      %v5215 = vpop.f32.mrb[0].mxu0
      %v5216 = vpop.f32.mrb[0].mxu0
      %v5217 = vadd.f32 0.0, %v5216
      %v5218 = vpop.f32.mrb[0].mxu0
      %5219 = vmatprep.mubr.bf16.mxu0 0
      %5220 = vmatmul.mubr.bf16.gmra.mrb[0].mxu0 %v5032
      %v5221 = vpop.f32.mrb[0].mxu0
      %v5222 = vadd.f32 0.0, %v5221
      %v5223 = vpop.f32.mrb[0].mxu0
      %v5224 = vpop.f32.mrb[0].mxu0
      %v5225 = vadd.f32 0.0, %v5224
      %v5226 = vpop.f32.mrb[0].mxu0
      %5227 = vmatprep.mubr.bf16.mxu0 0
      %5228 = vmatmul.mubr.bf16.gmra.mrb[0].mxu0 %v5035
      %v5229 = vpop.f32.mrb[0].mxu0
      %v5230 = vadd.f32 0.0, %v5229
      %v5231 = vpop.f32.mrb[0].mxu0
      %v5232 = vpop.f32.mrb[0].mxu0
      %v5233 = vadd.f32 0.0, %v5232
      %v5234 = vpop.f32.mrb[0].mxu0
      %5235 = vmatprep.mubr.bf16.mxu0 0
      %5236 = vmatmul.mubr.bf16.gmra.mrb[0].mxu0 %v5038
      %v5237 = vpop.f32.mrb[0].mxu0
      %v5238 = vadd.f32 0.0, %v5237
      %v5239 = vpop.f32.mrb[0].mxu0
      %v5240 = vpop.f32.mrb[0].mxu0
      %v5241 = vadd.f32 0.0, %v5240
      %v5242 = vpop.f32.mrb[0].mxu0
      %5243 = vmatprep.mubr.bf16.mxu0 0
      %5244 = vmatmul.mubr.bf16.gmra.mrb[0].mxu0 %v5041
      %v5245 = vpop.f32.mrb[0].mxu0
      %v5246 = vadd.f32 0.0, %v5245
      %v5247 = vpop.f32.mrb[0].mxu0
      %v5248 = vpop.f32.mrb[0].mxu0
      %v5249 = vadd.f32 0.0, %v5248
      %v5250 = vpop.f32.mrb[0].mxu0
      %5251 = vmatprep.mubr.bf16.mxu0 0
      %5252 = vmatmul.mubr.bf16.gmra.mrb[0].mxu0 %v5044
      %v5253 = vpop.f32.mrb[0].mxu0
      %v5254 = vadd.f32 0.0, %v5253
      %v5255 = vpop.f32.mrb[0].mxu0
      %v5256 = vpop.f32.mrb[0].mxu0
      %v5257 = vadd.f32 0.0, %v5256
      %v5258 = vpop.f32.mrb[0].mxu0
      %5259 = vmatprep.mubr.bf16.mxu0 0
      %5260 = vmatmul.mubr.bf16.gmra.mrb[0].mxu0 %v5047
      %v5261 = vpop.f32.mrb[0].mxu0
      %v5262 = vadd.f32 0.0, %v5261
      %v5263 = vpop.f32.mrb[0].mxu0
      %v5264 = vpop.f32.mrb[0].mxu0
      %v5265 = vadd.f32 0.0, %v5264
      %v5266 = vpop.f32.mrb[0].mxu0
      %5267 = vmatprep.mubr.bf16.mxu0 0
      %5268 = vmatmul.mubr.bf16.gmra.mrb[0].mxu0 %v5050
      %v5269 = vpop.f32.mrb[0].mxu0
      %v5270 = vadd.f32 0.0, %v5269
      %v5271 = vpop.f32.mrb[0].mxu0
      %v5272 = vpop.f32.mrb[0].mxu0
      %v5273 = vadd.f32 0.0, %v5272
      %v5274 = vpop.f32.mrb[0].mxu0
      %5275 = vmatprep.mubr.bf16.mxu0 0
      %5276 = vmatmul.mubr.bf16.gmra.mrb[0].mxu0 %v5053
      %v5277 = vpop.f32.mrb[0].mxu0
      %v5278 = vadd.f32 0.0, %v5277
      %v5279 = vpop.f32.mrb[0].mxu0
      %v5280 = vpop.f32.mrb[0].mxu0
      %v5281 = vadd.f32 0.0, %v5280
      %v5282 = vpop.f32.mrb[0].mxu0
      %5283 = vmatprep.mubr.bf16.mxu0 0
      %5284 = vmatmul.mubr.bf16.gmra.mrb[0].mxu0 %v5056
      %v5285 = vpop.f32.mrb[0].mxu0
      %v5286 = vadd.f32 0.0, %v5285
      %v5287 = vpop.f32.mrb[0].mxu0
      %v5288 = vpop.f32.mrb[0].mxu0
      %v5289 = vadd.f32 0.0, %v5288
      %v5290 = vpop.f32.mrb[0].mxu0
      %5291 = vmatprep.mubr.bf16.mxu0 0
      %5292 = vmatmul.mubr.bf16.gmra.mrb[0].mxu0 %v5059
      %v5293 = vpop.f32.mrb[0].mxu0
      %v5294 = vadd.f32 0.0, %v5293
      %v5295 = vpop.f32.mrb[0].mxu0
      %v5296 = vpop.f32.mrb[0].mxu0
      %v5297 = vadd.f32 0.0, %v5296
      %v5298 = vpop.f32.mrb[0].mxu0
      %5299 = vmatprep.mubr.bf16.mxu0 0
      %5300 = vmatmul.mubr.bf16.gmra.mrb[0].mxu0 %v5062
      %v5301 = vpop.f32.mrb[0].mxu0
      %v5302 = vadd.f32 0.0, %v5301
      %v5303 = vpop.f32.mrb[0].mxu0
      %v5304 = vpop.f32.mrb[0].mxu0
      %v5305 = vadd.f32 0.0, %v5304
      %v5306 = vpop.f32.mrb[0].mxu0
      %5307 = vmatprep.mubr.bf16.mxu0 0
      %5308 = vmatmul.mubr.bf16.gmra.mrb[0].mxu0 %v5065
      %v5309 = vpop.f32.mrb[0].mxu0
      %v5310 = vadd.f32 0.0, %v5309
      %v5311 = vpop.f32.mrb[0].mxu0
      %v5312 = vpop.f32.mrb[0].mxu0
      %v5313 = vadd.f32 0.0, %v5312
      %v5314 = vpop.f32.mrb[0].mxu0
      %5315 = vmatprep.mubr.bf16.mxu0 0
      %5316 = vmatmul.mubr.bf16.gmra.mrb[0].mxu0 %v5068
      %v5317 = vpop.f32.mrb[0].mxu0
      %v5318 = vadd.f32 0.0, %v5317
      %v5319 = vpop.f32.mrb[0].mxu0
      %v5320 = vpop.f32.mrb[0].mxu0
      %v5321 = vadd.f32 0.0, %v5320
      %v5322 = vpop.f32.mrb[0].mxu0
      %5323 = vmatprep.mubr.bf16.mxu0 0
      %5324 = vmatmul.mubr.bf16.gmra.mrb[0].mxu0 %v5071
      %v5325 = vpop.f32.mrb[0].mxu0
      %v5326 = vadd.f32 0.0, %v5325
      %v5327 = vpop.f32.mrb[0].mxu0
      %v5328 = vpop.f32.mrb[0].mxu0
      %v5329 = vadd.f32 0.0, %v5328
      %v5330 = vpop.f32.mrb[0].mxu0
      %5331 = vmatprep.mubr.bf16.mxu0 0
      %5332 = vmatmul.mubr.bf16.gmra.mrb[0].mxu0 %v5074
      %v5333 = vpop.f32.mrb[0].mxu0
      %v5334 = vadd.f32 0.0, %v5333
      %v5335 = vpop.f32.mrb[0].mxu0
      %v5336 = vpop.f32.mrb[0].mxu0
      %v5337 = vadd.f32 0.0, %v5336
      %v5338 = vpop.f32.mrb[0].mxu0
      %5339 = vmatprep.mubr.bf16.mxu0 0
      %5340 = vmatmul.mubr.bf16.gmra.mrb[0].mxu0 %v5077
      %v5341 = vpop.f32.mrb[0].mxu0
      %v5342 = vadd.f32 0.0, %v5341
      %v5343 = vpop.f32.mrb[0].mxu0
      %v5344 = vpop.f32.mrb[0].mxu0
      %v5345 = vadd.f32 0.0, %v5344
      %v5346 = vpop.f32.mrb[0].mxu0
      %5347 = vmatprep.mubr.bf16.mxu0 0
      %5348 = vmatmul.mubr.bf16.gmra.mrb[0].mxu0 %v5080
      %v5349 = vpop.f32.mrb[0].mxu0
      %v5350 = vadd.f32 0.0, %v5349
      %v5351 = vpop.f32.mrb[0].mxu0
      %v5352 = vpop.f32.mrb[0].mxu0
      %v5353 = vadd.f32 0.0, %v5352
      %v5354 = vpop.f32.mrb[0].mxu0
      %5355 = vmatprep.mubr.bf16.mxu0 0
      %5356 = vmatmul.mubr.bf16.gmra.mrb[0].mxu0 %v5083
      %v5357 = vpop.f32.mrb[0].mxu0
      %v5358 = vadd.f32 0.0, %v5357
      %v5359 = vpop.f32.mrb[0].mxu0
      %v5360 = vpop.f32.mrb[0].mxu0
      %v5361 = vadd.f32 0.0, %v5360
      %v5362 = vpop.f32.mrb[0].mxu0
      %5363 = vmatprep.mubr.bf16.mxu0 0
      %5364 = vmatmul.mubr.bf16.gmra.mrb[0].mxu0 %v5086
      %v5365 = vpop.f32.mrb[0].mxu0
      %v5366 = vadd.f32 0.0, %v5365
      %v5367 = vpop.f32.mrb[0].mxu0
      %v5368 = vpop.f32.mrb[0].mxu0
      %v5369 = vadd.f32 0.0, %v5368
      %v5370 = vpop.f32.mrb[0].mxu0
      %5371 = vmatprep.mubr.bf16.mxu0 0
      %5372 = vmatmul.mubr.bf16.gmra.mrb[0].mxu0 %v5089
      %v5373 = vpop.f32.mrb[0].mxu0
      %v5374 = vadd.f32 0.0, %v5373
      %v5375 = vpop.f32.mrb[0].mxu0
      %v5376 = vpop.f32.mrb[0].mxu0
      %v5377 = vadd.f32 0.0, %v5376
      %v5378 = vpop.f32.mrb[0].mxu0
      %5379 = vdwg.mxu0
      %v5380 = vpack.c.bf16 %v5129, %v5126
      %v5381 = vpack.c.bf16 %v5137, %v5134
      %v5382 = vpack.c.bf16 %v5145, %v5142
      %v5383 = vpack.c.bf16 %v5153, %v5150
      %v5384 = vpack.c.bf16 %v5161, %v5158
      %v5385 = vpack.c.bf16 %v5169, %v5166
      %v5386 = vpack.c.bf16 %v5177, %v5174
      %v5387 = vpack.c.bf16 %v5185, %v5182
      %v5388 = vpack.c.bf16 %v5193, %v5190
      %v5389 = vpack.c.bf16 %v5201, %v5198
      %v5390 = vpack.c.bf16 %v5209, %v5206
      %v5391 = vpack.c.bf16 %v5217, %v5214
      %v5392 = vpack.c.bf16 %v5225, %v5222
      %v5393 = vpack.c.bf16 %v5233, %v5230
      %v5394 = vpack.c.bf16 %v5241, %v5238
      %v5395 = vpack.c.bf16 %v5249, %v5246
      %v5396 = vpack.c.bf16 %v5257, %v5254
      %v5397 = vpack.c.bf16 %v5265, %v5262
      %v5398 = vpack.c.bf16 %v5273, %v5270
      %v5399 = vpack.c.bf16 %v5281, %v5278
      %v5400 = vpack.c.bf16 %v5289, %v5286
      %v5401 = vpack.c.bf16 %v5297, %v5294
      %v5402 = vpack.c.bf16 %v5305, %v5302
      %v5403 = vpack.c.bf16 %v5313, %v5310
      %v5404 = vpack.c.bf16 %v5321, %v5318
      %v5405 = vpack.c.bf16 %v5329, %v5326
      %v5406 = vpack.c.bf16 %v5337, %v5334
      %v5407 = vpack.c.bf16 %v5345, %v5342
      %v5408 = vpack.c.bf16 %v5353, %v5350
      %v5409 = vpack.c.bf16 %v5361, %v5358
      %v5410 = vpack.c.bf16 %v5369, %v5366
      %v5411 = vpack.c.bf16 %v5377, %v5374
      %v5412 = vld [vmem:[%s14] sm:$0x1]
      %v5414 = vpack.i.b16 %v5412, %v5412
      %v5416 = vlaneseq
      %v5417 = vshrl.u32 %v5416, 7
      %v5418 = vsub.s32 0, %v5417
      %v5419 = vrot.slane %v5414, %v5418
      %v5420 = vadd.bf16 %v5380, %v5419
      %v5421 = vadd.bf16 %v5381, %v5419
      %v5422 = vadd.bf16 %v5382, %v5419
      %v5423 = vadd.bf16 %v5383, %v5419
      %v5424 = vadd.bf16 %v5384, %v5419
      %v5425 = vadd.bf16 %v5385, %v5419
      %v5426 = vadd.bf16 %v5386, %v5419
      %v5427 = vadd.bf16 %v5387, %v5419
      %v5428 = vadd.bf16 %v5388, %v5419
      %v5429 = vadd.bf16 %v5389, %v5419
      %v5430 = vadd.bf16 %v5390, %v5419
      %v5431 = vadd.bf16 %v5391, %v5419
      %v5432 = vadd.bf16 %v5392, %v5419
      %v5433 = vadd.bf16 %v5393, %v5419
      %v5434 = vadd.bf16 %v5394, %v5419
      %v5435 = vadd.bf16 %v5395, %v5419
      %v5436 = vadd.bf16 %v5396, %v5419
      %v5437 = vadd.bf16 %v5397, %v5419
      %v5438 = vadd.bf16 %v5398, %v5419
      %v5439 = vadd.bf16 %v5399, %v5419
      %v5440 = vadd.bf16 %v5400, %v5419
      %v5441 = vadd.bf16 %v5401, %v5419
      %v5442 = vadd.bf16 %v5402, %v5419
      %v5443 = vadd.bf16 %v5403, %v5419
      %v5444 = vadd.bf16 %v5404, %v5419
      %v5445 = vadd.bf16 %v5405, %v5419
      %v5446 = vadd.bf16 %v5406, %v5419
      %v5447 = vadd.bf16 %v5407, %v5419
      %v5448 = vadd.bf16 %v5408, %v5419
      %v5449 = vadd.bf16 %v5409, %v5419
      %v5450 = vadd.bf16 %v5410, %v5419
      %v5451 = vadd.bf16 %v5411, %v5419
      %v5452 = vmax.bf16 %v5420, 0
      %v5453 = vmax.bf16 %v5421, 0
      %v5454 = vmax.bf16 %v5422, 0
      %v5455 = vmax.bf16 %v5423, 0
      %v5456 = vmax.bf16 %v5424, 0
      %v5457 = vmax.bf16 %v5425, 0
      %v5458 = vmax.bf16 %v5426, 0
      %v5459 = vmax.bf16 %v5427, 0
      %v5460 = vmax.bf16 %v5428, 0
      %v5461 = vmax.bf16 %v5429, 0
      %v5462 = vmax.bf16 %v5430, 0
      %v5463 = vmax.bf16 %v5431, 0
      %v5464 = vmax.bf16 %v5432, 0
      %v5465 = vmax.bf16 %v5433, 0
      %v5466 = vmax.bf16 %v5434, 0
      %v5467 = vmax.bf16 %v5435, 0
      %v5468 = vmax.bf16 %v5436, 0
      %v5469 = vmax.bf16 %v5437, 0
      %v5470 = vmax.bf16 %v5438, 0
      %v5471 = vmax.bf16 %v5439, 0
      %v5472 = vmax.bf16 %v5440, 0
      %v5473 = vmax.bf16 %v5441, 0
      %v5474 = vmax.bf16 %v5442, 0
      %v5475 = vmax.bf16 %v5443, 0
      %v5476 = vmax.bf16 %v5444, 0
      %v5477 = vmax.bf16 %v5445, 0
      %v5478 = vmax.bf16 %v5446, 0
      %v5479 = vmax.bf16 %v5447, 0
      %v5480 = vmax.bf16 %v5448, 0
      %v5481 = vmax.bf16 %v5449, 0
      %v5482 = vmax.bf16 %v5450, 0
      %v5483 = vmax.bf16 %v5451, 0
      %v5484 = vld [vmem:[%s15] sm:$0xf]
      %v5485 = vld [vmem:[%s15 + $0x4] sm:$0xf]
      %v5486 = vld [vmem:[%s15 + $0x8] sm:$0xf]
      %v5487 = vld [vmem:[%s15 + $0xc] sm:$0xf]
      %v5488 = vld [vmem:[%s15 + $0x10] sm:$0xf]
      %v5489 = vld [vmem:[%s15 + $0x14] sm:$0xf]
      %v5490 = vld [vmem:[%s15 + $0x18] sm:$0xf]
      %v5491 = vld [vmem:[%s15 + $0x1c] sm:$0xf]
      %v5492 = vld [vmem:[%s15 + $0x20] sm:$0xf]
      %v5493 = vld [vmem:[%s15 + $0x24] sm:$0xf]
      %v5494 = vld [vmem:[%s15 + $0x28] sm:$0xf]
      %v5495 = vld [vmem:[%s15 + $0x2c] sm:$0xf]
      %v5496 = vld [vmem:[%s15 + $0x30] sm:$0xf]
      %v5497 = vld [vmem:[%s15 + $0x34] sm:$0xf]
      %v5498 = vld [vmem:[%s15 + $0x38] sm:$0xf]
      %v5499 = vld [vmem:[%s15 + $0x3c] sm:$0xf]
      %v5500 = vld [vmem:[%s16] sm:$0x1]
      %v5502 = vlaneseq
      %v5503 = vshrl.u32 %v5502, 7
      %v5504 = vsub.s32 0, %v5503
      %v5505 = vrot.slane %v5500, %v5504
      %v5523 = vunpack.c.l.b16 %v5484
      %v5524 = vunpack.c.l.b16 %v5485
      %v5525 = vunpack.c.l.b16 %v5486
      %v5526 = vunpack.c.l.b16 %v5487
      %v5527 = vunpack.c.l.b16 %v5488
      %v5528 = vunpack.c.l.b16 %v5489
      %v5529 = vunpack.c.l.b16 %v5490
      %v5530 = vunpack.c.l.b16 %v5491
      %v5531 = vunpack.c.l.b16 %v5492
      %v5532 = vunpack.c.l.b16 %v5493
      %v5533 = vunpack.c.l.b16 %v5494
      %v5534 = vunpack.c.l.b16 %v5495
      %v5535 = vunpack.c.l.b16 %v5496
      %v5536 = vunpack.c.l.b16 %v5497
      %v5537 = vunpack.c.l.b16 %v5498
      %v5538 = vunpack.c.l.b16 %v5499
      %v5539 = vpack.c.b16 %v5524, %v5523
      %v5540 = vpack.c.b16 %v5526, %v5525
      %v5541 = vpack.c.b16 %v5528, %v5527
      %v5542 = vpack.c.b16 %v5530, %v5529
      %v5543 = vpack.c.b16 %v5532, %v5531
      %v5544 = vpack.c.b16 %v5534, %v5533
      %v5545 = vpack.c.b16 %v5536, %v5535
      %v5546 = vpack.c.b16 %v5538, %v5537
      %5555 = vmatprep.subr.bf16.mxu0 0
      %5556 = vmatpush1.bf16.msra.mxu0 %v5539
      %5557 = vmatprep.subr.bf16.mxu0 0
      %5558 = vmatpush1.bf16.msra.mxu0 %v5540
      %5559 = vmatprep.subr.bf16.mxu0 0
      %5560 = vmatpush1.bf16.msra.mxu0 %v5541
      %5561 = vmatprep.subr.bf16.mxu0 0
      %5562 = vmatpush1.bf16.msra.mxu0 %v5542
      %5563 = vmatprep.subr.bf16.mxu0 0
      %5564 = vmatpush1.bf16.msra.mxu0 %v5543
      %5565 = vmatprep.subr.bf16.mxu0 0
      %5566 = vmatpush1.bf16.msra.mxu0 %v5544
      %5567 = vmatprep.subr.bf16.mxu0 0
      %5568 = vmatpush1.bf16.msra.mxu0 %v5545
      %5569 = vmatprep.subr.bf16.mxu0 0
      %5570 = vmatpush1.bf16.msra.mxu0 %v5546
      %5571 = vmatprep.subr.bf16.mxu0 0
      %5572 = vmatpush1.bf16.msra.mxu0 0
      %5573 = vmatprep.subr.bf16.mxu0 0
      %5574 = vmatpush1.bf16.msra.mxu0 0
      %5575 = vmatprep.subr.bf16.mxu0 0
      %5576 = vmatpush1.bf16.msra.mxu0 0
      %5577 = vmatprep.subr.bf16.mxu0 0
      %5578 = vmatpush1.bf16.msra.mxu0 0
      %5579 = vmatprep.subr.bf16.mxu0 0
      %5580 = vmatpush1.bf16.msra.mxu0 0
      %5581 = vmatprep.subr.bf16.mxu0 0
      %5582 = vmatpush1.bf16.msra.mxu0 0
      %5583 = vmatprep.subr.bf16.mxu0 0
      %5584 = vmatpush1.bf16.msra.mxu0 0
      %5585 = vmatprep.subr.bf16.mxu0 0
      %5586 = vmatpush1.bf16.msra.mxu0 0
      %5587 = vmatprep.mubr.bf16.mxu0 0
      %5588 = vmatmul.mubr.bf16.gmra.mrb[0].mxu0 %v5452
      %v5589 = vpop.f32.mrb[0].mxu0
      %v5590 = vadd.f32 %v5505, %v5589
      %v5591 = vpop.f32.mrb[0].mxu0
      %v5592 = vpop.f32.mrb[0].mxu0
      %v5593 = vadd.f32 %v5505, %v5592
      %v5594 = vpop.f32.mrb[0].mxu0
      %5595 = vmatprep.mubr.bf16.mxu0 0
      %5596 = vmatmul.mubr.bf16.gmra.mrb[0].mxu0 %v5453
      %v5597 = vpop.f32.mrb[0].mxu0
      %v5598 = vadd.f32 %v5505, %v5597
      %v5599 = vpop.f32.mrb[0].mxu0
      %v5600 = vpop.f32.mrb[0].mxu0
      %v5601 = vadd.f32 %v5505, %v5600
      %v5602 = vpop.f32.mrb[0].mxu0
      %5603 = vmatprep.mubr.bf16.mxu0 0
      %5604 = vmatmul.mubr.bf16.gmra.mrb[0].mxu0 %v5454
      %v5605 = vpop.f32.mrb[0].mxu0
      %v5606 = vadd.f32 %v5505, %v5605
      %v5607 = vpop.f32.mrb[0].mxu0
      %v5608 = vpop.f32.mrb[0].mxu0
      %v5609 = vadd.f32 %v5505, %v5608
      %v5610 = vpop.f32.mrb[0].mxu0
      %5611 = vmatprep.mubr.bf16.mxu0 0
      %5612 = vmatmul.mubr.bf16.gmra.mrb[0].mxu0 %v5455
      %v5613 = vpop.f32.mrb[0].mxu0
      %v5614 = vadd.f32 %v5505, %v5613
      %v5615 = vpop.f32.mrb[0].mxu0
      %v5616 = vpop.f32.mrb[0].mxu0
      %v5617 = vadd.f32 %v5505, %v5616
      %v5618 = vpop.f32.mrb[0].mxu0
      %5619 = vmatprep.mubr.bf16.mxu0 0
      %5620 = vmatmul.mubr.bf16.gmra.mrb[0].mxu0 %v5456
      %v5621 = vpop.f32.mrb[0].mxu0
      %v5622 = vadd.f32 %v5505, %v5621
      %v5623 = vpop.f32.mrb[0].mxu0
      %v5624 = vpop.f32.mrb[0].mxu0
      %v5625 = vadd.f32 %v5505, %v5624
      %v5626 = vpop.f32.mrb[0].mxu0
      %5627 = vmatprep.mubr.bf16.mxu0 0
      %5628 = vmatmul.mubr.bf16.gmra.mrb[0].mxu0 %v5457
      %v5629 = vpop.f32.mrb[0].mxu0
      %v5630 = vadd.f32 %v5505, %v5629
      %v5631 = vpop.f32.mrb[0].mxu0
      %v5632 = vpop.f32.mrb[0].mxu0
      %v5633 = vadd.f32 %v5505, %v5632
      %v5634 = vpop.f32.mrb[0].mxu0
      %5635 = vmatprep.mubr.bf16.mxu0 0
      %5636 = vmatmul.mubr.bf16.gmra.mrb[0].mxu0 %v5458
      %v5637 = vpop.f32.mrb[0].mxu0
      %v5638 = vadd.f32 %v5505, %v5637
      %v5639 = vpop.f32.mrb[0].mxu0
      %v5640 = vpop.f32.mrb[0].mxu0
      %v5641 = vadd.f32 %v5505, %v5640
      %v5642 = vpop.f32.mrb[0].mxu0
      %5643 = vmatprep.mubr.bf16.mxu0 0
      %5644 = vmatmul.mubr.bf16.gmra.mrb[0].mxu0 %v5459
      %v5645 = vpop.f32.mrb[0].mxu0
      %v5646 = vadd.f32 %v5505, %v5645
      %v5647 = vpop.f32.mrb[0].mxu0
      %v5648 = vpop.f32.mrb[0].mxu0
      %v5649 = vadd.f32 %v5505, %v5648
      %v5650 = vpop.f32.mrb[0].mxu0
      %5651 = vmatprep.mubr.bf16.mxu0 0
      %5652 = vmatmul.mubr.bf16.gmra.mrb[0].mxu0 %v5460
      %v5653 = vpop.f32.mrb[0].mxu0
      %v5654 = vadd.f32 %v5505, %v5653
      %v5655 = vpop.f32.mrb[0].mxu0
      %v5656 = vpop.f32.mrb[0].mxu0
      %v5657 = vadd.f32 %v5505, %v5656
      %v5658 = vpop.f32.mrb[0].mxu0
      %5659 = vmatprep.mubr.bf16.mxu0 0
      %5660 = vmatmul.mubr.bf16.gmra.mrb[0].mxu0 %v5461
      %v5661 = vpop.f32.mrb[0].mxu0
      %v5662 = vadd.f32 %v5505, %v5661
      %v5663 = vpop.f32.mrb[0].mxu0
      %v5664 = vpop.f32.mrb[0].mxu0
      %v5665 = vadd.f32 %v5505, %v5664
      %v5666 = vpop.f32.mrb[0].mxu0
      %5667 = vmatprep.mubr.bf16.mxu0 0
      %5668 = vmatmul.mubr.bf16.gmra.mrb[0].mxu0 %v5462
      %v5669 = vpop.f32.mrb[0].mxu0
      %v5670 = vadd.f32 %v5505, %v5669
      %v5671 = vpop.f32.mrb[0].mxu0
      %v5672 = vpop.f32.mrb[0].mxu0
      %v5673 = vadd.f32 %v5505, %v5672
      %v5674 = vpop.f32.mrb[0].mxu0
      %5675 = vmatprep.mubr.bf16.mxu0 0
      %5676 = vmatmul.mubr.bf16.gmra.mrb[0].mxu0 %v5463
      %v5677 = vpop.f32.mrb[0].mxu0
      %v5678 = vadd.f32 %v5505, %v5677
      %v5679 = vpop.f32.mrb[0].mxu0
      %v5680 = vpop.f32.mrb[0].mxu0
      %v5681 = vadd.f32 %v5505, %v5680
      %v5682 = vpop.f32.mrb[0].mxu0
      %5683 = vmatprep.mubr.bf16.mxu0 0
      %5684 = vmatmul.mubr.bf16.gmra.mrb[0].mxu0 %v5464
      %v5685 = vpop.f32.mrb[0].mxu0
      %v5686 = vadd.f32 %v5505, %v5685
      %v5687 = vpop.f32.mrb[0].mxu0
      %v5688 = vpop.f32.mrb[0].mxu0
      %v5689 = vadd.f32 %v5505, %v5688
      %v5690 = vpop.f32.mrb[0].mxu0
      %5691 = vmatprep.mubr.bf16.mxu0 0
      %5692 = vmatmul.mubr.bf16.gmra.mrb[0].mxu0 %v5465
      %v5693 = vpop.f32.mrb[0].mxu0
      %v5694 = vadd.f32 %v5505, %v5693
      %v5695 = vpop.f32.mrb[0].mxu0
      %v5696 = vpop.f32.mrb[0].mxu0
      %v5697 = vadd.f32 %v5505, %v5696
      %v5698 = vpop.f32.mrb[0].mxu0
      %5699 = vmatprep.mubr.bf16.mxu0 0
      %5700 = vmatmul.mubr.bf16.gmra.mrb[0].mxu0 %v5466
      %v5701 = vpop.f32.mrb[0].mxu0
      %v5702 = vadd.f32 %v5505, %v5701
      %v5703 = vpop.f32.mrb[0].mxu0
      %v5704 = vpop.f32.mrb[0].mxu0
      %v5705 = vadd.f32 %v5505, %v5704
      %v5706 = vpop.f32.mrb[0].mxu0
      %5707 = vmatprep.mubr.bf16.mxu0 0
      %5708 = vmatmul.mubr.bf16.gmra.mrb[0].mxu0 %v5467
      %v5709 = vpop.f32.mrb[0].mxu0
      %v5710 = vadd.f32 %v5505, %v5709
      %v5711 = vpop.f32.mrb[0].mxu0
      %v5712 = vpop.f32.mrb[0].mxu0
      %v5713 = vadd.f32 %v5505, %v5712
      %v5714 = vpop.f32.mrb[0].mxu0
      %5715 = vmatprep.mubr.bf16.mxu0 0
      %5716 = vmatmul.mubr.bf16.gmra.mrb[0].mxu0 %v5468
      %v5717 = vpop.f32.mrb[0].mxu0
      %v5718 = vadd.f32 %v5505, %v5717
      %v5719 = vpop.f32.mrb[0].mxu0
      %v5720 = vpop.f32.mrb[0].mxu0
      %v5721 = vadd.f32 %v5505, %v5720
      %v5722 = vpop.f32.mrb[0].mxu0
      %5723 = vmatprep.mubr.bf16.mxu0 0
      %5724 = vmatmul.mubr.bf16.gmra.mrb[0].mxu0 %v5469
      %v5725 = vpop.f32.mrb[0].mxu0
      %v5726 = vadd.f32 %v5505, %v5725
      %v5727 = vpop.f32.mrb[0].mxu0
      %v5728 = vpop.f32.mrb[0].mxu0
      %v5729 = vadd.f32 %v5505, %v5728
      %v5730 = vpop.f32.mrb[0].mxu0
      %5731 = vmatprep.mubr.bf16.mxu0 0
      %5732 = vmatmul.mubr.bf16.gmra.mrb[0].mxu0 %v5470
      %v5733 = vpop.f32.mrb[0].mxu0
      %v5734 = vadd.f32 %v5505, %v5733
      %v5735 = vpop.f32.mrb[0].mxu0
      %v5736 = vpop.f32.mrb[0].mxu0
      %v5737 = vadd.f32 %v5505, %v5736
      %v5738 = vpop.f32.mrb[0].mxu0
      %5739 = vmatprep.mubr.bf16.mxu0 0
      %5740 = vmatmul.mubr.bf16.gmra.mrb[0].mxu0 %v5471
      %v5741 = vpop.f32.mrb[0].mxu0
      %v5742 = vadd.f32 %v5505, %v5741
      %v5743 = vpop.f32.mrb[0].mxu0
      %v5744 = vpop.f32.mrb[0].mxu0
      %v5745 = vadd.f32 %v5505, %v5744
      %v5746 = vpop.f32.mrb[0].mxu0
      %5747 = vmatprep.mubr.bf16.mxu0 0
      %5748 = vmatmul.mubr.bf16.gmra.mrb[0].mxu0 %v5472
      %v5749 = vpop.f32.mrb[0].mxu0
      %v5750 = vadd.f32 %v5505, %v5749
      %v5751 = vpop.f32.mrb[0].mxu0
      %v5752 = vpop.f32.mrb[0].mxu0
      %v5753 = vadd.f32 %v5505, %v5752
      %v5754 = vpop.f32.mrb[0].mxu0
      %5755 = vmatprep.mubr.bf16.mxu0 0
      %5756 = vmatmul.mubr.bf16.gmra.mrb[0].mxu0 %v5473
      %v5757 = vpop.f32.mrb[0].mxu0
      %v5758 = vadd.f32 %v5505, %v5757
      %v5759 = vpop.f32.mrb[0].mxu0
      %v5760 = vpop.f32.mrb[0].mxu0
      %v5761 = vadd.f32 %v5505, %v5760
      %v5762 = vpop.f32.mrb[0].mxu0
      %5763 = vmatprep.mubr.bf16.mxu0 0
      %5764 = vmatmul.mubr.bf16.gmra.mrb[0].mxu0 %v5474
      %v5765 = vpop.f32.mrb[0].mxu0
      %v5766 = vadd.f32 %v5505, %v5765
      %v5767 = vpop.f32.mrb[0].mxu0
      %v5768 = vpop.f32.mrb[0].mxu0
      %v5769 = vadd.f32 %v5505, %v5768
      %v5770 = vpop.f32.mrb[0].mxu0
      %5771 = vmatprep.mubr.bf16.mxu0 0
      %5772 = vmatmul.mubr.bf16.gmra.mrb[0].mxu0 %v5475
      %v5773 = vpop.f32.mrb[0].mxu0
      %v5774 = vadd.f32 %v5505, %v5773
      %v5775 = vpop.f32.mrb[0].mxu0
      %v5776 = vpop.f32.mrb[0].mxu0
      %v5777 = vadd.f32 %v5505, %v5776
      %v5778 = vpop.f32.mrb[0].mxu0
      %5779 = vmatprep.mubr.bf16.mxu0 0
      %5780 = vmatmul.mubr.bf16.gmra.mrb[0].mxu0 %v5476
      %v5781 = vpop.f32.mrb[0].mxu0
      %v5782 = vadd.f32 %v5505, %v5781
      %v5783 = vpop.f32.mrb[0].mxu0
      %v5784 = vpop.f32.mrb[0].mxu0
      %v5785 = vadd.f32 %v5505, %v5784
      %v5786 = vpop.f32.mrb[0].mxu0
      %5787 = vmatprep.mubr.bf16.mxu0 0
      %5788 = vmatmul.mubr.bf16.gmra.mrb[0].mxu0 %v5477
      %v5789 = vpop.f32.mrb[0].mxu0
      %v5790 = vadd.f32 %v5505, %v5789
      %v5791 = vpop.f32.mrb[0].mxu0
      %v5792 = vpop.f32.mrb[0].mxu0
      %v5793 = vadd.f32 %v5505, %v5792
      %v5794 = vpop.f32.mrb[0].mxu0
      %5795 = vmatprep.mubr.bf16.mxu0 0
      %5796 = vmatmul.mubr.bf16.gmra.mrb[0].mxu0 %v5478
      %v5797 = vpop.f32.mrb[0].mxu0
      %v5798 = vadd.f32 %v5505, %v5797
      %v5799 = vpop.f32.mrb[0].mxu0
      %v5800 = vpop.f32.mrb[0].mxu0
      %v5801 = vadd.f32 %v5505, %v5800
      %v5802 = vpop.f32.mrb[0].mxu0
      %5803 = vmatprep.mubr.bf16.mxu0 0
      %5804 = vmatmul.mubr.bf16.gmra.mrb[0].mxu0 %v5479
      %v5805 = vpop.f32.mrb[0].mxu0
      %v5806 = vadd.f32 %v5505, %v5805
      %v5807 = vpop.f32.mrb[0].mxu0
      %v5808 = vpop.f32.mrb[0].mxu0
      %v5809 = vadd.f32 %v5505, %v5808
      %v5810 = vpop.f32.mrb[0].mxu0
      %5811 = vmatprep.mubr.bf16.mxu0 0
      %5812 = vmatmul.mubr.bf16.gmra.mrb[0].mxu0 %v5480
      %v5813 = vpop.f32.mrb[0].mxu0
      %v5814 = vadd.f32 %v5505, %v5813
      %v5815 = vpop.f32.mrb[0].mxu0
      %v5816 = vpop.f32.mrb[0].mxu0
      %v5817 = vadd.f32 %v5505, %v5816
      %v5818 = vpop.f32.mrb[0].mxu0
      %5819 = vmatprep.mubr.bf16.mxu0 0
      %5820 = vmatmul.mubr.bf16.gmra.mrb[0].mxu0 %v5481
      %v5821 = vpop.f32.mrb[0].mxu0
      %v5822 = vadd.f32 %v5505, %v5821
      %v5823 = vpop.f32.mrb[0].mxu0
      %v5824 = vpop.f32.mrb[0].mxu0
      %v5825 = vadd.f32 %v5505, %v5824
      %v5826 = vpop.f32.mrb[0].mxu0
      %5827 = vmatprep.mubr.bf16.mxu0 0
      %5828 = vmatmul.mubr.bf16.gmra.mrb[0].mxu0 %v5482
      %v5829 = vpop.f32.mrb[0].mxu0
      %v5830 = vadd.f32 %v5505, %v5829
      %v5831 = vpop.f32.mrb[0].mxu0
      %v5832 = vpop.f32.mrb[0].mxu0
      %v5833 = vadd.f32 %v5505, %v5832
      %v5834 = vpop.f32.mrb[0].mxu0
      %5835 = vmatprep.mubr.bf16.mxu0 0
      %5836 = vmatmul.mubr.bf16.gmra.mrb[0].mxu0 %v5483
      %v5837 = vpop.f32.mrb[0].mxu0
      %v5838 = vadd.f32 %v5505, %v5837
      %v5839 = vpop.f32.mrb[0].mxu0
      %v5840 = vpop.f32.mrb[0].mxu0
      %v5841 = vadd.f32 %v5505, %v5840
      %v5842 = vpop.f32.mrb[0].mxu0
      %5843 = vdwg.mxu0
      %5844 = vst [vmem:[%s550] sm:$0xff] %v5590
      %5845 = vst [vmem:[%s550 + $0x8] sm:$0xff] %v5593
      %5846 = vst [vmem:[%s550 + $0x10] sm:$0xff] %v5598
      %5847 = vst [vmem:[%s550 + $0x18] sm:$0xff] %v5601
      %5848 = vst [vmem:[%s550 + $0x20] sm:$0xff] %v5606
      %5849 = vst [vmem:[%s550 + $0x28] sm:$0xff] %v5609
      %5850 = vst [vmem:[%s550 + $0x30] sm:$0xff] %v5614
      %5851 = vst [vmem:[%s550 + $0x38] sm:$0xff] %v5617
      %5852 = vst [vmem:[%s550 + $0x40] sm:$0xff] %v5622
      %5853 = vst [vmem:[%s550 + $0x48] sm:$0xff] %v5625
      %5854 = vst [vmem:[%s550 + $0x50] sm:$0xff] %v5630
      %5855 = vst [vmem:[%s550 + $0x58] sm:$0xff] %v5633
      %5856 = vst [vmem:[%s550 + $0x60] sm:$0xff] %v5638
      %5857 = vst [vmem:[%s550 + $0x68] sm:$0xff] %v5641
      %5858 = vst [vmem:[%s550 + $0x70] sm:$0xff] %v5646
      %5859 = vst [vmem:[%s550 + $0x78] sm:$0xff] %v5649
      %5860 = vst [vmem:[%s550 + $0x80] sm:$0xff] %v5654
      %5861 = vst [vmem:[%s550 + $0x88] sm:$0xff] %v5657
      %5862 = vst [vmem:[%s550 + $0x90] sm:$0xff] %v5662
      %5863 = vst [vmem:[%s550 + $0x98] sm:$0xff] %v5665
      %5864 = vst [vmem:[%s550 + $0xa0] sm:$0xff] %v5670
      %5865 = vst [vmem:[%s550 + $0xa8] sm:$0xff] %v5673
      %5866 = vst [vmem:[%s550 + $0xb0] sm:$0xff] %v5678
      %5867 = vst [vmem:[%s550 + $0xb8] sm:$0xff] %v5681
      %5868 = vst [vmem:[%s550 + $0xc0] sm:$0xff] %v5686
      %5869 = vst [vmem:[%s550 + $0xc8] sm:$0xff] %v5689
      %5870 = vst [vmem:[%s550 + $0xd0] sm:$0xff] %v5694
      %5871 = vst [vmem:[%s550 + $0xd8] sm:$0xff] %v5697
      %5872 = vst [vmem:[%s550 + $0xe0] sm:$0xff] %v5702
      %5873 = vst [vmem:[%s550 + $0xe8] sm:$0xff] %v5705
      %5874 = vst [vmem:[%s550 + $0xf0] sm:$0xff] %v5710
      %5875 = vst [vmem:[%s550 + $0xf8] sm:$0xff] %v5713
      %5876 = vst [vmem:[%s550 + $0x100] sm:$0xff] %v5718
      %5877 = vst [vmem:[%s550 + $0x108] sm:$0xff] %v5721
      %5878 = vst [vmem:[%s550 + $0x110] sm:$0xff] %v5726
      %5879 = vst [vmem:[%s550 + $0x118] sm:$0xff] %v5729
      %5880 = vst [vmem:[%s550 + $0x120] sm:$0xff] %v5734
      %5881 = vst [vmem:[%s550 + $0x128] sm:$0xff] %v5737
      %5882 = vst [vmem:[%s550 + $0x130] sm:$0xff] %v5742
      %5883 = vst [vmem:[%s550 + $0x138] sm:$0xff] %v5745
      %5884 = vst [vmem:[%s550 + $0x140] sm:$0xff] %v5750
      %5885 = vst [vmem:[%s550 + $0x148] sm:$0xff] %v5753
      %5886 = vst [vmem:[%s550 + $0x150] sm:$0xff] %v5758
      %5887 = vst [vmem:[%s550 + $0x158] sm:$0xff] %v5761
      %5888 = vst [vmem:[%s550 + $0x160] sm:$0xff] %v5766
      %5889 = vst [vmem:[%s550 + $0x168] sm:$0xff] %v5769
      %5890 = vst [vmem:[%s550 + $0x170] sm:$0xff] %v5774
      %5891 = vst [vmem:[%s550 + $0x178] sm:$0xff] %v5777
      %5892 = vst [vmem:[%s550 + $0x180] sm:$0xff] %v5782
      %5893 = vst [vmem:[%s550 + $0x188] sm:$0xff] %v5785
      %5894 = vst [vmem:[%s550 + $0x190] sm:$0xff] %v5790
      %5895 = vst [vmem:[%s550 + $0x198] sm:$0xff] %v5793
      %5896 = vst [vmem:[%s550 + $0x1a0] sm:$0xff] %v5798
      %5897 = vst [vmem:[%s550 + $0x1a8] sm:$0xff] %v5801
      %5898 = vst [vmem:[%s550 + $0x1b0] sm:$0xff] %v5806
      %5899 = vst [vmem:[%s550 + $0x1b8] sm:$0xff] %v5809
      %5900 = vst [vmem:[%s550 + $0x1c0] sm:$0xff] %v5814
      %5901 = vst [vmem:[%s550 + $0x1c8] sm:$0xff] %v5817
      %5902 = vst [vmem:[%s550 + $0x1d0] sm:$0xff] %v5822
      %5903 = vst [vmem:[%s550 + $0x1d8] sm:$0xff] %v5825
      %5904 = vst [vmem:[%s550 + $0x1e0] sm:$0xff] %v5830
      %5905 = vst [vmem:[%s550 + $0x1e8] sm:$0xff] %v5833
      %5906 = vst [vmem:[%s550 + $0x1f0] sm:$0xff] %v5838
      %5907 = vst [vmem:[%s550 + $0x1f8] sm:$0xff] %v5841
      %s5908 = smul.u32 64, %s28
      %p5909 = scmp.lt.s32.totalorder %s5908, 127
      %s5910 = scalar_select %p5909, %s5908, 127
      %s5911 = smul.addr %s5910, 8
      %s5912 = scalar_lea.vmem %s17, %s5911
      // Predicated region
      $region89: #{wavenet_forward.1} parent=87 // pred_check
        %p5913 = pneg %p408
      $region90: #{wavenet_forward.1} parent=87 // pred_check_branch
        %5915 = sbr.rel (%p5913) target = $region92
      $region91: #{wavenet_forward.1} parent=87 // pred_region
        %s5916 = smul.u32 64, %s28
      $region92: #{wavenet_forward.1} parent=87 // pred_fallthru
        _
    $region88: #{wavenet_forward.1} parent=5 // pred_fallthru
      _
    %p5917 = scmp.le.s32.totalorder 2, %s23
    // Predicated region
    $region93: #{wavenet_forward.1} parent=5 // pred_check
      %p5918 = pneg %p5917
    $region94: #{wavenet_forward.1} parent=5 // pred_check_branch
      %5920 = sbr.rel (%p5918) target = $region96
    $region95: #{wavenet_forward.1} parent=5 // pred_region
      %s5921 = ssub.s32 %s23, 2
      // Predicated region
      $region97: #{wavenet_forward.1} parent=95 // pred_check
        %p5922 = pneg %p414
      $region98: #{wavenet_forward.1} parent=95 // pred_check_branch
        %5924 = sbr.rel (%p5922) target = $region100
      $region99: #{wavenet_forward.1} parent=95 // pred_region
        %s5925 = smul.u32 64, %s29
        %p5926 = scmp.lt.s32.totalorder %s5925, 127
        %s5927 = scalar_select %p5926, %s5925, 127
        %s5928 = smul.addr %s5927, 8
        %s5929 = scalar_lea.vmem %s17, %s5928
      $region100: #{wavenet_forward.1} parent=95 // pred_fallthru
        _
    $region96: #{wavenet_forward.1} parent=5 // pred_fallthru
      _
  $region6: #{wavenet_forward.1} parent=0 // loop_footer
    %s27 = sadd.s32 1, %s23
  $region7: #{wavenet_forward.1} parent=0 // loop_footer_branch
    %22 = sbr.rel target = $region3
  $region8: #{wavenet_forward.1} parent=0 // loop_exit
    _

</llo_original>
